<compile_context>
chip_gen: v5e
topology: v5e:2x2
jax: 0.10.0
libtpu: 0.0.40
codegen_flags: <defaults>
</compile_context>

<pallas_src>
import jax
import jax.numpy as jnp
import numpy as np
from jax import lax
from jax.experimental import pallas as pl
from jax.experimental.pallas import tpu as pltpu

NUM_ITER = 10
SMOOTH = 1.0


# ------------- morphology helpers on a 2-D (rows, lanes) VMEM tile -------------

def _pool3_min(img, axis, first_mask, last_mask):
    """3-wide min along `axis`, +inf outside the per-slice boundaries."""
    n = img.shape[axis]
    if n == 1:
        return img
    # np.roll semantics: roll(img, n-1)[i] = img[i+1], roll(img, 1)[i] = img[i-1].
    nxt = jnp.where(last_mask, jnp.inf, pltpu.roll(img, n - 1, axis))
    prv = jnp.where(first_mask, jnp.inf, pltpu.roll(img, 1, axis))
    return jnp.minimum(jnp.minimum(nxt, img), prv)


def _pool3_max(img, axis, first_mask, last_mask):
    """3-wide max along `axis`, -inf outside the per-slice boundaries."""
    n = img.shape[axis]
    if n == 1:
        return img
    nxt = jnp.where(last_mask, -jnp.inf, pltpu.roll(img, n - 1, axis))
    prv = jnp.where(first_mask, -jnp.inf, pltpu.roll(img, 1, axis))
    return jnp.maximum(jnp.maximum(nxt, img), prv)


def _soft_erode(img, masks):
    # torch: min(-maxpool(-img,(3,1),pad(1,0)), -maxpool(-img,(1,3),pad(0,1)))
    rf, rl, cf, cl_ = masks
    return jnp.minimum(_pool3_min(img, 0, rf, rl),
                       _pool3_min(img, 1, cf, cl_))


def _soft_dilate(img, masks):
    # torch: maxpool(img,(3,3),pad(1,1)) — separable max.
    rf, rl, cf, cl_ = masks
    return _pool3_max(_pool3_max(img, 0, rf, rl), 1, cf, cl_)


def _soft_skel(img, masks):
    # Equivalent to the reference loop, but the carry holds the eroded image so
    # the erode computed inside soft_open(cur) at step k is reused as `cur` at
    # step k+1 (1 erode + 1 dilate per iteration instead of 2 erodes + 1 dilate).
    e = _soft_erode(img, masks)
    skel = jnp.maximum(img - _soft_dilate(e, masks), 0.0)

    def body(_, carry):
        cur, sk = carry                       # cur = erode^{k+1}(original img)
        e_next = _soft_erode(cur, masks)      # reused as next iteration's cur
        opened = _soft_dilate(e_next, masks)  # soft_open(cur)
        delta = jnp.maximum(cur - opened, 0.0)
        sk = sk + jnp.maximum(delta - sk * delta, 0.0)
        return e_next, sk

    _, skel = lax.fori_loop(0, NUM_ITER, body, (e, skel), unroll=True)
    return skel


# --------------------------------- Pallas kernel ---------------------------------

def _make_cl_dice_kernel(bt, h, w, l):
    def kernel(x_ref, y_ref, out_ref):
        # Boundary masks, computed once per grid step (loop-invariant).
        #   rows: slice boundaries along H (no packing along rows)
        #   cols: slice boundaries every W lanes (lane packing)
        rows = lax.broadcasted_iota(jnp.int32, (h, l), 0)
        cols = lax.broadcasted_iota(jnp.int32, (h, l), 1) % w
        masks = (rows == 0, rows == h - 1, cols == 0, cols == w - 1)

        for b in range(bt):                      # static, unrolled batch loop
            xb = x_ref[b]                        # (h, l) prediction tile
            yb = y_ref[b]                        # (h, l) target tile (one-hot floats)
            skel_pred = _soft_skel(xb, masks)
            skel_true = _soft_skel(yb, masks)
            # Lane-dense partial sums (reduced over H); the per-slice lane-group
            # reduction and the clDice ratio are finished in JAX (tiny).
            out_ref[b] = jnp.concatenate(
                [jnp.sum(skel_pred * yb, axis=0, keepdims=True),
                 jnp.sum(skel_pred, axis=0, keepdims=True),
                 jnp.sum(skel_true * xb, axis=0, keepdims=True),
                 jnp.sum(skel_true, axis=0, keepdims=True)],
                axis=0)

    return kernel


def memory_efficient_soft_cl_dice_loss(x, y, smooth=SMOOTH):
    """x, y: (N, C, H, W) float arrays (y already one-hot / same shape as x)."""
    n, c, h, w = x.shape
    assert y.shape == x.shape
    g = n * c

    # Lane packing: put pw = 128//W (n,c) slices side by side along lanes.
    pw = max(1, 128 // w) if w < 128 else 1
    l = pw * w

    # Packed tiles needed, and packed tiles per grid step (bt).
    t0 = -(-g // pw)
    bt = min(t0, 8, max(1, 256 // h), max(1, (2 << 20) // (h * l * 4)))
    bt = max(1, bt)
    nsteps = -(-t0 // bt)
    tb = nsteps * bt               # total packed tiles after padding
    gpad = tb * pw                 # total slices after padding

    xf = x.reshape(g, h, w).astype(jnp.float32)
    yf = y.reshape(g, h, w).astype(jnp.float32)
    if gpad > g:                   # zero-pad; padded slices are dropped below
        pad = ((0, gpad - g), (0, 0), (0, 0))
        xf = jnp.pad(xf, pad)
        yf = jnp.pad(yf, pad)

    # (gpad,h,w) -> (tb,pw,h,w) -> (tb,h,pw,w) -> (tb,h,l): slice g = tile*pw + p
    # occupies lanes [p*w, (p+1)*w) of packed tile `tile`.
    xp = xf.reshape(tb, pw, h, w).transpose(0, 2, 1, 3).reshape(tb, h, l)
    yp = yf.reshape(tb, pw, h, w).transpose(0, 2, 1, 3).reshape(tb, h, l)

    sums = pl.pallas_call(
        _make_cl_dice_kernel(bt, h, w, l),
        out_shape=jax.ShapeDtypeStruct((tb, 4, l), jnp.float32),
        grid=(nsteps,),
        in_specs=[pl.BlockSpec((bt, h, l), lambda i: (i, 0, 0)),
                  pl.BlockSpec((bt, h, l), lambda i: (i, 0, 0))],
        out_specs=pl.BlockSpec((bt, 4, l), lambda i: (i, 0, 0)),
        compiler_params=pltpu.CompilerParams(
            dimension_semantics=("parallel",)),
    )(xp, yp)

    # Finish per-slice reductions + (tiny) clDice math in JAX.
    per_slice = sums.reshape(tb, 4, pw, w).sum(-1)            # (tb, 4, pw)
    per_slice = per_slice.transpose(1, 0, 2).reshape(4, gpad)[:, :g]

    tprec = (per_slice[0] + smooth) / (per_slice[1] + smooth)
    tsens = (per_slice[2] + smooth) / (per_slice[3] + smooth)
    cl_dc = (2.0 * tprec * tsens + smooth) / (tprec + tsens + smooth)
    # batch_dice=False, do_bg=True, loss_mask=None
    return -jnp.mean(cl_dc)


# --------------------------- pure-JAX reference (for check) ---------------------------

def _ref_loss(x, y, num_iter=NUM_ITER, smooth=SMOOTH):
    def erode(img):
        ph = jnp.pad(img, ((0, 0), (0, 0), (1, 1), (0, 0)), constant_values=jnp.inf)
        p1 = jnp.minimum(jnp.minimum(ph[:, :, :-2, :], ph[:, :, 1:-1, :]), ph[:, :, 2:, :])
        pw = jnp.pad(img, ((0, 0), (0, 0), (0, 0), (1, 1)), constant_values=jnp.inf)
        p2 = jnp.minimum(jnp.minimum(pw[..., :-2], pw[..., 1:-1]), pw[..., 2:])
        return jnp.minimum(p1, p2)

    def dilate(img):
        ph = jnp.pad(img, ((0, 0), (0, 0), (1, 1), (0, 0)), constant_values=-jnp.inf)
        m = jnp.maximum(jnp.maximum(ph[:, :, :-2, :], ph[:, :, 1:-1, :]), ph[:, :, 2:, :])
        pw = jnp.pad(m, ((0, 0), (0, 0), (0, 0), (1, 1)), constant_values=-jnp.inf)
        return jnp.maximum(jnp.maximum(pw[..., :-2], pw[..., 1:-1]), pw[..., 2:])

    def opening(img):
        return dilate(erode(img))

    def skel(img):
        s = jnp.maximum(img - opening(img), 0.0)
        cur = img
        for _ in range(num_iter):
            cur = erode(cur)
            d = jnp.maximum(cur - opening(cur), 0.0)
            s = s + jnp.maximum(d - s * d, 0.0)
        return s

    sp, st = skel(x), skel(y)
    axes = (2, 3)
    tprec = (jnp.sum(sp * y, axes) + smooth) / (jnp.sum(sp, axes) + smooth)
    tsens = (jnp.sum(st * x, axes) + smooth) / (jnp.sum(st, axes) + smooth)
    cl = (2.0 * tprec * tsens + smooth) / (tprec + tsens + smooth)
    return -jnp.mean(cl)


if __name__ == "__main__":
    key = jax.random.PRNGKey(0)
    kx, ky = jax.random.split(key)
    N, C, H, W = 2, 4, 16, 16
    x = jax.random.uniform(kx, (N, C, H, W), dtype=jnp.float32)           # probs in [0,1)
    y = (jax.random.uniform(ky, (N, C, H, W)) > 0.5).astype(jnp.float32)  # one-hot-like target

    loss_fn = jax.jit(memory_efficient_soft_cl_dice_loss)
    loss = jax.block_until_ready(loss_fn(x, y))

    ref = _ref_loss(x, y)
    assert np.allclose(np.asarray(loss), np.asarray(ref), rtol=1e-5, atol=1e-5), (loss, ref)
    print("KERNEL_OK")
</pallas_src>

<mosaic_0001>
module attributes {stable_mosaic.version = 11 : i64} {
  func.func @kernel(%arg0: i32, %arg1: memref<1x16x128xf32, #tpu.memory_space<vmem>>, %arg2: memref<1x16x128xf32, #tpu.memory_space<vmem>>, %arg3: memref<1x4x128xf32, #tpu.memory_space<vmem>>) attributes {dimension_semantics = [#tpu.dimension_semantics<parallel>], iteration_bounds = array<i64: 1>, scalar_prefetch = 0 : i64, scratch_operands = 0 : i64, tpu.core_type = #tpu.core_type<tc>, window_params = [{transform_indices = @transform_0, window_bounds = array<i64: 1, 16, 128>}, {transform_indices = @transform_1, window_bounds = array<i64: 1, 16, 128>}, {transform_indices = @transform_2, window_bounds = array<i64: 1, 4, 128>}]} {
    %0 = tpu.iota {dimensions = array<i32: 0>} : vector<16x128xi32>
    %1 = tpu.iota {dimensions = array<i32: 1>} : vector<16x128xi32>
    %c16_i32 = arith.constant 16 : i32
    %c0_i32 = arith.constant 0 : i32
    %2 = arith.cmpi eq, %c16_i32, %c0_i32 : i32
    %c1_i32 = arith.constant 1 : i32
    %3 = arith.select %2, %c1_i32, %c16_i32 : i32
    %4 = vector.broadcast %3 : i32 to vector<16x128xi32>
    %5 = arith.remsi %1, %4 : vector<16x128xi32>
    %c0_i32_0 = arith.constant 0 : i32
    %6 = vector.broadcast %c0_i32_0 : i32 to vector<16x128xi32>
    %7 = arith.cmpi ne, %5, %6 : vector<16x128xi32>
    %c0_i32_1 = arith.constant 0 : i32
    %8 = vector.broadcast %c0_i32_1 : i32 to vector<16x128xi32>
    %9 = arith.cmpi slt, %5, %8 : vector<16x128xi32>
    %c0_i32_2 = arith.constant 0 : i32
    %10 = arith.cmpi slt, %3, %c0_i32_2 : i32
    %11 = vector.broadcast %10 : i1 to vector<16x128xi1>
    %12 = vector.broadcast %11 : vector<16x128xi1> to vector<16x128xi1>
    %13 = arith.xori %9, %12 : vector<16x128xi1>
    %14 = arith.andi %13, %7 : vector<16x128xi1>
    %15 = vector.broadcast %3 : i32 to vector<16x128xi32>
    %16 = arith.addi %5, %15 : vector<16x128xi32>
    %17 = arith.select %14, %16, %5 : vector<16x128xi1>, vector<16x128xi32>
    %c0_i32_3 = arith.constant 0 : i32
    %18 = vector.broadcast %c0_i32_3 : i32 to vector<16x128xi32>
    %19 = arith.cmpi eq, %0, %18 : vector<16x128xi32>
    %c15_i32 = arith.constant 15 : i32
    %20 = vector.broadcast %c15_i32 : i32 to vector<16x128xi32>
    %21 = arith.cmpi eq, %0, %20 : vector<16x128xi32>
    %c0_i32_4 = arith.constant 0 : i32
    %22 = vector.broadcast %c0_i32_4 : i32 to vector<16x128xi32>
    %23 = arith.cmpi eq, %17, %22 : vector<16x128xi32>
    %c15_i32_5 = arith.constant 15 : i32
    %24 = vector.broadcast %c15_i32_5 : i32 to vector<16x128xi32>
    %25 = arith.cmpi eq, %17, %24 : vector<16x128xi32>
    %c0 = arith.constant 0 : index
    %c0_6 = arith.constant 0 : index
    %c0_7 = arith.constant 0 : index
    %26 = vector.load %arg1[%c0, %c0_6, %c0_7] : memref<1x16x128xf32, #tpu.memory_space<vmem>>, vector<1x16x128xf32>
    %27 = vector.shape_cast %26 : vector<1x16x128xf32> to vector<16x128xf32>
    %c0_8 = arith.constant 0 : index
    %c0_9 = arith.constant 0 : index
    %c0_10 = arith.constant 0 : index
    %28 = vector.load %arg2[%c0_8, %c0_9, %c0_10] : memref<1x16x128xf32, #tpu.memory_space<vmem>>, vector<1x16x128xf32>
    %29 = vector.shape_cast %28 : vector<1x16x128xf32> to vector<16x128xf32>
    %c15_i32_11 = arith.constant 15 : i32
    %30 = tpu.dynamic_rotate %27 by %c15_i32_11 dim 0 : vector<16x128xf32>, i32 -> vector<16x128xf32>
    %cst = arith.constant 0x7F800000 : f32
    %31 = vector.broadcast %cst : f32 to vector<16x128xf32>
    %32 = arith.select %21, %31, %30 : vector<16x128xi1>, vector<16x128xf32>
    %c1_i32_12 = arith.constant 1 : i32
    %33 = tpu.dynamic_rotate %27 by %c1_i32_12 dim 0 : vector<16x128xf32>, i32 -> vector<16x128xf32>
    %cst_13 = arith.constant 0x7F800000 : f32
    %34 = vector.broadcast %cst_13 : f32 to vector<16x128xf32>
    %35 = arith.select %19, %34, %33 : vector<16x128xi1>, vector<16x128xf32>
    %36 = arith.minimumf %32, %27 : vector<16x128xf32>
    %37 = arith.minimumf %36, %35 : vector<16x128xf32>
    %c127_i32 = arith.constant 127 : i32
    %38 = tpu.dynamic_rotate %27 by %c127_i32 dim 1 : vector<16x128xf32>, i32 -> vector<16x128xf32>
    %cst_14 = arith.constant 0x7F800000 : f32
    %39 = vector.broadcast %cst_14 : f32 to vector<16x128xf32>
    %40 = arith.select %25, %39, %38 : vector<16x128xi1>, vector<16x128xf32>
    %c1_i32_15 = arith.constant 1 : i32
    %41 = tpu.dynamic_rotate %27 by %c1_i32_15 dim 1 : vector<16x128xf32>, i32 -> vector<16x128xf32>
    %cst_16 = arith.constant 0x7F800000 : f32
    %42 = vector.broadcast %cst_16 : f32 to vector<16x128xf32>
    %43 = arith.select %23, %42, %41 : vector<16x128xi1>, vector<16x128xf32>
    %44 = arith.minimumf %40, %27 : vector<16x128xf32>
    %45 = arith.minimumf %44, %43 : vector<16x128xf32>
    %46 = arith.minimumf %37, %45 : vector<16x128xf32>
    %c15_i32_17 = arith.constant 15 : i32
    %47 = tpu.dynamic_rotate %46 by %c15_i32_17 dim 0 : vector<16x128xf32>, i32 -> vector<16x128xf32>
    %cst_18 = arith.constant 0xFF800000 : f32
    %48 = vector.broadcast %cst_18 : f32 to vector<16x128xf32>
    %49 = arith.select %21, %48, %47 : vector<16x128xi1>, vector<16x128xf32>
    %c1_i32_19 = arith.constant 1 : i32
    %50 = tpu.dynamic_rotate %46 by %c1_i32_19 dim 0 : vector<16x128xf32>, i32 -> vector<16x128xf32>
    %cst_20 = arith.constant 0xFF800000 : f32
    %51 = vector.broadcast %cst_20 : f32 to vector<16x128xf32>
    %52 = arith.select %19, %51, %50 : vector<16x128xi1>, vector<16x128xf32>
    %53 = arith.maximumf %49, %46 : vector<16x128xf32>
    %54 = arith.maximumf %53, %52 : vector<16x128xf32>
    %c127_i32_21 = arith.constant 127 : i32
    %55 = tpu.dynamic_rotate %54 by %c127_i32_21 dim 1 : vector<16x128xf32>, i32 -> vector<16x128xf32>
    %cst_22 = arith.constant 0xFF800000 : f32
    %56 = vector.broadcast %cst_22 : f32 to vector<16x128xf32>
    %57 = arith.select %25, %56, %55 : vector<16x128xi1>, vector<16x128xf32>
    %c1_i32_23 = arith.constant 1 : i32
    %58 = tpu.dynamic_rotate %54 by %c1_i32_23 dim 1 : vector<16x128xf32>, i32 -> vector<16x128xf32>
    %cst_24 = arith.constant 0xFF800000 : f32
    %59 = vector.broadcast %cst_24 : f32 to vector<16x128xf32>
    %60 = arith.select %23, %59, %58 : vector<16x128xi1>, vector<16x128xf32>
    %61 = arith.maximumf %57, %54 : vector<16x128xf32>
    %62 = arith.maximumf %61, %60 : vector<16x128xf32>
    %63 = arith.subf %27, %62 : vector<16x128xf32>
    %cst_25 = arith.constant 0.000000e+00 : f32
    %64 = vector.broadcast %cst_25 : f32 to vector<16x128xf32>
    %65 = arith.maximumf %63, %64 : vector<16x128xf32>
    %c0_i32_26 = arith.constant 0 : i32
    %c15_i32_27 = arith.constant 15 : i32
    %66 = tpu.dynamic_rotate %46 by %c15_i32_27 dim 0 : vector<16x128xf32>, i32 -> vector<16x128xf32>
    %cst_28 = arith.constant 0x7F800000 : f32
    %67 = vector.broadcast %cst_28 : f32 to vector<16x128xf32>
    %68 = arith.select %21, %67, %66 : vector<16x128xi1>, vector<16x128xf32>
    %c1_i32_29 = arith.constant 1 : i32
    %69 = tpu.dynamic_rotate %46 by %c1_i32_29 dim 0 : vector<16x128xf32>, i32 -> vector<16x128xf32>
    %cst_30 = arith.constant 0x7F800000 : f32
    %70 = vector.broadcast %cst_30 : f32 to vector<16x128xf32>
    %71 = arith.select %19, %70, %69 : vector<16x128xi1>, vector<16x128xf32>
    %72 = arith.minimumf %68, %46 : vector<16x128xf32>
    %73 = arith.minimumf %72, %71 : vector<16x128xf32>
    %c127_i32_31 = arith.constant 127 : i32
    %74 = tpu.dynamic_rotate %46 by %c127_i32_31 dim 1 : vector<16x128xf32>, i32 -> vector<16x128xf32>
    %cst_32 = arith.constant 0x7F800000 : f32
    %75 = vector.broadcast %cst_32 : f32 to vector<16x128xf32>
    %76 = arith.select %25, %75, %74 : vector<16x128xi1>, vector<16x128xf32>
    %c1_i32_33 = arith.constant 1 : i32
    %77 = tpu.dynamic_rotate %46 by %c1_i32_33 dim 1 : vector<16x128xf32>, i32 -> vector<16x128xf32>
    %cst_34 = arith.constant 0x7F800000 : f32
    %78 = vector.broadcast %cst_34 : f32 to vector<16x128xf32>
    %79 = arith.select %23, %78, %77 : vector<16x128xi1>, vector<16x128xf32>
    %80 = arith.minimumf %76, %46 : vector<16x128xf32>
    %81 = arith.minimumf %80, %79 : vector<16x128xf32>
    %82 = arith.minimumf %73, %81 : vector<16x128xf32>
    %c15_i32_35 = arith.constant 15 : i32
    %83 = tpu.dynamic_rotate %82 by %c15_i32_35 dim 0 : vector<16x128xf32>, i32 -> vector<16x128xf32>
    %cst_36 = arith.constant 0xFF800000 : f32
    %84 = vector.broadcast %cst_36 : f32 to vector<16x128xf32>
    %85 = arith.select %21, %84, %83 : vector<16x128xi1>, vector<16x128xf32>
    %c1_i32_37 = arith.constant 1 : i32
    %86 = tpu.dynamic_rotate %82 by %c1_i32_37 dim 0 : vector<16x128xf32>, i32 -> vector<16x128xf32>
    %cst_38 = arith.constant 0xFF800000 : f32
    %87 = vector.broadcast %cst_38 : f32 to vector<16x128xf32>
    %88 = arith.select %19, %87, %86 : vector<16x128xi1>, vector<16x128xf32>
    %89 = arith.maximumf %85, %82 : vector<16x128xf32>
    %90 = arith.maximumf %89, %88 : vector<16x128xf32>
    %c127_i32_39 = arith.constant 127 : i32
    %91 = tpu.dynamic_rotate %90 by %c127_i32_39 dim 1 : vector<16x128xf32>, i32 -> vector<16x128xf32>
    %cst_40 = arith.constant 0xFF800000 : f32
    %92 = vector.broadcast %cst_40 : f32 to vector<16x128xf32>
    %93 = arith.select %25, %92, %91 : vector<16x128xi1>, vector<16x128xf32>
    %c1_i32_41 = arith.constant 1 : i32
    %94 = tpu.dynamic_rotate %90 by %c1_i32_41 dim 1 : vector<16x128xf32>, i32 -> vector<16x128xf32>
    %cst_42 = arith.constant 0xFF800000 : f32
    %95 = vector.broadcast %cst_42 : f32 to vector<16x128xf32>
    %96 = arith.select %23, %95, %94 : vector<16x128xi1>, vector<16x128xf32>
    %97 = arith.maximumf %93, %90 : vector<16x128xf32>
    %98 = arith.maximumf %97, %96 : vector<16x128xf32>
    %99 = arith.subf %46, %98 : vector<16x128xf32>
    %cst_43 = arith.constant 0.000000e+00 : f32
    %100 = vector.broadcast %cst_43 : f32 to vector<16x128xf32>
    %101 = arith.maximumf %99, %100 : vector<16x128xf32>
    %102 = arith.mulf %65, %101 : vector<16x128xf32>
    %103 = arith.subf %101, %102 : vector<16x128xf32>
    %cst_44 = arith.constant 0.000000e+00 : f32
    %104 = vector.broadcast %cst_44 : f32 to vector<16x128xf32>
    %105 = arith.maximumf %103, %104 : vector<16x128xf32>
    %106 = arith.addf %65, %105 : vector<16x128xf32>
    %c1_i32_45 = arith.constant 1 : i32
    %c15_i32_46 = arith.constant 15 : i32
    %107 = tpu.dynamic_rotate %82 by %c15_i32_46 dim 0 : vector<16x128xf32>, i32 -> vector<16x128xf32>
    %cst_47 = arith.constant 0x7F800000 : f32
    %108 = vector.broadcast %cst_47 : f32 to vector<16x128xf32>
    %109 = arith.select %21, %108, %107 : vector<16x128xi1>, vector<16x128xf32>
    %c1_i32_48 = arith.constant 1 : i32
    %110 = tpu.dynamic_rotate %82 by %c1_i32_48 dim 0 : vector<16x128xf32>, i32 -> vector<16x128xf32>
    %cst_49 = arith.constant 0x7F800000 : f32
    %111 = vector.broadcast %cst_49 : f32 to vector<16x128xf32>
    %112 = arith.select %19, %111, %110 : vector<16x128xi1>, vector<16x128xf32>
    %113 = arith.minimumf %109, %82 : vector<16x128xf32>
    %114 = arith.minimumf %113, %112 : vector<16x128xf32>
    %c127_i32_50 = arith.constant 127 : i32
    %115 = tpu.dynamic_rotate %82 by %c127_i32_50 dim 1 : vector<16x128xf32>, i32 -> vector<16x128xf32>
    %cst_51 = arith.constant 0x7F800000 : f32
    %116 = vector.broadcast %cst_51 : f32 to vector<16x128xf32>
    %117 = arith.select %25, %116, %115 : vector<16x128xi1>, vector<16x128xf32>
    %c1_i32_52 = arith.constant 1 : i32
    %118 = tpu.dynamic_rotate %82 by %c1_i32_52 dim 1 : vector<16x128xf32>, i32 -> vector<16x128xf32>
    %cst_53 = arith.constant 0x7F800000 : f32
    %119 = vector.broadcast %cst_53 : f32 to vector<16x128xf32>
    %120 = arith.select %23, %119, %118 : vector<16x128xi1>, vector<16x128xf32>
    %121 = arith.minimumf %117, %82 : vector<16x128xf32>
    %122 = arith.minimumf %121, %120 : vector<16x128xf32>
    %123 = arith.minimumf %114, %122 : vector<16x128xf32>
    %c15_i32_54 = arith.constant 15 : i32
    %124 = tpu.dynamic_rotate %123 by %c15_i32_54 dim 0 : vector<16x128xf32>, i32 -> vector<16x128xf32>
    %cst_55 = arith.constant 0xFF800000 : f32
    %125 = vector.broadcast %cst_55 : f32 to vector<16x128xf32>
    %126 = arith.select %21, %125, %124 : vector<16x128xi1>, vector<16x128xf32>
    %c1_i32_56 = arith.constant 1 : i32
    %127 = tpu.dynamic_rotate %123 by %c1_i32_56 dim 0 : vector<16x128xf32>, i32 -> vector<16x128xf32>
    %cst_57 = arith.constant 0xFF800000 : f32
    %128 = vector.broadcast %cst_57 : f32 to vector<16x128xf32>
    %129 = arith.select %19, %128, %127 : vector<16x128xi1>, vector<16x128xf32>
    %130 = arith.maximumf %126, %123 : vector<16x128xf32>
    %131 = arith.maximumf %130, %129 : vector<16x128xf32>
    %c127_i32_58 = arith.constant 127 : i32
    %132 = tpu.dynamic_rotate %131 by %c127_i32_58 dim 1 : vector<16x128xf32>, i32 -> vector<16x128xf32>
    %cst_59 = arith.constant 0xFF800000 : f32
    %133 = vector.broadcast %cst_59 : f32 to vector<16x128xf32>
    %134 = arith.select %25, %133, %132 : vector<16x128xi1>, vector<16x128xf32>
    %c1_i32_60 = arith.constant 1 : i32
    %135 = tpu.dynamic_rotate %131 by %c1_i32_60 dim 1 : vector<16x128xf32>, i32 -> vector<16x128xf32>
    %cst_61 = arith.constant 0xFF800000 : f32
    %136 = vector.broadcast %cst_61 : f32 to vector<16x128xf32>
    %137 = arith.select %23, %136, %135 : vector<16x128xi1>, vector<16x128xf32>
    %138 = arith.maximumf %134, %131 : vector<16x128xf32>
    %139 = arith.maximumf %138, %137 : vector<16x128xf32>
    %140 = arith.subf %82, %139 : vector<16x128xf32>
    %cst_62 = arith.constant 0.000000e+00 : f32
    %141 = vector.broadcast %cst_62 : f32 to vector<16x128xf32>
    %142 = arith.maximumf %140, %141 : vector<16x128xf32>
    %143 = arith.mulf %106, %142 : vector<16x128xf32>
    %144 = arith.subf %142, %143 : vector<16x128xf32>
    %cst_63 = arith.constant 0.000000e+00 : f32
    %145 = vector.broadcast %cst_63 : f32 to vector<16x128xf32>
    %146 = arith.maximumf %144, %145 : vector<16x128xf32>
    %147 = arith.addf %106, %146 : vector<16x128xf32>
    %c2_i32 = arith.constant 2 : i32
    %c15_i32_64 = arith.constant 15 : i32
    %148 = tpu.dynamic_rotate %123 by %c15_i32_64 dim 0 : vector<16x128xf32>, i32 -> vector<16x128xf32>
    %cst_65 = arith.constant 0x7F800000 : f32
    %149 = vector.broadcast %cst_65 : f32 to vector<16x128xf32>
    %150 = arith.select %21, %149, %148 : vector<16x128xi1>, vector<16x128xf32>
    %c1_i32_66 = arith.constant 1 : i32
    %151 = tpu.dynamic_rotate %123 by %c1_i32_66 dim 0 : vector<16x128xf32>, i32 -> vector<16x128xf32>
    %cst_67 = arith.constant 0x7F800000 : f32
    %152 = vector.broadcast %cst_67 : f32 to vector<16x128xf32>
    %153 = arith.select %19, %152, %151 : vector<16x128xi1>, vector<16x128xf32>
    %154 = arith.minimumf %150, %123 : vector<16x128xf32>
    %155 = arith.minimumf %154, %153 : vector<16x128xf32>
    %c127_i32_68 = arith.constant 127 : i32
    %156 = tpu.dynamic_rotate %123 by %c127_i32_68 dim 1 : vector<16x128xf32>, i32 -> vector<16x128xf32>
    %cst_69 = arith.constant 0x7F800000 : f32
    %157 = vector.broadcast %cst_69 : f32 to vector<16x128xf32>
    %158 = arith.select %25, %157, %156 : vector<16x128xi1>, vector<16x128xf32>
    %c1_i32_70 = arith.constant 1 : i32
    %159 = tpu.dynamic_rotate %123 by %c1_i32_70 dim 1 : vector<16x128xf32>, i32 -> vector<16x128xf32>
    %cst_71 = arith.constant 0x7F800000 : f32
    %160 = vector.broadcast %cst_71 : f32 to vector<16x128xf32>
    %161 = arith.select %23, %160, %159 : vector<16x128xi1>, vector<16x128xf32>
    %162 = arith.minimumf %158, %123 : vector<16x128xf32>
    %163 = arith.minimumf %162, %161 : vector<16x128xf32>
    %164 = arith.minimumf %155, %163 : vector<16x128xf32>
    %c15_i32_72 = arith.constant 15 : i32
    %165 = tpu.dynamic_rotate %164 by %c15_i32_72 dim 0 : vector<16x128xf32>, i32 -> vector<16x128xf32>
    %cst_73 = arith.constant 0xFF800000 : f32
    %166 = vector.broadcast %cst_73 : f32 to vector<16x128xf32>
    %167 = arith.select %21, %166, %165 : vector<16x128xi1>, vector<16x128xf32>
    %c1_i32_74 = arith.constant 1 : i32
    %168 = tpu.dynamic_rotate %164 by %c1_i32_74 dim 0 : vector<16x128xf32>, i32 -> vector<16x128xf32>
    %cst_75 = arith.constant 0xFF800000 : f32
    %169 = vector.broadcast %cst_75 : f32 to vector<16x128xf32>
    %170 = arith.select %19, %169, %168 : vector<16x128xi1>, vector<16x128xf32>
    %171 = arith.maximumf %167, %164 : vector<16x128xf32>
    %172 = arith.maximumf %171, %170 : vector<16x128xf32>
    %c127_i32_76 = arith.constant 127 : i32
    %173 = tpu.dynamic_rotate %172 by %c127_i32_76 dim 1 : vector<16x128xf32>, i32 -> vector<16x128xf32>
    %cst_77 = arith.constant 0xFF800000 : f32
    %174 = vector.broadcast %cst_77 : f32 to vector<16x128xf32>
    %175 = arith.select %25, %174, %173 : vector<16x128xi1>, vector<16x128xf32>
    %c1_i32_78 = arith.constant 1 : i32
    %176 = tpu.dynamic_rotate %172 by %c1_i32_78 dim 1 : vector<16x128xf32>, i32 -> vector<16x128xf32>
    %cst_79 = arith.constant 0xFF800000 : f32
    %177 = vector.broadcast %cst_79 : f32 to vector<16x128xf32>
    %178 = arith.select %23, %177, %176 : vector<16x128xi1>, vector<16x128xf32>
    %179 = arith.maximumf %175, %172 : vector<16x128xf32>
    %180 = arith.maximumf %179, %178 : vector<16x128xf32>
    %181 = arith.subf %123, %180 : vector<16x128xf32>
    %cst_80 = arith.constant 0.000000e+00 : f32
    %182 = vector.broadcast %cst_80 : f32 to vector<16x128xf32>
    %183 = arith.maximumf %181, %182 : vector<16x128xf32>
    %184 = arith.mulf %147, %183 : vector<16x128xf32>
    %185 = arith.subf %183, %184 : vector<16x128xf32>
    %cst_81 = arith.constant 0.000000e+00 : f32
    %186 = vector.broadcast %cst_81 : f32 to vector<16x128xf32>
    %187 = arith.maximumf %185, %186 : vector<16x128xf32>
    %188 = arith.addf %147, %187 : vector<16x128xf32>
    %c3_i32 = arith.constant 3 : i32
    %c15_i32_82 = arith.constant 15 : i32
    %189 = tpu.dynamic_rotate %164 by %c15_i32_82 dim 0 : vector<16x128xf32>, i32 -> vector<16x128xf32>
    %cst_83 = arith.constant 0x7F800000 : f32
    %190 = vector.broadcast %cst_83 : f32 to vector<16x128xf32>
    %191 = arith.select %21, %190, %189 : vector<16x128xi1>, vector<16x128xf32>
    %c1_i32_84 = arith.constant 1 : i32
    %192 = tpu.dynamic_rotate %164 by %c1_i32_84 dim 0 : vector<16x128xf32>, i32 -> vector<16x128xf32>
    %cst_85 = arith.constant 0x7F800000 : f32
    %193 = vector.broadcast %cst_85 : f32 to vector<16x128xf32>
    %194 = arith.select %19, %193, %192 : vector<16x128xi1>, vector<16x128xf32>
    %195 = arith.minimumf %191, %164 : vector<16x128xf32>
    %196 = arith.minimumf %195, %194 : vector<16x128xf32>
    %c127_i32_86 = arith.constant 127 : i32
    %197 = tpu.dynamic_rotate %164 by %c127_i32_86 dim 1 : vector<16x128xf32>, i32 -> vector<16x128xf32>
    %cst_87 = arith.constant 0x7F800000 : f32
    %198 = vector.broadcast %cst_87 : f32 to vector<16x128xf32>
    %199 = arith.select %25, %198, %197 : vector<16x128xi1>, vector<16x128xf32>
    %c1_i32_88 = arith.constant 1 : i32
    %200 = tpu.dynamic_rotate %164 by %c1_i32_88 dim 1 : vector<16x128xf32>, i32 -> vector<16x128xf32>
    %cst_89 = arith.constant 0x7F800000 : f32
    %201 = vector.broadcast %cst_89 : f32 to vector<16x128xf32>
    %202 = arith.select %23, %201, %200 : vector<16x128xi1>, vector<16x128xf32>
    %203 = arith.minimumf %199, %164 : vector<16x128xf32>
    %204 = arith.minimumf %203, %202 : vector<16x128xf32>
    %205 = arith.minimumf %196, %204 : vector<16x128xf32>
    %c15_i32_90 = arith.constant 15 : i32
    %206 = tpu.dynamic_rotate %205 by %c15_i32_90 dim 0 : vector<16x128xf32>, i32 -> vector<16x128xf32>
    %cst_91 = arith.constant 0xFF800000 : f32
    %207 = vector.broadcast %cst_91 : f32 to vector<16x128xf32>
    %208 = arith.select %21, %207, %206 : vector<16x128xi1>, vector<16x128xf32>
    %c1_i32_92 = arith.constant 1 : i32
    %209 = tpu.dynamic_rotate %205 by %c1_i32_92 dim 0 : vector<16x128xf32>, i32 -> vector<16x128xf32>
    %cst_93 = arith.constant 0xFF800000 : f32
    %210 = vector.broadcast %cst_93 : f32 to vector<16x128xf32>
    %211 = arith.select %19, %210, %209 : vector<16x128xi1>, vector<16x128xf32>
    %212 = arith.maximumf %208, %205 : vector<16x128xf32>
    %213 = arith.maximumf %212, %211 : vector<16x128xf32>
    %c127_i32_94 = arith.constant 127 : i32
    %214 = tpu.dynamic_rotate %213 by %c127_i32_94 dim 1 : vector<16x128xf32>, i32 -> vector<16x128xf32>
    %cst_95 = arith.constant 0xFF800000 : f32
    %215 = vector.broadcast %cst_95 : f32 to vector<16x128xf32>
    %216 = arith.select %25, %215, %214 : vector<16x128xi1>, vector<16x128xf32>
    %c1_i32_96 = arith.constant 1 : i32
    %217 = tpu.dynamic_rotate %213 by %c1_i32_96 dim 1 : vector<16x128xf32>, i32 -> vector<16x128xf32>
    %cst_97 = arith.constant 0xFF800000 : f32
    %218 = vector.broadcast %cst_97 : f32 to vector<16x128xf32>
    %219 = arith.select %23, %218, %217 : vector<16x128xi1>, vector<16x128xf32>
    %220 = arith.maximumf %216, %213 : vector<16x128xf32>
    %221 = arith.maximumf %220, %219 : vector<16x128xf32>
    %222 = arith.subf %164, %221 : vector<16x128xf32>
    %cst_98 = arith.constant 0.000000e+00 : f32
    %223 = vector.broadcast %cst_98 : f32 to vector<16x128xf32>
    %224 = arith.maximumf %222, %223 : vector<16x128xf32>
    %225 = arith.mulf %188, %224 : vector<16x128xf32>
    %226 = arith.subf %224, %225 : vector<16x128xf32>
    %cst_99 = arith.constant 0.000000e+00 : f32
    %227 = vector.broadcast %cst_99 : f32 to vector<16x128xf32>
    %228 = arith.maximumf %226, %227 : vector<16x128xf32>
    %229 = arith.addf %188, %228 : vector<16x128xf32>
    %c4_i32 = arith.constant 4 : i32
    %c15_i32_100 = arith.constant 15 : i32
    %230 = tpu.dynamic_rotate %205 by %c15_i32_100 dim 0 : vector<16x128xf32>, i32 -> vector<16x128xf32>
    %cst_101 = arith.constant 0x7F800000 : f32
    %231 = vector.broadcast %cst_101 : f32 to vector<16x128xf32>
    %232 = arith.select %21, %231, %230 : vector<16x128xi1>, vector<16x128xf32>
    %c1_i32_102 = arith.constant 1 : i32
    %233 = tpu.dynamic_rotate %205 by %c1_i32_102 dim 0 : vector<16x128xf32>, i32 -> vector<16x128xf32>
    %cst_103 = arith.constant 0x7F800000 : f32
    %234 = vector.broadcast %cst_103 : f32 to vector<16x128xf32>
    %235 = arith.select %19, %234, %233 : vector<16x128xi1>, vector<16x128xf32>
    %236 = arith.minimumf %232, %205 : vector<16x128xf32>
    %237 = arith.minimumf %236, %235 : vector<16x128xf32>
    %c127_i32_104 = arith.constant 127 : i32
    %238 = tpu.dynamic_rotate %205 by %c127_i32_104 dim 1 : vector<16x128xf32>, i32 -> vector<16x128xf32>
    %cst_105 = arith.constant 0x7F800000 : f32
    %239 = vector.broadcast %cst_105 : f32 to vector<16x128xf32>
    %240 = arith.select %25, %239, %238 : vector<16x128xi1>, vector<16x128xf32>
    %c1_i32_106 = arith.constant 1 : i32
    %241 = tpu.dynamic_rotate %205 by %c1_i32_106 dim 1 : vector<16x128xf32>, i32 -> vector<16x128xf32>
    %cst_107 = arith.constant 0x7F800000 : f32
    %242 = vector.broadcast %cst_107 : f32 to vector<16x128xf32>
    %243 = arith.select %23, %242, %241 : vector<16x128xi1>, vector<16x128xf32>
    %244 = arith.minimumf %240, %205 : vector<16x128xf32>
    %245 = arith.minimumf %244, %243 : vector<16x128xf32>
    %246 = arith.minimumf %237, %245 : vector<16x128xf32>
    %c15_i32_108 = arith.constant 15 : i32
    %247 = tpu.dynamic_rotate %246 by %c15_i32_108 dim 0 : vector<16x128xf32>, i32 -> vector<16x128xf32>
    %cst_109 = arith.constant 0xFF800000 : f32
    %248 = vector.broadcast %cst_109 : f32 to vector<16x128xf32>
    %249 = arith.select %21, %248, %247 : vector<16x128xi1>, vector<16x128xf32>
    %c1_i32_110 = arith.constant 1 : i32
    %250 = tpu.dynamic_rotate %246 by %c1_i32_110 dim 0 : vector<16x128xf32>, i32 -> vector<16x128xf32>
    %cst_111 = arith.constant 0xFF800000 : f32
    %251 = vector.broadcast %cst_111 : f32 to vector<16x128xf32>
    %252 = arith.select %19, %251, %250 : vector<16x128xi1>, vector<16x128xf32>
    %253 = arith.maximumf %249, %246 : vector<16x128xf32>
    %254 = arith.maximumf %253, %252 : vector<16x128xf32>
    %c127_i32_112 = arith.constant 127 : i32
    %255 = tpu.dynamic_rotate %254 by %c127_i32_112 dim 1 : vector<16x128xf32>, i32 -> vector<16x128xf32>
    %cst_113 = arith.constant 0xFF800000 : f32
    %256 = vector.broadcast %cst_113 : f32 to vector<16x128xf32>
    %257 = arith.select %25, %256, %255 : vector<16x128xi1>, vector<16x128xf32>
    %c1_i32_114 = arith.constant 1 : i32
    %258 = tpu.dynamic_rotate %254 by %c1_i32_114 dim 1 : vector<16x128xf32>, i32 -> vector<16x128xf32>
    %cst_115 = arith.constant 0xFF800000 : f32
    %259 = vector.broadcast %cst_115 : f32 to vector<16x128xf32>
    %260 = arith.select %23, %259, %258 : vector<16x128xi1>, vector<16x128xf32>
    %261 = arith.maximumf %257, %254 : vector<16x128xf32>
    %262 = arith.maximumf %261, %260 : vector<16x128xf32>
    %263 = arith.subf %205, %262 : vector<16x128xf32>
    %cst_116 = arith.constant 0.000000e+00 : f32
    %264 = vector.broadcast %cst_116 : f32 to vector<16x128xf32>
    %265 = arith.maximumf %263, %264 : vector<16x128xf32>
    %266 = arith.mulf %229, %265 : vector<16x128xf32>
    %267 = arith.subf %265, %266 : vector<16x128xf32>
    %cst_117 = arith.constant 0.000000e+00 : f32
    %268 = vector.broadcast %cst_117 : f32 to vector<16x128xf32>
    %269 = arith.maximumf %267, %268 : vector<16x128xf32>
    %270 = arith.addf %229, %269 : vector<16x128xf32>
    %c5_i32 = arith.constant 5 : i32
    %c15_i32_118 = arith.constant 15 : i32
    %271 = tpu.dynamic_rotate %246 by %c15_i32_118 dim 0 : vector<16x128xf32>, i32 -> vector<16x128xf32>
    %cst_119 = arith.constant 0x7F800000 : f32
    %272 = vector.broadcast %cst_119 : f32 to vector<16x128xf32>
    %273 = arith.select %21, %272, %271 : vector<16x128xi1>, vector<16x128xf32>
    %c1_i32_120 = arith.constant 1 : i32
    %274 = tpu.dynamic_rotate %246 by %c1_i32_120 dim 0 : vector<16x128xf32>, i32 -> vector<16x128xf32>
    %cst_121 = arith.constant 0x7F800000 : f32
    %275 = vector.broadcast %cst_121 : f32 to vector<16x128xf32>
    %276 = arith.select %19, %275, %274 : vector<16x128xi1>, vector<16x128xf32>
    %277 = arith.minimumf %273, %246 : vector<16x128xf32>
    %278 = arith.minimumf %277, %276 : vector<16x128xf32>
    %c127_i32_122 = arith.constant 127 : i32
    %279 = tpu.dynamic_rotate %246 by %c127_i32_122 dim 1 : vector<16x128xf32>, i32 -> vector<16x128xf32>
    %cst_123 = arith.constant 0x7F800000 : f32
    %280 = vector.broadcast %cst_123 : f32 to vector<16x128xf32>
    %281 = arith.select %25, %280, %279 : vector<16x128xi1>, vector<16x128xf32>
    %c1_i32_124 = arith.constant 1 : i32
    %282 = tpu.dynamic_rotate %246 by %c1_i32_124 dim 1 : vector<16x128xf32>, i32 -> vector<16x128xf32>
    %cst_125 = arith.constant 0x7F800000 : f32
    %283 = vector.broadcast %cst_125 : f32 to vector<16x128xf32>
    %284 = arith.select %23, %283, %282 : vector<16x128xi1>, vector<16x128xf32>
    %285 = arith.minimumf %281, %246 : vector<16x128xf32>
    %286 = arith.minimumf %285, %284 : vector<16x128xf32>
    %287 = arith.minimumf %278, %286 : vector<16x128xf32>
    %c15_i32_126 = arith.constant 15 : i32
    %288 = tpu.dynamic_rotate %287 by %c15_i32_126 dim 0 : vector<16x128xf32>, i32 -> vector<16x128xf32>
    %cst_127 = arith.constant 0xFF800000 : f32
    %289 = vector.broadcast %cst_127 : f32 to vector<16x128xf32>
    %290 = arith.select %21, %289, %288 : vector<16x128xi1>, vector<16x128xf32>
    %c1_i32_128 = arith.constant 1 : i32
    %291 = tpu.dynamic_rotate %287 by %c1_i32_128 dim 0 : vector<16x128xf32>, i32 -> vector<16x128xf32>
    %cst_129 = arith.constant 0xFF800000 : f32
    %292 = vector.broadcast %cst_129 : f32 to vector<16x128xf32>
    %293 = arith.select %19, %292, %291 : vector<16x128xi1>, vector<16x128xf32>
    %294 = arith.maximumf %290, %287 : vector<16x128xf32>
    %295 = arith.maximumf %294, %293 : vector<16x128xf32>
    %c127_i32_130 = arith.constant 127 : i32
    %296 = tpu.dynamic_rotate %295 by %c127_i32_130 dim 1 : vector<16x128xf32>, i32 -> vector<16x128xf32>
    %cst_131 = arith.constant 0xFF800000 : f32
    %297 = vector.broadcast %cst_131 : f32 to vector<16x128xf32>
    %298 = arith.select %25, %297, %296 : vector<16x128xi1>, vector<16x128xf32>
    %c1_i32_132 = arith.constant 1 : i32
    %299 = tpu.dynamic_rotate %295 by %c1_i32_132 dim 1 : vector<16x128xf32>, i32 -> vector<16x128xf32>
    %cst_133 = arith.constant 0xFF800000 : f32
    %300 = vector.broadcast %cst_133 : f32 to vector<16x128xf32>
    %301 = arith.select %23, %300, %299 : vector<16x128xi1>, vector<16x128xf32>
    %302 = arith.maximumf %298, %295 : vector<16x128xf32>
    %303 = arith.maximumf %302, %301 : vector<16x128xf32>
    %304 = arith.subf %246, %303 : vector<16x128xf32>
    %cst_134 = arith.constant 0.000000e+00 : f32
    %305 = vector.broadcast %cst_134 : f32 to vector<16x128xf32>
    %306 = arith.maximumf %304, %305 : vector<16x128xf32>
    %307 = arith.mulf %270, %306 : vector<16x128xf32>
    %308 = arith.subf %306, %307 : vector<16x128xf32>
    %cst_135 = arith.constant 0.000000e+00 : f32
    %309 = vector.broadcast %cst_135 : f32 to vector<16x128xf32>
    %310 = arith.maximumf %308, %309 : vector<16x128xf32>
    %311 = arith.addf %270, %310 : vector<16x128xf32>
    %c6_i32 = arith.constant 6 : i32
    %c15_i32_136 = arith.constant 15 : i32
    %312 = tpu.dynamic_rotate %287 by %c15_i32_136 dim 0 : vector<16x128xf32>, i32 -> vector<16x128xf32>
    %cst_137 = arith.constant 0x7F800000 : f32
    %313 = vector.broadcast %cst_137 : f32 to vector<16x128xf32>
    %314 = arith.select %21, %313, %312 : vector<16x128xi1>, vector<16x128xf32>
    %c1_i32_138 = arith.constant 1 : i32
    %315 = tpu.dynamic_rotate %287 by %c1_i32_138 dim 0 : vector<16x128xf32>, i32 -> vector<16x128xf32>
    %cst_139 = arith.constant 0x7F800000 : f32
    %316 = vector.broadcast %cst_139 : f32 to vector<16x128xf32>
    %317 = arith.select %19, %316, %315 : vector<16x128xi1>, vector<16x128xf32>
    %318 = arith.minimumf %314, %287 : vector<16x128xf32>
    %319 = arith.minimumf %318, %317 : vector<16x128xf32>
    %c127_i32_140 = arith.constant 127 : i32
    %320 = tpu.dynamic_rotate %287 by %c127_i32_140 dim 1 : vector<16x128xf32>, i32 -> vector<16x128xf32>
    %cst_141 = arith.constant 0x7F800000 : f32
    %321 = vector.broadcast %cst_141 : f32 to vector<16x128xf32>
    %322 = arith.select %25, %321, %320 : vector<16x128xi1>, vector<16x128xf32>
    %c1_i32_142 = arith.constant 1 : i32
    %323 = tpu.dynamic_rotate %287 by %c1_i32_142 dim 1 : vector<16x128xf32>, i32 -> vector<16x128xf32>
    %cst_143 = arith.constant 0x7F800000 : f32
    %324 = vector.broadcast %cst_143 : f32 to vector<16x128xf32>
    %325 = arith.select %23, %324, %323 : vector<16x128xi1>, vector<16x128xf32>
    %326 = arith.minimumf %322, %287 : vector<16x128xf32>
    %327 = arith.minimumf %326, %325 : vector<16x128xf32>
    %328 = arith.minimumf %319, %327 : vector<16x128xf32>
    %c15_i32_144 = arith.constant 15 : i32
    %329 = tpu.dynamic_rotate %328 by %c15_i32_144 dim 0 : vector<16x128xf32>, i32 -> vector<16x128xf32>
    %cst_145 = arith.constant 0xFF800000 : f32
    %330 = vector.broadcast %cst_145 : f32 to vector<16x128xf32>
    %331 = arith.select %21, %330, %329 : vector<16x128xi1>, vector<16x128xf32>
    %c1_i32_146 = arith.constant 1 : i32
    %332 = tpu.dynamic_rotate %328 by %c1_i32_146 dim 0 : vector<16x128xf32>, i32 -> vector<16x128xf32>
    %cst_147 = arith.constant 0xFF800000 : f32
    %333 = vector.broadcast %cst_147 : f32 to vector<16x128xf32>
    %334 = arith.select %19, %333, %332 : vector<16x128xi1>, vector<16x128xf32>
    %335 = arith.maximumf %331, %328 : vector<16x128xf32>
    %336 = arith.maximumf %335, %334 : vector<16x128xf32>
    %c127_i32_148 = arith.constant 127 : i32
    %337 = tpu.dynamic_rotate %336 by %c127_i32_148 dim 1 : vector<16x128xf32>, i32 -> vector<16x128xf32>
    %cst_149 = arith.constant 0xFF800000 : f32
    %338 = vector.broadcast %cst_149 : f32 to vector<16x128xf32>
    %339 = arith.select %25, %338, %337 : vector<16x128xi1>, vector<16x128xf32>
    %c1_i32_150 = arith.constant 1 : i32
    %340 = tpu.dynamic_rotate %336 by %c1_i32_150 dim 1 : vector<16x128xf32>, i32 -> vector<16x128xf32>
    %cst_151 = arith.constant 0xFF800000 : f32
    %341 = vector.broadcast %cst_151 : f32 to vector<16x128xf32>
    %342 = arith.select %23, %341, %340 : vector<16x128xi1>, vector<16x128xf32>
    %343 = arith.maximumf %339, %336 : vector<16x128xf32>
    %344 = arith.maximumf %343, %342 : vector<16x128xf32>
    %345 = arith.subf %287, %344 : vector<16x128xf32>
    %cst_152 = arith.constant 0.000000e+00 : f32
    %346 = vector.broadcast %cst_152 : f32 to vector<16x128xf32>
    %347 = arith.maximumf %345, %346 : vector<16x128xf32>
    %348 = arith.mulf %311, %347 : vector<16x128xf32>
    %349 = arith.subf %347, %348 : vector<16x128xf32>
    %cst_153 = arith.constant 0.000000e+00 : f32
    %350 = vector.broadcast %cst_153 : f32 to vector<16x128xf32>
    %351 = arith.maximumf %349, %350 : vector<16x128xf32>
    %352 = arith.addf %311, %351 : vector<16x128xf32>
    %c7_i32 = arith.constant 7 : i32
    %c15_i32_154 = arith.constant 15 : i32
    %353 = tpu.dynamic_rotate %328 by %c15_i32_154 dim 0 : vector<16x128xf32>, i32 -> vector<16x128xf32>
    %cst_155 = arith.constant 0x7F800000 : f32
    %354 = vector.broadcast %cst_155 : f32 to vector<16x128xf32>
    %355 = arith.select %21, %354, %353 : vector<16x128xi1>, vector<16x128xf32>
    %c1_i32_156 = arith.constant 1 : i32
    %356 = tpu.dynamic_rotate %328 by %c1_i32_156 dim 0 : vector<16x128xf32>, i32 -> vector<16x128xf32>
    %cst_157 = arith.constant 0x7F800000 : f32
    %357 = vector.broadcast %cst_157 : f32 to vector<16x128xf32>
    %358 = arith.select %19, %357, %356 : vector<16x128xi1>, vector<16x128xf32>
    %359 = arith.minimumf %355, %328 : vector<16x128xf32>
    %360 = arith.minimumf %359, %358 : vector<16x128xf32>
    %c127_i32_158 = arith.constant 127 : i32
    %361 = tpu.dynamic_rotate %328 by %c127_i32_158 dim 1 : vector<16x128xf32>, i32 -> vector<16x128xf32>
    %cst_159 = arith.constant 0x7F800000 : f32
    %362 = vector.broadcast %cst_159 : f32 to vector<16x128xf32>
    %363 = arith.select %25, %362, %361 : vector<16x128xi1>, vector<16x128xf32>
    %c1_i32_160 = arith.constant 1 : i32
    %364 = tpu.dynamic_rotate %328 by %c1_i32_160 dim 1 : vector<16x128xf32>, i32 -> vector<16x128xf32>
    %cst_161 = arith.constant 0x7F800000 : f32
    %365 = vector.broadcast %cst_161 : f32 to vector<16x128xf32>
    %366 = arith.select %23, %365, %364 : vector<16x128xi1>, vector<16x128xf32>
    %367 = arith.minimumf %363, %328 : vector<16x128xf32>
    %368 = arith.minimumf %367, %366 : vector<16x128xf32>
    %369 = arith.minimumf %360, %368 : vector<16x128xf32>
    %c15_i32_162 = arith.constant 15 : i32
    %370 = tpu.dynamic_rotate %369 by %c15_i32_162 dim 0 : vector<16x128xf32>, i32 -> vector<16x128xf32>
    %cst_163 = arith.constant 0xFF800000 : f32
    %371 = vector.broadcast %cst_163 : f32 to vector<16x128xf32>
    %372 = arith.select %21, %371, %370 : vector<16x128xi1>, vector<16x128xf32>
    %c1_i32_164 = arith.constant 1 : i32
    %373 = tpu.dynamic_rotate %369 by %c1_i32_164 dim 0 : vector<16x128xf32>, i32 -> vector<16x128xf32>
    %cst_165 = arith.constant 0xFF800000 : f32
    %374 = vector.broadcast %cst_165 : f32 to vector<16x128xf32>
    %375 = arith.select %19, %374, %373 : vector<16x128xi1>, vector<16x128xf32>
    %376 = arith.maximumf %372, %369 : vector<16x128xf32>
    %377 = arith.maximumf %376, %375 : vector<16x128xf32>
    %c127_i32_166 = arith.constant 127 : i32
    %378 = tpu.dynamic_rotate %377 by %c127_i32_166 dim 1 : vector<16x128xf32>, i32 -> vector<16x128xf32>
    %cst_167 = arith.constant 0xFF800000 : f32
    %379 = vector.broadcast %cst_167 : f32 to vector<16x128xf32>
    %380 = arith.select %25, %379, %378 : vector<16x128xi1>, vector<16x128xf32>
    %c1_i32_168 = arith.constant 1 : i32
    %381 = tpu.dynamic_rotate %377 by %c1_i32_168 dim 1 : vector<16x128xf32>, i32 -> vector<16x128xf32>
    %cst_169 = arith.constant 0xFF800000 : f32
    %382 = vector.broadcast %cst_169 : f32 to vector<16x128xf32>
    %383 = arith.select %23, %382, %381 : vector<16x128xi1>, vector<16x128xf32>
    %384 = arith.maximumf %380, %377 : vector<16x128xf32>
    %385 = arith.maximumf %384, %383 : vector<16x128xf32>
    %386 = arith.subf %328, %385 : vector<16x128xf32>
    %cst_170 = arith.constant 0.000000e+00 : f32
    %387 = vector.broadcast %cst_170 : f32 to vector<16x128xf32>
    %388 = arith.maximumf %386, %387 : vector<16x128xf32>
    %389 = arith.mulf %352, %388 : vector<16x128xf32>
    %390 = arith.subf %388, %389 : vector<16x128xf32>
    %cst_171 = arith.constant 0.000000e+00 : f32
    %391 = vector.broadcast %cst_171 : f32 to vector<16x128xf32>
    %392 = arith.maximumf %390, %391 : vector<16x128xf32>
    %393 = arith.addf %352, %392 : vector<16x128xf32>
    %c8_i32 = arith.constant 8 : i32
    %c15_i32_172 = arith.constant 15 : i32
    %394 = tpu.dynamic_rotate %369 by %c15_i32_172 dim 0 : vector<16x128xf32>, i32 -> vector<16x128xf32>
    %cst_173 = arith.constant 0x7F800000 : f32
    %395 = vector.broadcast %cst_173 : f32 to vector<16x128xf32>
    %396 = arith.select %21, %395, %394 : vector<16x128xi1>, vector<16x128xf32>
    %c1_i32_174 = arith.constant 1 : i32
    %397 = tpu.dynamic_rotate %369 by %c1_i32_174 dim 0 : vector<16x128xf32>, i32 -> vector<16x128xf32>
    %cst_175 = arith.constant 0x7F800000 : f32
    %398 = vector.broadcast %cst_175 : f32 to vector<16x128xf32>
    %399 = arith.select %19, %398, %397 : vector<16x128xi1>, vector<16x128xf32>
    %400 = arith.minimumf %396, %369 : vector<16x128xf32>
    %401 = arith.minimumf %400, %399 : vector<16x128xf32>
    %c127_i32_176 = arith.constant 127 : i32
    %402 = tpu.dynamic_rotate %369 by %c127_i32_176 dim 1 : vector<16x128xf32>, i32 -> vector<16x128xf32>
    %cst_177 = arith.constant 0x7F800000 : f32
    %403 = vector.broadcast %cst_177 : f32 to vector<16x128xf32>
    %404 = arith.select %25, %403, %402 : vector<16x128xi1>, vector<16x128xf32>
    %c1_i32_178 = arith.constant 1 : i32
    %405 = tpu.dynamic_rotate %369 by %c1_i32_178 dim 1 : vector<16x128xf32>, i32 -> vector<16x128xf32>
    %cst_179 = arith.constant 0x7F800000 : f32
    %406 = vector.broadcast %cst_179 : f32 to vector<16x128xf32>
    %407 = arith.select %23, %406, %405 : vector<16x128xi1>, vector<16x128xf32>
    %408 = arith.minimumf %404, %369 : vector<16x128xf32>
    %409 = arith.minimumf %408, %407 : vector<16x128xf32>
    %410 = arith.minimumf %401, %409 : vector<16x128xf32>
    %c15_i32_180 = arith.constant 15 : i32
    %411 = tpu.dynamic_rotate %410 by %c15_i32_180 dim 0 : vector<16x128xf32>, i32 -> vector<16x128xf32>
    %cst_181 = arith.constant 0xFF800000 : f32
    %412 = vector.broadcast %cst_181 : f32 to vector<16x128xf32>
    %413 = arith.select %21, %412, %411 : vector<16x128xi1>, vector<16x128xf32>
    %c1_i32_182 = arith.constant 1 : i32
    %414 = tpu.dynamic_rotate %410 by %c1_i32_182 dim 0 : vector<16x128xf32>, i32 -> vector<16x128xf32>
    %cst_183 = arith.constant 0xFF800000 : f32
    %415 = vector.broadcast %cst_183 : f32 to vector<16x128xf32>
    %416 = arith.select %19, %415, %414 : vector<16x128xi1>, vector<16x128xf32>
    %417 = arith.maximumf %413, %410 : vector<16x128xf32>
    %418 = arith.maximumf %417, %416 : vector<16x128xf32>
    %c127_i32_184 = arith.constant 127 : i32
    %419 = tpu.dynamic_rotate %418 by %c127_i32_184 dim 1 : vector<16x128xf32>, i32 -> vector<16x128xf32>
    %cst_185 = arith.constant 0xFF800000 : f32
    %420 = vector.broadcast %cst_185 : f32 to vector<16x128xf32>
    %421 = arith.select %25, %420, %419 : vector<16x128xi1>, vector<16x128xf32>
    %c1_i32_186 = arith.constant 1 : i32
    %422 = tpu.dynamic_rotate %418 by %c1_i32_186 dim 1 : vector<16x128xf32>, i32 -> vector<16x128xf32>
    %cst_187 = arith.constant 0xFF800000 : f32
    %423 = vector.broadcast %cst_187 : f32 to vector<16x128xf32>
    %424 = arith.select %23, %423, %422 : vector<16x128xi1>, vector<16x128xf32>
    %425 = arith.maximumf %421, %418 : vector<16x128xf32>
    %426 = arith.maximumf %425, %424 : vector<16x128xf32>
    %427 = arith.subf %369, %426 : vector<16x128xf32>
    %cst_188 = arith.constant 0.000000e+00 : f32
    %428 = vector.broadcast %cst_188 : f32 to vector<16x128xf32>
    %429 = arith.maximumf %427, %428 : vector<16x128xf32>
    %430 = arith.mulf %393, %429 : vector<16x128xf32>
    %431 = arith.subf %429, %430 : vector<16x128xf32>
    %cst_189 = arith.constant 0.000000e+00 : f32
    %432 = vector.broadcast %cst_189 : f32 to vector<16x128xf32>
    %433 = arith.maximumf %431, %432 : vector<16x128xf32>
    %434 = arith.addf %393, %433 : vector<16x128xf32>
    %c9_i32 = arith.constant 9 : i32
    %c15_i32_190 = arith.constant 15 : i32
    %435 = tpu.dynamic_rotate %410 by %c15_i32_190 dim 0 : vector<16x128xf32>, i32 -> vector<16x128xf32>
    %cst_191 = arith.constant 0x7F800000 : f32
    %436 = vector.broadcast %cst_191 : f32 to vector<16x128xf32>
    %437 = arith.select %21, %436, %435 : vector<16x128xi1>, vector<16x128xf32>
    %c1_i32_192 = arith.constant 1 : i32
    %438 = tpu.dynamic_rotate %410 by %c1_i32_192 dim 0 : vector<16x128xf32>, i32 -> vector<16x128xf32>
    %cst_193 = arith.constant 0x7F800000 : f32
    %439 = vector.broadcast %cst_193 : f32 to vector<16x128xf32>
    %440 = arith.select %19, %439, %438 : vector<16x128xi1>, vector<16x128xf32>
    %441 = arith.minimumf %437, %410 : vector<16x128xf32>
    %442 = arith.minimumf %441, %440 : vector<16x128xf32>
    %c127_i32_194 = arith.constant 127 : i32
    %443 = tpu.dynamic_rotate %410 by %c127_i32_194 dim 1 : vector<16x128xf32>, i32 -> vector<16x128xf32>
    %cst_195 = arith.constant 0x7F800000 : f32
    %444 = vector.broadcast %cst_195 : f32 to vector<16x128xf32>
    %445 = arith.select %25, %444, %443 : vector<16x128xi1>, vector<16x128xf32>
    %c1_i32_196 = arith.constant 1 : i32
    %446 = tpu.dynamic_rotate %410 by %c1_i32_196 dim 1 : vector<16x128xf32>, i32 -> vector<16x128xf32>
    %cst_197 = arith.constant 0x7F800000 : f32
    %447 = vector.broadcast %cst_197 : f32 to vector<16x128xf32>
    %448 = arith.select %23, %447, %446 : vector<16x128xi1>, vector<16x128xf32>
    %449 = arith.minimumf %445, %410 : vector<16x128xf32>
    %450 = arith.minimumf %449, %448 : vector<16x128xf32>
    %451 = arith.minimumf %442, %450 : vector<16x128xf32>
    %c15_i32_198 = arith.constant 15 : i32
    %452 = tpu.dynamic_rotate %451 by %c15_i32_198 dim 0 : vector<16x128xf32>, i32 -> vector<16x128xf32>
    %cst_199 = arith.constant 0xFF800000 : f32
    %453 = vector.broadcast %cst_199 : f32 to vector<16x128xf32>
    %454 = arith.select %21, %453, %452 : vector<16x128xi1>, vector<16x128xf32>
    %c1_i32_200 = arith.constant 1 : i32
    %455 = tpu.dynamic_rotate %451 by %c1_i32_200 dim 0 : vector<16x128xf32>, i32 -> vector<16x128xf32>
    %cst_201 = arith.constant 0xFF800000 : f32
    %456 = vector.broadcast %cst_201 : f32 to vector<16x128xf32>
    %457 = arith.select %19, %456, %455 : vector<16x128xi1>, vector<16x128xf32>
    %458 = arith.maximumf %454, %451 : vector<16x128xf32>
    %459 = arith.maximumf %458, %457 : vector<16x128xf32>
    %c127_i32_202 = arith.constant 127 : i32
    %460 = tpu.dynamic_rotate %459 by %c127_i32_202 dim 1 : vector<16x128xf32>, i32 -> vector<16x128xf32>
    %cst_203 = arith.constant 0xFF800000 : f32
    %461 = vector.broadcast %cst_203 : f32 to vector<16x128xf32>
    %462 = arith.select %25, %461, %460 : vector<16x128xi1>, vector<16x128xf32>
    %c1_i32_204 = arith.constant 1 : i32
    %463 = tpu.dynamic_rotate %459 by %c1_i32_204 dim 1 : vector<16x128xf32>, i32 -> vector<16x128xf32>
    %cst_205 = arith.constant 0xFF800000 : f32
    %464 = vector.broadcast %cst_205 : f32 to vector<16x128xf32>
    %465 = arith.select %23, %464, %463 : vector<16x128xi1>, vector<16x128xf32>
    %466 = arith.maximumf %462, %459 : vector<16x128xf32>
    %467 = arith.maximumf %466, %465 : vector<16x128xf32>
    %468 = arith.subf %410, %467 : vector<16x128xf32>
    %cst_206 = arith.constant 0.000000e+00 : f32
    %469 = vector.broadcast %cst_206 : f32 to vector<16x128xf32>
    %470 = arith.maximumf %468, %469 : vector<16x128xf32>
    %471 = arith.mulf %434, %470 : vector<16x128xf32>
    %472 = arith.subf %470, %471 : vector<16x128xf32>
    %cst_207 = arith.constant 0.000000e+00 : f32
    %473 = vector.broadcast %cst_207 : f32 to vector<16x128xf32>
    %474 = arith.maximumf %472, %473 : vector<16x128xf32>
    %475 = arith.addf %434, %474 : vector<16x128xf32>
    %c15_i32_208 = arith.constant 15 : i32
    %476 = tpu.dynamic_rotate %29 by %c15_i32_208 dim 0 : vector<16x128xf32>, i32 -> vector<16x128xf32>
    %cst_209 = arith.constant 0x7F800000 : f32
    %477 = vector.broadcast %cst_209 : f32 to vector<16x128xf32>
    %478 = arith.select %21, %477, %476 : vector<16x128xi1>, vector<16x128xf32>
    %c1_i32_210 = arith.constant 1 : i32
    %479 = tpu.dynamic_rotate %29 by %c1_i32_210 dim 0 : vector<16x128xf32>, i32 -> vector<16x128xf32>
    %cst_211 = arith.constant 0x7F800000 : f32
    %480 = vector.broadcast %cst_211 : f32 to vector<16x128xf32>
    %481 = arith.select %19, %480, %479 : vector<16x128xi1>, vector<16x128xf32>
    %482 = arith.minimumf %478, %29 : vector<16x128xf32>
    %483 = arith.minimumf %482, %481 : vector<16x128xf32>
    %c127_i32_212 = arith.constant 127 : i32
    %484 = tpu.dynamic_rotate %29 by %c127_i32_212 dim 1 : vector<16x128xf32>, i32 -> vector<16x128xf32>
    %cst_213 = arith.constant 0x7F800000 : f32
    %485 = vector.broadcast %cst_213 : f32 to vector<16x128xf32>
    %486 = arith.select %25, %485, %484 : vector<16x128xi1>, vector<16x128xf32>
    %c1_i32_214 = arith.constant 1 : i32
    %487 = tpu.dynamic_rotate %29 by %c1_i32_214 dim 1 : vector<16x128xf32>, i32 -> vector<16x128xf32>
    %cst_215 = arith.constant 0x7F800000 : f32
    %488 = vector.broadcast %cst_215 : f32 to vector<16x128xf32>
    %489 = arith.select %23, %488, %487 : vector<16x128xi1>, vector<16x128xf32>
    %490 = arith.minimumf %486, %29 : vector<16x128xf32>
    %491 = arith.minimumf %490, %489 : vector<16x128xf32>
    %492 = arith.minimumf %483, %491 : vector<16x128xf32>
    %c15_i32_216 = arith.constant 15 : i32
    %493 = tpu.dynamic_rotate %492 by %c15_i32_216 dim 0 : vector<16x128xf32>, i32 -> vector<16x128xf32>
    %cst_217 = arith.constant 0xFF800000 : f32
    %494 = vector.broadcast %cst_217 : f32 to vector<16x128xf32>
    %495 = arith.select %21, %494, %493 : vector<16x128xi1>, vector<16x128xf32>
    %c1_i32_218 = arith.constant 1 : i32
    %496 = tpu.dynamic_rotate %492 by %c1_i32_218 dim 0 : vector<16x128xf32>, i32 -> vector<16x128xf32>
    %cst_219 = arith.constant 0xFF800000 : f32
    %497 = vector.broadcast %cst_219 : f32 to vector<16x128xf32>
    %498 = arith.select %19, %497, %496 : vector<16x128xi1>, vector<16x128xf32>
    %499 = arith.maximumf %495, %492 : vector<16x128xf32>
    %500 = arith.maximumf %499, %498 : vector<16x128xf32>
    %c127_i32_220 = arith.constant 127 : i32
    %501 = tpu.dynamic_rotate %500 by %c127_i32_220 dim 1 : vector<16x128xf32>, i32 -> vector<16x128xf32>
    %cst_221 = arith.constant 0xFF800000 : f32
    %502 = vector.broadcast %cst_221 : f32 to vector<16x128xf32>
    %503 = arith.select %25, %502, %501 : vector<16x128xi1>, vector<16x128xf32>
    %c1_i32_222 = arith.constant 1 : i32
    %504 = tpu.dynamic_rotate %500 by %c1_i32_222 dim 1 : vector<16x128xf32>, i32 -> vector<16x128xf32>
    %cst_223 = arith.constant 0xFF800000 : f32
    %505 = vector.broadcast %cst_223 : f32 to vector<16x128xf32>
    %506 = arith.select %23, %505, %504 : vector<16x128xi1>, vector<16x128xf32>
    %507 = arith.maximumf %503, %500 : vector<16x128xf32>
    %508 = arith.maximumf %507, %506 : vector<16x128xf32>
    %509 = arith.subf %29, %508 : vector<16x128xf32>
    %cst_224 = arith.constant 0.000000e+00 : f32
    %510 = vector.broadcast %cst_224 : f32 to vector<16x128xf32>
    %511 = arith.maximumf %509, %510 : vector<16x128xf32>
    %c0_i32_225 = arith.constant 0 : i32
    %c15_i32_226 = arith.constant 15 : i32
    %512 = tpu.dynamic_rotate %492 by %c15_i32_226 dim 0 : vector<16x128xf32>, i32 -> vector<16x128xf32>
    %cst_227 = arith.constant 0x7F800000 : f32
    %513 = vector.broadcast %cst_227 : f32 to vector<16x128xf32>
    %514 = arith.select %21, %513, %512 : vector<16x128xi1>, vector<16x128xf32>
    %c1_i32_228 = arith.constant 1 : i32
    %515 = tpu.dynamic_rotate %492 by %c1_i32_228 dim 0 : vector<16x128xf32>, i32 -> vector<16x128xf32>
    %cst_229 = arith.constant 0x7F800000 : f32
    %516 = vector.broadcast %cst_229 : f32 to vector<16x128xf32>
    %517 = arith.select %19, %516, %515 : vector<16x128xi1>, vector<16x128xf32>
    %518 = arith.minimumf %514, %492 : vector<16x128xf32>
    %519 = arith.minimumf %518, %517 : vector<16x128xf32>
    %c127_i32_230 = arith.constant 127 : i32
    %520 = tpu.dynamic_rotate %492 by %c127_i32_230 dim 1 : vector<16x128xf32>, i32 -> vector<16x128xf32>
    %cst_231 = arith.constant 0x7F800000 : f32
    %521 = vector.broadcast %cst_231 : f32 to vector<16x128xf32>
    %522 = arith.select %25, %521, %520 : vector<16x128xi1>, vector<16x128xf32>
    %c1_i32_232 = arith.constant 1 : i32
    %523 = tpu.dynamic_rotate %492 by %c1_i32_232 dim 1 : vector<16x128xf32>, i32 -> vector<16x128xf32>
    %cst_233 = arith.constant 0x7F800000 : f32
    %524 = vector.broadcast %cst_233 : f32 to vector<16x128xf32>
    %525 = arith.select %23, %524, %523 : vector<16x128xi1>, vector<16x128xf32>
    %526 = arith.minimumf %522, %492 : vector<16x128xf32>
    %527 = arith.minimumf %526, %525 : vector<16x128xf32>
    %528 = arith.minimumf %519, %527 : vector<16x128xf32>
    %c15_i32_234 = arith.constant 15 : i32
    %529 = tpu.dynamic_rotate %528 by %c15_i32_234 dim 0 : vector<16x128xf32>, i32 -> vector<16x128xf32>
    %cst_235 = arith.constant 0xFF800000 : f32
    %530 = vector.broadcast %cst_235 : f32 to vector<16x128xf32>
    %531 = arith.select %21, %530, %529 : vector<16x128xi1>, vector<16x128xf32>
    %c1_i32_236 = arith.constant 1 : i32
    %532 = tpu.dynamic_rotate %528 by %c1_i32_236 dim 0 : vector<16x128xf32>, i32 -> vector<16x128xf32>
    %cst_237 = arith.constant 0xFF800000 : f32
    %533 = vector.broadcast %cst_237 : f32 to vector<16x128xf32>
    %534 = arith.select %19, %533, %532 : vector<16x128xi1>, vector<16x128xf32>
    %535 = arith.maximumf %531, %528 : vector<16x128xf32>
    %536 = arith.maximumf %535, %534 : vector<16x128xf32>
    %c127_i32_238 = arith.constant 127 : i32
    %537 = tpu.dynamic_rotate %536 by %c127_i32_238 dim 1 : vector<16x128xf32>, i32 -> vector<16x128xf32>
    %cst_239 = arith.constant 0xFF800000 : f32
    %538 = vector.broadcast %cst_239 : f32 to vector<16x128xf32>
    %539 = arith.select %25, %538, %537 : vector<16x128xi1>, vector<16x128xf32>
    %c1_i32_240 = arith.constant 1 : i32
    %540 = tpu.dynamic_rotate %536 by %c1_i32_240 dim 1 : vector<16x128xf32>, i32 -> vector<16x128xf32>
    %cst_241 = arith.constant 0xFF800000 : f32
    %541 = vector.broadcast %cst_241 : f32 to vector<16x128xf32>
    %542 = arith.select %23, %541, %540 : vector<16x128xi1>, vector<16x128xf32>
    %543 = arith.maximumf %539, %536 : vector<16x128xf32>
    %544 = arith.maximumf %543, %542 : vector<16x128xf32>
    %545 = arith.subf %492, %544 : vector<16x128xf32>
    %cst_242 = arith.constant 0.000000e+00 : f32
    %546 = vector.broadcast %cst_242 : f32 to vector<16x128xf32>
    %547 = arith.maximumf %545, %546 : vector<16x128xf32>
    %548 = arith.mulf %511, %547 : vector<16x128xf32>
    %549 = arith.subf %547, %548 : vector<16x128xf32>
    %cst_243 = arith.constant 0.000000e+00 : f32
    %550 = vector.broadcast %cst_243 : f32 to vector<16x128xf32>
    %551 = arith.maximumf %549, %550 : vector<16x128xf32>
    %552 = arith.addf %511, %551 : vector<16x128xf32>
    %c1_i32_244 = arith.constant 1 : i32
    %c15_i32_245 = arith.constant 15 : i32
    %553 = tpu.dynamic_rotate %528 by %c15_i32_245 dim 0 : vector<16x128xf32>, i32 -> vector<16x128xf32>
    %cst_246 = arith.constant 0x7F800000 : f32
    %554 = vector.broadcast %cst_246 : f32 to vector<16x128xf32>
    %555 = arith.select %21, %554, %553 : vector<16x128xi1>, vector<16x128xf32>
    %c1_i32_247 = arith.constant 1 : i32
    %556 = tpu.dynamic_rotate %528 by %c1_i32_247 dim 0 : vector<16x128xf32>, i32 -> vector<16x128xf32>
    %cst_248 = arith.constant 0x7F800000 : f32
    %557 = vector.broadcast %cst_248 : f32 to vector<16x128xf32>
    %558 = arith.select %19, %557, %556 : vector<16x128xi1>, vector<16x128xf32>
    %559 = arith.minimumf %555, %528 : vector<16x128xf32>
    %560 = arith.minimumf %559, %558 : vector<16x128xf32>
    %c127_i32_249 = arith.constant 127 : i32
    %561 = tpu.dynamic_rotate %528 by %c127_i32_249 dim 1 : vector<16x128xf32>, i32 -> vector<16x128xf32>
    %cst_250 = arith.constant 0x7F800000 : f32
    %562 = vector.broadcast %cst_250 : f32 to vector<16x128xf32>
    %563 = arith.select %25, %562, %561 : vector<16x128xi1>, vector<16x128xf32>
    %c1_i32_251 = arith.constant 1 : i32
    %564 = tpu.dynamic_rotate %528 by %c1_i32_251 dim 1 : vector<16x128xf32>, i32 -> vector<16x128xf32>
    %cst_252 = arith.constant 0x7F800000 : f32
    %565 = vector.broadcast %cst_252 : f32 to vector<16x128xf32>
    %566 = arith.select %23, %565, %564 : vector<16x128xi1>, vector<16x128xf32>
    %567 = arith.minimumf %563, %528 : vector<16x128xf32>
    %568 = arith.minimumf %567, %566 : vector<16x128xf32>
    %569 = arith.minimumf %560, %568 : vector<16x128xf32>
    %c15_i32_253 = arith.constant 15 : i32
    %570 = tpu.dynamic_rotate %569 by %c15_i32_253 dim 0 : vector<16x128xf32>, i32 -> vector<16x128xf32>
    %cst_254 = arith.constant 0xFF800000 : f32
    %571 = vector.broadcast %cst_254 : f32 to vector<16x128xf32>
    %572 = arith.select %21, %571, %570 : vector<16x128xi1>, vector<16x128xf32>
    %c1_i32_255 = arith.constant 1 : i32
    %573 = tpu.dynamic_rotate %569 by %c1_i32_255 dim 0 : vector<16x128xf32>, i32 -> vector<16x128xf32>
    %cst_256 = arith.constant 0xFF800000 : f32
    %574 = vector.broadcast %cst_256 : f32 to vector<16x128xf32>
    %575 = arith.select %19, %574, %573 : vector<16x128xi1>, vector<16x128xf32>
    %576 = arith.maximumf %572, %569 : vector<16x128xf32>
    %577 = arith.maximumf %576, %575 : vector<16x128xf32>
    %c127_i32_257 = arith.constant 127 : i32
    %578 = tpu.dynamic_rotate %577 by %c127_i32_257 dim 1 : vector<16x128xf32>, i32 -> vector<16x128xf32>
    %cst_258 = arith.constant 0xFF800000 : f32
    %579 = vector.broadcast %cst_258 : f32 to vector<16x128xf32>
    %580 = arith.select %25, %579, %578 : vector<16x128xi1>, vector<16x128xf32>
    %c1_i32_259 = arith.constant 1 : i32
    %581 = tpu.dynamic_rotate %577 by %c1_i32_259 dim 1 : vector<16x128xf32>, i32 -> vector<16x128xf32>
    %cst_260 = arith.constant 0xFF800000 : f32
    %582 = vector.broadcast %cst_260 : f32 to vector<16x128xf32>
    %583 = arith.select %23, %582, %581 : vector<16x128xi1>, vector<16x128xf32>
    %584 = arith.maximumf %580, %577 : vector<16x128xf32>
    %585 = arith.maximumf %584, %583 : vector<16x128xf32>
    %586 = arith.subf %528, %585 : vector<16x128xf32>
    %cst_261 = arith.constant 0.000000e+00 : f32
    %587 = vector.broadcast %cst_261 : f32 to vector<16x128xf32>
    %588 = arith.maximumf %586, %587 : vector<16x128xf32>
    %589 = arith.mulf %552, %588 : vector<16x128xf32>
    %590 = arith.subf %588, %589 : vector<16x128xf32>
    %cst_262 = arith.constant 0.000000e+00 : f32
    %591 = vector.broadcast %cst_262 : f32 to vector<16x128xf32>
    %592 = arith.maximumf %590, %591 : vector<16x128xf32>
    %593 = arith.addf %552, %592 : vector<16x128xf32>
    %c2_i32_263 = arith.constant 2 : i32
    %c15_i32_264 = arith.constant 15 : i32
    %594 = tpu.dynamic_rotate %569 by %c15_i32_264 dim 0 : vector<16x128xf32>, i32 -> vector<16x128xf32>
    %cst_265 = arith.constant 0x7F800000 : f32
    %595 = vector.broadcast %cst_265 : f32 to vector<16x128xf32>
    %596 = arith.select %21, %595, %594 : vector<16x128xi1>, vector<16x128xf32>
    %c1_i32_266 = arith.constant 1 : i32
    %597 = tpu.dynamic_rotate %569 by %c1_i32_266 dim 0 : vector<16x128xf32>, i32 -> vector<16x128xf32>
    %cst_267 = arith.constant 0x7F800000 : f32
    %598 = vector.broadcast %cst_267 : f32 to vector<16x128xf32>
    %599 = arith.select %19, %598, %597 : vector<16x128xi1>, vector<16x128xf32>
    %600 = arith.minimumf %596, %569 : vector<16x128xf32>
    %601 = arith.minimumf %600, %599 : vector<16x128xf32>
    %c127_i32_268 = arith.constant 127 : i32
    %602 = tpu.dynamic_rotate %569 by %c127_i32_268 dim 1 : vector<16x128xf32>, i32 -> vector<16x128xf32>
    %cst_269 = arith.constant 0x7F800000 : f32
    %603 = vector.broadcast %cst_269 : f32 to vector<16x128xf32>
    %604 = arith.select %25, %603, %602 : vector<16x128xi1>, vector<16x128xf32>
    %c1_i32_270 = arith.constant 1 : i32
    %605 = tpu.dynamic_rotate %569 by %c1_i32_270 dim 1 : vector<16x128xf32>, i32 -> vector<16x128xf32>
    %cst_271 = arith.constant 0x7F800000 : f32
    %606 = vector.broadcast %cst_271 : f32 to vector<16x128xf32>
    %607 = arith.select %23, %606, %605 : vector<16x128xi1>, vector<16x128xf32>
    %608 = arith.minimumf %604, %569 : vector<16x128xf32>
    %609 = arith.minimumf %608, %607 : vector<16x128xf32>
    %610 = arith.minimumf %601, %609 : vector<16x128xf32>
    %c15_i32_272 = arith.constant 15 : i32
    %611 = tpu.dynamic_rotate %610 by %c15_i32_272 dim 0 : vector<16x128xf32>, i32 -> vector<16x128xf32>
    %cst_273 = arith.constant 0xFF800000 : f32
    %612 = vector.broadcast %cst_273 : f32 to vector<16x128xf32>
    %613 = arith.select %21, %612, %611 : vector<16x128xi1>, vector<16x128xf32>
    %c1_i32_274 = arith.constant 1 : i32
    %614 = tpu.dynamic_rotate %610 by %c1_i32_274 dim 0 : vector<16x128xf32>, i32 -> vector<16x128xf32>
    %cst_275 = arith.constant 0xFF800000 : f32
    %615 = vector.broadcast %cst_275 : f32 to vector<16x128xf32>
    %616 = arith.select %19, %615, %614 : vector<16x128xi1>, vector<16x128xf32>
    %617 = arith.maximumf %613, %610 : vector<16x128xf32>
    %618 = arith.maximumf %617, %616 : vector<16x128xf32>
    %c127_i32_276 = arith.constant 127 : i32
    %619 = tpu.dynamic_rotate %618 by %c127_i32_276 dim 1 : vector<16x128xf32>, i32 -> vector<16x128xf32>
    %cst_277 = arith.constant 0xFF800000 : f32
    %620 = vector.broadcast %cst_277 : f32 to vector<16x128xf32>
    %621 = arith.select %25, %620, %619 : vector<16x128xi1>, vector<16x128xf32>
    %c1_i32_278 = arith.constant 1 : i32
    %622 = tpu.dynamic_rotate %618 by %c1_i32_278 dim 1 : vector<16x128xf32>, i32 -> vector<16x128xf32>
    %cst_279 = arith.constant 0xFF800000 : f32
    %623 = vector.broadcast %cst_279 : f32 to vector<16x128xf32>
    %624 = arith.select %23, %623, %622 : vector<16x128xi1>, vector<16x128xf32>
    %625 = arith.maximumf %621, %618 : vector<16x128xf32>
    %626 = arith.maximumf %625, %624 : vector<16x128xf32>
    %627 = arith.subf %569, %626 : vector<16x128xf32>
    %cst_280 = arith.constant 0.000000e+00 : f32
    %628 = vector.broadcast %cst_280 : f32 to vector<16x128xf32>
    %629 = arith.maximumf %627, %628 : vector<16x128xf32>
    %630 = arith.mulf %593, %629 : vector<16x128xf32>
    %631 = arith.subf %629, %630 : vector<16x128xf32>
    %cst_281 = arith.constant 0.000000e+00 : f32
    %632 = vector.broadcast %cst_281 : f32 to vector<16x128xf32>
    %633 = arith.maximumf %631, %632 : vector<16x128xf32>
    %634 = arith.addf %593, %633 : vector<16x128xf32>
    %c3_i32_282 = arith.constant 3 : i32
    %c15_i32_283 = arith.constant 15 : i32
    %635 = tpu.dynamic_rotate %610 by %c15_i32_283 dim 0 : vector<16x128xf32>, i32 -> vector<16x128xf32>
    %cst_284 = arith.constant 0x7F800000 : f32
    %636 = vector.broadcast %cst_284 : f32 to vector<16x128xf32>
    %637 = arith.select %21, %636, %635 : vector<16x128xi1>, vector<16x128xf32>
    %c1_i32_285 = arith.constant 1 : i32
    %638 = tpu.dynamic_rotate %610 by %c1_i32_285 dim 0 : vector<16x128xf32>, i32 -> vector<16x128xf32>
    %cst_286 = arith.constant 0x7F800000 : f32
    %639 = vector.broadcast %cst_286 : f32 to vector<16x128xf32>
    %640 = arith.select %19, %639, %638 : vector<16x128xi1>, vector<16x128xf32>
    %641 = arith.minimumf %637, %610 : vector<16x128xf32>
    %642 = arith.minimumf %641, %640 : vector<16x128xf32>
    %c127_i32_287 = arith.constant 127 : i32
    %643 = tpu.dynamic_rotate %610 by %c127_i32_287 dim 1 : vector<16x128xf32>, i32 -> vector<16x128xf32>
    %cst_288 = arith.constant 0x7F800000 : f32
    %644 = vector.broadcast %cst_288 : f32 to vector<16x128xf32>
    %645 = arith.select %25, %644, %643 : vector<16x128xi1>, vector<16x128xf32>
    %c1_i32_289 = arith.constant 1 : i32
    %646 = tpu.dynamic_rotate %610 by %c1_i32_289 dim 1 : vector<16x128xf32>, i32 -> vector<16x128xf32>
    %cst_290 = arith.constant 0x7F800000 : f32
    %647 = vector.broadcast %cst_290 : f32 to vector<16x128xf32>
    %648 = arith.select %23, %647, %646 : vector<16x128xi1>, vector<16x128xf32>
    %649 = arith.minimumf %645, %610 : vector<16x128xf32>
    %650 = arith.minimumf %649, %648 : vector<16x128xf32>
    %651 = arith.minimumf %642, %650 : vector<16x128xf32>
    %c15_i32_291 = arith.constant 15 : i32
    %652 = tpu.dynamic_rotate %651 by %c15_i32_291 dim 0 : vector<16x128xf32>, i32 -> vector<16x128xf32>
    %cst_292 = arith.constant 0xFF800000 : f32
    %653 = vector.broadcast %cst_292 : f32 to vector<16x128xf32>
    %654 = arith.select %21, %653, %652 : vector<16x128xi1>, vector<16x128xf32>
    %c1_i32_293 = arith.constant 1 : i32
    %655 = tpu.dynamic_rotate %651 by %c1_i32_293 dim 0 : vector<16x128xf32>, i32 -> vector<16x128xf32>
    %cst_294 = arith.constant 0xFF800000 : f32
    %656 = vector.broadcast %cst_294 : f32 to vector<16x128xf32>
    %657 = arith.select %19, %656, %655 : vector<16x128xi1>, vector<16x128xf32>
    %658 = arith.maximumf %654, %651 : vector<16x128xf32>
    %659 = arith.maximumf %658, %657 : vector<16x128xf32>
    %c127_i32_295 = arith.constant 127 : i32
    %660 = tpu.dynamic_rotate %659 by %c127_i32_295 dim 1 : vector<16x128xf32>, i32 -> vector<16x128xf32>
    %cst_296 = arith.constant 0xFF800000 : f32
    %661 = vector.broadcast %cst_296 : f32 to vector<16x128xf32>
    %662 = arith.select %25, %661, %660 : vector<16x128xi1>, vector<16x128xf32>
    %c1_i32_297 = arith.constant 1 : i32
    %663 = tpu.dynamic_rotate %659 by %c1_i32_297 dim 1 : vector<16x128xf32>, i32 -> vector<16x128xf32>
    %cst_298 = arith.constant 0xFF800000 : f32
    %664 = vector.broadcast %cst_298 : f32 to vector<16x128xf32>
    %665 = arith.select %23, %664, %663 : vector<16x128xi1>, vector<16x128xf32>
    %666 = arith.maximumf %662, %659 : vector<16x128xf32>
    %667 = arith.maximumf %666, %665 : vector<16x128xf32>
    %668 = arith.subf %610, %667 : vector<16x128xf32>
    %cst_299 = arith.constant 0.000000e+00 : f32
    %669 = vector.broadcast %cst_299 : f32 to vector<16x128xf32>
    %670 = arith.maximumf %668, %669 : vector<16x128xf32>
    %671 = arith.mulf %634, %670 : vector<16x128xf32>
    %672 = arith.subf %670, %671 : vector<16x128xf32>
    %cst_300 = arith.constant 0.000000e+00 : f32
    %673 = vector.broadcast %cst_300 : f32 to vector<16x128xf32>
    %674 = arith.maximumf %672, %673 : vector<16x128xf32>
    %675 = arith.addf %634, %674 : vector<16x128xf32>
    %c4_i32_301 = arith.constant 4 : i32
    %c15_i32_302 = arith.constant 15 : i32
    %676 = tpu.dynamic_rotate %651 by %c15_i32_302 dim 0 : vector<16x128xf32>, i32 -> vector<16x128xf32>
    %cst_303 = arith.constant 0x7F800000 : f32
    %677 = vector.broadcast %cst_303 : f32 to vector<16x128xf32>
    %678 = arith.select %21, %677, %676 : vector<16x128xi1>, vector<16x128xf32>
    %c1_i32_304 = arith.constant 1 : i32
    %679 = tpu.dynamic_rotate %651 by %c1_i32_304 dim 0 : vector<16x128xf32>, i32 -> vector<16x128xf32>
    %cst_305 = arith.constant 0x7F800000 : f32
    %680 = vector.broadcast %cst_305 : f32 to vector<16x128xf32>
    %681 = arith.select %19, %680, %679 : vector<16x128xi1>, vector<16x128xf32>
    %682 = arith.minimumf %678, %651 : vector<16x128xf32>
    %683 = arith.minimumf %682, %681 : vector<16x128xf32>
    %c127_i32_306 = arith.constant 127 : i32
    %684 = tpu.dynamic_rotate %651 by %c127_i32_306 dim 1 : vector<16x128xf32>, i32 -> vector<16x128xf32>
    %cst_307 = arith.constant 0x7F800000 : f32
    %685 = vector.broadcast %cst_307 : f32 to vector<16x128xf32>
    %686 = arith.select %25, %685, %684 : vector<16x128xi1>, vector<16x128xf32>
    %c1_i32_308 = arith.constant 1 : i32
    %687 = tpu.dynamic_rotate %651 by %c1_i32_308 dim 1 : vector<16x128xf32>, i32 -> vector<16x128xf32>
    %cst_309 = arith.constant 0x7F800000 : f32
    %688 = vector.broadcast %cst_309 : f32 to vector<16x128xf32>
    %689 = arith.select %23, %688, %687 : vector<16x128xi1>, vector<16x128xf32>
    %690 = arith.minimumf %686, %651 : vector<16x128xf32>
    %691 = arith.minimumf %690, %689 : vector<16x128xf32>
    %692 = arith.minimumf %683, %691 : vector<16x128xf32>
    %c15_i32_310 = arith.constant 15 : i32
    %693 = tpu.dynamic_rotate %692 by %c15_i32_310 dim 0 : vector<16x128xf32>, i32 -> vector<16x128xf32>
    %cst_311 = arith.constant 0xFF800000 : f32
    %694 = vector.broadcast %cst_311 : f32 to vector<16x128xf32>
    %695 = arith.select %21, %694, %693 : vector<16x128xi1>, vector<16x128xf32>
    %c1_i32_312 = arith.constant 1 : i32
    %696 = tpu.dynamic_rotate %692 by %c1_i32_312 dim 0 : vector<16x128xf32>, i32 -> vector<16x128xf32>
    %cst_313 = arith.constant 0xFF800000 : f32
    %697 = vector.broadcast %cst_313 : f32 to vector<16x128xf32>
    %698 = arith.select %19, %697, %696 : vector<16x128xi1>, vector<16x128xf32>
    %699 = arith.maximumf %695, %692 : vector<16x128xf32>
    %700 = arith.maximumf %699, %698 : vector<16x128xf32>
    %c127_i32_314 = arith.constant 127 : i32
    %701 = tpu.dynamic_rotate %700 by %c127_i32_314 dim 1 : vector<16x128xf32>, i32 -> vector<16x128xf32>
    %cst_315 = arith.constant 0xFF800000 : f32
    %702 = vector.broadcast %cst_315 : f32 to vector<16x128xf32>
    %703 = arith.select %25, %702, %701 : vector<16x128xi1>, vector<16x128xf32>
    %c1_i32_316 = arith.constant 1 : i32
    %704 = tpu.dynamic_rotate %700 by %c1_i32_316 dim 1 : vector<16x128xf32>, i32 -> vector<16x128xf32>
    %cst_317 = arith.constant 0xFF800000 : f32
    %705 = vector.broadcast %cst_317 : f32 to vector<16x128xf32>
    %706 = arith.select %23, %705, %704 : vector<16x128xi1>, vector<16x128xf32>
    %707 = arith.maximumf %703, %700 : vector<16x128xf32>
    %708 = arith.maximumf %707, %706 : vector<16x128xf32>
    %709 = arith.subf %651, %708 : vector<16x128xf32>
    %cst_318 = arith.constant 0.000000e+00 : f32
    %710 = vector.broadcast %cst_318 : f32 to vector<16x128xf32>
    %711 = arith.maximumf %709, %710 : vector<16x128xf32>
    %712 = arith.mulf %675, %711 : vector<16x128xf32>
    %713 = arith.subf %711, %712 : vector<16x128xf32>
    %cst_319 = arith.constant 0.000000e+00 : f32
    %714 = vector.broadcast %cst_319 : f32 to vector<16x128xf32>
    %715 = arith.maximumf %713, %714 : vector<16x128xf32>
    %716 = arith.addf %675, %715 : vector<16x128xf32>
    %c5_i32_320 = arith.constant 5 : i32
    %c15_i32_321 = arith.constant 15 : i32
    %717 = tpu.dynamic_rotate %692 by %c15_i32_321 dim 0 : vector<16x128xf32>, i32 -> vector<16x128xf32>
    %cst_322 = arith.constant 0x7F800000 : f32
    %718 = vector.broadcast %cst_322 : f32 to vector<16x128xf32>
    %719 = arith.select %21, %718, %717 : vector<16x128xi1>, vector<16x128xf32>
    %c1_i32_323 = arith.constant 1 : i32
    %720 = tpu.dynamic_rotate %692 by %c1_i32_323 dim 0 : vector<16x128xf32>, i32 -> vector<16x128xf32>
    %cst_324 = arith.constant 0x7F800000 : f32
    %721 = vector.broadcast %cst_324 : f32 to vector<16x128xf32>
    %722 = arith.select %19, %721, %720 : vector<16x128xi1>, vector<16x128xf32>
    %723 = arith.minimumf %719, %692 : vector<16x128xf32>
    %724 = arith.minimumf %723, %722 : vector<16x128xf32>
    %c127_i32_325 = arith.constant 127 : i32
    %725 = tpu.dynamic_rotate %692 by %c127_i32_325 dim 1 : vector<16x128xf32>, i32 -> vector<16x128xf32>
    %cst_326 = arith.constant 0x7F800000 : f32
    %726 = vector.broadcast %cst_326 : f32 to vector<16x128xf32>
    %727 = arith.select %25, %726, %725 : vector<16x128xi1>, vector<16x128xf32>
    %c1_i32_327 = arith.constant 1 : i32
    %728 = tpu.dynamic_rotate %692 by %c1_i32_327 dim 1 : vector<16x128xf32>, i32 -> vector<16x128xf32>
    %cst_328 = arith.constant 0x7F800000 : f32
    %729 = vector.broadcast %cst_328 : f32 to vector<16x128xf32>
    %730 = arith.select %23, %729, %728 : vector<16x128xi1>, vector<16x128xf32>
    %731 = arith.minimumf %727, %692 : vector<16x128xf32>
    %732 = arith.minimumf %731, %730 : vector<16x128xf32>
    %733 = arith.minimumf %724, %732 : vector<16x128xf32>
    %c15_i32_329 = arith.constant 15 : i32
    %734 = tpu.dynamic_rotate %733 by %c15_i32_329 dim 0 : vector<16x128xf32>, i32 -> vector<16x128xf32>
    %cst_330 = arith.constant 0xFF800000 : f32
    %735 = vector.broadcast %cst_330 : f32 to vector<16x128xf32>
    %736 = arith.select %21, %735, %734 : vector<16x128xi1>, vector<16x128xf32>
    %c1_i32_331 = arith.constant 1 : i32
    %737 = tpu.dynamic_rotate %733 by %c1_i32_331 dim 0 : vector<16x128xf32>, i32 -> vector<16x128xf32>
    %cst_332 = arith.constant 0xFF800000 : f32
    %738 = vector.broadcast %cst_332 : f32 to vector<16x128xf32>
    %739 = arith.select %19, %738, %737 : vector<16x128xi1>, vector<16x128xf32>
    %740 = arith.maximumf %736, %733 : vector<16x128xf32>
    %741 = arith.maximumf %740, %739 : vector<16x128xf32>
    %c127_i32_333 = arith.constant 127 : i32
    %742 = tpu.dynamic_rotate %741 by %c127_i32_333 dim 1 : vector<16x128xf32>, i32 -> vector<16x128xf32>
    %cst_334 = arith.constant 0xFF800000 : f32
    %743 = vector.broadcast %cst_334 : f32 to vector<16x128xf32>
    %744 = arith.select %25, %743, %742 : vector<16x128xi1>, vector<16x128xf32>
    %c1_i32_335 = arith.constant 1 : i32
    %745 = tpu.dynamic_rotate %741 by %c1_i32_335 dim 1 : vector<16x128xf32>, i32 -> vector<16x128xf32>
    %cst_336 = arith.constant 0xFF800000 : f32
    %746 = vector.broadcast %cst_336 : f32 to vector<16x128xf32>
    %747 = arith.select %23, %746, %745 : vector<16x128xi1>, vector<16x128xf32>
    %748 = arith.maximumf %744, %741 : vector<16x128xf32>
    %749 = arith.maximumf %748, %747 : vector<16x128xf32>
    %750 = arith.subf %692, %749 : vector<16x128xf32>
    %cst_337 = arith.constant 0.000000e+00 : f32
    %751 = vector.broadcast %cst_337 : f32 to vector<16x128xf32>
    %752 = arith.maximumf %750, %751 : vector<16x128xf32>
    %753 = arith.mulf %716, %752 : vector<16x128xf32>
    %754 = arith.subf %752, %753 : vector<16x128xf32>
    %cst_338 = arith.constant 0.000000e+00 : f32
    %755 = vector.broadcast %cst_338 : f32 to vector<16x128xf32>
    %756 = arith.maximumf %754, %755 : vector<16x128xf32>
    %757 = arith.addf %716, %756 : vector<16x128xf32>
    %c6_i32_339 = arith.constant 6 : i32
    %c15_i32_340 = arith.constant 15 : i32
    %758 = tpu.dynamic_rotate %733 by %c15_i32_340 dim 0 : vector<16x128xf32>, i32 -> vector<16x128xf32>
    %cst_341 = arith.constant 0x7F800000 : f32
    %759 = vector.broadcast %cst_341 : f32 to vector<16x128xf32>
    %760 = arith.select %21, %759, %758 : vector<16x128xi1>, vector<16x128xf32>
    %c1_i32_342 = arith.constant 1 : i32
    %761 = tpu.dynamic_rotate %733 by %c1_i32_342 dim 0 : vector<16x128xf32>, i32 -> vector<16x128xf32>
    %cst_343 = arith.constant 0x7F800000 : f32
    %762 = vector.broadcast %cst_343 : f32 to vector<16x128xf32>
    %763 = arith.select %19, %762, %761 : vector<16x128xi1>, vector<16x128xf32>
    %764 = arith.minimumf %760, %733 : vector<16x128xf32>
    %765 = arith.minimumf %764, %763 : vector<16x128xf32>
    %c127_i32_344 = arith.constant 127 : i32
    %766 = tpu.dynamic_rotate %733 by %c127_i32_344 dim 1 : vector<16x128xf32>, i32 -> vector<16x128xf32>
    %cst_345 = arith.constant 0x7F800000 : f32
    %767 = vector.broadcast %cst_345 : f32 to vector<16x128xf32>
    %768 = arith.select %25, %767, %766 : vector<16x128xi1>, vector<16x128xf32>
    %c1_i32_346 = arith.constant 1 : i32
    %769 = tpu.dynamic_rotate %733 by %c1_i32_346 dim 1 : vector<16x128xf32>, i32 -> vector<16x128xf32>
    %cst_347 = arith.constant 0x7F800000 : f32
    %770 = vector.broadcast %cst_347 : f32 to vector<16x128xf32>
    %771 = arith.select %23, %770, %769 : vector<16x128xi1>, vector<16x128xf32>
    %772 = arith.minimumf %768, %733 : vector<16x128xf32>
    %773 = arith.minimumf %772, %771 : vector<16x128xf32>
    %774 = arith.minimumf %765, %773 : vector<16x128xf32>
    %c15_i32_348 = arith.constant 15 : i32
    %775 = tpu.dynamic_rotate %774 by %c15_i32_348 dim 0 : vector<16x128xf32>, i32 -> vector<16x128xf32>
    %cst_349 = arith.constant 0xFF800000 : f32
    %776 = vector.broadcast %cst_349 : f32 to vector<16x128xf32>
    %777 = arith.select %21, %776, %775 : vector<16x128xi1>, vector<16x128xf32>
    %c1_i32_350 = arith.constant 1 : i32
    %778 = tpu.dynamic_rotate %774 by %c1_i32_350 dim 0 : vector<16x128xf32>, i32 -> vector<16x128xf32>
    %cst_351 = arith.constant 0xFF800000 : f32
    %779 = vector.broadcast %cst_351 : f32 to vector<16x128xf32>
    %780 = arith.select %19, %779, %778 : vector<16x128xi1>, vector<16x128xf32>
    %781 = arith.maximumf %777, %774 : vector<16x128xf32>
    %782 = arith.maximumf %781, %780 : vector<16x128xf32>
    %c127_i32_352 = arith.constant 127 : i32
    %783 = tpu.dynamic_rotate %782 by %c127_i32_352 dim 1 : vector<16x128xf32>, i32 -> vector<16x128xf32>
    %cst_353 = arith.constant 0xFF800000 : f32
    %784 = vector.broadcast %cst_353 : f32 to vector<16x128xf32>
    %785 = arith.select %25, %784, %783 : vector<16x128xi1>, vector<16x128xf32>
    %c1_i32_354 = arith.constant 1 : i32
    %786 = tpu.dynamic_rotate %782 by %c1_i32_354 dim 1 : vector<16x128xf32>, i32 -> vector<16x128xf32>
    %cst_355 = arith.constant 0xFF800000 : f32
    %787 = vector.broadcast %cst_355 : f32 to vector<16x128xf32>
    %788 = arith.select %23, %787, %786 : vector<16x128xi1>, vector<16x128xf32>
    %789 = arith.maximumf %785, %782 : vector<16x128xf32>
    %790 = arith.maximumf %789, %788 : vector<16x128xf32>
    %791 = arith.subf %733, %790 : vector<16x128xf32>
    %cst_356 = arith.constant 0.000000e+00 : f32
    %792 = vector.broadcast %cst_356 : f32 to vector<16x128xf32>
    %793 = arith.maximumf %791, %792 : vector<16x128xf32>
    %794 = arith.mulf %757, %793 : vector<16x128xf32>
    %795 = arith.subf %793, %794 : vector<16x128xf32>
    %cst_357 = arith.constant 0.000000e+00 : f32
    %796 = vector.broadcast %cst_357 : f32 to vector<16x128xf32>
    %797 = arith.maximumf %795, %796 : vector<16x128xf32>
    %798 = arith.addf %757, %797 : vector<16x128xf32>
    %c7_i32_358 = arith.constant 7 : i32
    %c15_i32_359 = arith.constant 15 : i32
    %799 = tpu.dynamic_rotate %774 by %c15_i32_359 dim 0 : vector<16x128xf32>, i32 -> vector<16x128xf32>
    %cst_360 = arith.constant 0x7F800000 : f32
    %800 = vector.broadcast %cst_360 : f32 to vector<16x128xf32>
    %801 = arith.select %21, %800, %799 : vector<16x128xi1>, vector<16x128xf32>
    %c1_i32_361 = arith.constant 1 : i32
    %802 = tpu.dynamic_rotate %774 by %c1_i32_361 dim 0 : vector<16x128xf32>, i32 -> vector<16x128xf32>
    %cst_362 = arith.constant 0x7F800000 : f32
    %803 = vector.broadcast %cst_362 : f32 to vector<16x128xf32>
    %804 = arith.select %19, %803, %802 : vector<16x128xi1>, vector<16x128xf32>
    %805 = arith.minimumf %801, %774 : vector<16x128xf32>
    %806 = arith.minimumf %805, %804 : vector<16x128xf32>
    %c127_i32_363 = arith.constant 127 : i32
    %807 = tpu.dynamic_rotate %774 by %c127_i32_363 dim 1 : vector<16x128xf32>, i32 -> vector<16x128xf32>
    %cst_364 = arith.constant 0x7F800000 : f32
    %808 = vector.broadcast %cst_364 : f32 to vector<16x128xf32>
    %809 = arith.select %25, %808, %807 : vector<16x128xi1>, vector<16x128xf32>
    %c1_i32_365 = arith.constant 1 : i32
    %810 = tpu.dynamic_rotate %774 by %c1_i32_365 dim 1 : vector<16x128xf32>, i32 -> vector<16x128xf32>
    %cst_366 = arith.constant 0x7F800000 : f32
    %811 = vector.broadcast %cst_366 : f32 to vector<16x128xf32>
    %812 = arith.select %23, %811, %810 : vector<16x128xi1>, vector<16x128xf32>
    %813 = arith.minimumf %809, %774 : vector<16x128xf32>
    %814 = arith.minimumf %813, %812 : vector<16x128xf32>
    %815 = arith.minimumf %806, %814 : vector<16x128xf32>
    %c15_i32_367 = arith.constant 15 : i32
    %816 = tpu.dynamic_rotate %815 by %c15_i32_367 dim 0 : vector<16x128xf32>, i32 -> vector<16x128xf32>
    %cst_368 = arith.constant 0xFF800000 : f32
    %817 = vector.broadcast %cst_368 : f32 to vector<16x128xf32>
    %818 = arith.select %21, %817, %816 : vector<16x128xi1>, vector<16x128xf32>
    %c1_i32_369 = arith.constant 1 : i32
    %819 = tpu.dynamic_rotate %815 by %c1_i32_369 dim 0 : vector<16x128xf32>, i32 -> vector<16x128xf32>
    %cst_370 = arith.constant 0xFF800000 : f32
    %820 = vector.broadcast %cst_370 : f32 to vector<16x128xf32>
    %821 = arith.select %19, %820, %819 : vector<16x128xi1>, vector<16x128xf32>
    %822 = arith.maximumf %818, %815 : vector<16x128xf32>
    %823 = arith.maximumf %822, %821 : vector<16x128xf32>
    %c127_i32_371 = arith.constant 127 : i32
    %824 = tpu.dynamic_rotate %823 by %c127_i32_371 dim 1 : vector<16x128xf32>, i32 -> vector<16x128xf32>
    %cst_372 = arith.constant 0xFF800000 : f32
    %825 = vector.broadcast %cst_372 : f32 to vector<16x128xf32>
    %826 = arith.select %25, %825, %824 : vector<16x128xi1>, vector<16x128xf32>
    %c1_i32_373 = arith.constant 1 : i32
    %827 = tpu.dynamic_rotate %823 by %c1_i32_373 dim 1 : vector<16x128xf32>, i32 -> vector<16x128xf32>
    %cst_374 = arith.constant 0xFF800000 : f32
    %828 = vector.broadcast %cst_374 : f32 to vector<16x128xf32>
    %829 = arith.select %23, %828, %827 : vector<16x128xi1>, vector<16x128xf32>
    %830 = arith.maximumf %826, %823 : vector<16x128xf32>
    %831 = arith.maximumf %830, %829 : vector<16x128xf32>
    %832 = arith.subf %774, %831 : vector<16x128xf32>
    %cst_375 = arith.constant 0.000000e+00 : f32
    %833 = vector.broadcast %cst_375 : f32 to vector<16x128xf32>
    %834 = arith.maximumf %832, %833 : vector<16x128xf32>
    %835 = arith.mulf %798, %834 : vector<16x128xf32>
    %836 = arith.subf %834, %835 : vector<16x128xf32>
    %cst_376 = arith.constant 0.000000e+00 : f32
    %837 = vector.broadcast %cst_376 : f32 to vector<16x128xf32>
    %838 = arith.maximumf %836, %837 : vector<16x128xf32>
    %839 = arith.addf %798, %838 : vector<16x128xf32>
    %c8_i32_377 = arith.constant 8 : i32
    %c15_i32_378 = arith.constant 15 : i32
    %840 = tpu.dynamic_rotate %815 by %c15_i32_378 dim 0 : vector<16x128xf32>, i32 -> vector<16x128xf32>
    %cst_379 = arith.constant 0x7F800000 : f32
    %841 = vector.broadcast %cst_379 : f32 to vector<16x128xf32>
    %842 = arith.select %21, %841, %840 : vector<16x128xi1>, vector<16x128xf32>
    %c1_i32_380 = arith.constant 1 : i32
    %843 = tpu.dynamic_rotate %815 by %c1_i32_380 dim 0 : vector<16x128xf32>, i32 -> vector<16x128xf32>
    %cst_381 = arith.constant 0x7F800000 : f32
    %844 = vector.broadcast %cst_381 : f32 to vector<16x128xf32>
    %845 = arith.select %19, %844, %843 : vector<16x128xi1>, vector<16x128xf32>
    %846 = arith.minimumf %842, %815 : vector<16x128xf32>
    %847 = arith.minimumf %846, %845 : vector<16x128xf32>
    %c127_i32_382 = arith.constant 127 : i32
    %848 = tpu.dynamic_rotate %815 by %c127_i32_382 dim 1 : vector<16x128xf32>, i32 -> vector<16x128xf32>
    %cst_383 = arith.constant 0x7F800000 : f32
    %849 = vector.broadcast %cst_383 : f32 to vector<16x128xf32>
    %850 = arith.select %25, %849, %848 : vector<16x128xi1>, vector<16x128xf32>
    %c1_i32_384 = arith.constant 1 : i32
    %851 = tpu.dynamic_rotate %815 by %c1_i32_384 dim 1 : vector<16x128xf32>, i32 -> vector<16x128xf32>
    %cst_385 = arith.constant 0x7F800000 : f32
    %852 = vector.broadcast %cst_385 : f32 to vector<16x128xf32>
    %853 = arith.select %23, %852, %851 : vector<16x128xi1>, vector<16x128xf32>
    %854 = arith.minimumf %850, %815 : vector<16x128xf32>
    %855 = arith.minimumf %854, %853 : vector<16x128xf32>
    %856 = arith.minimumf %847, %855 : vector<16x128xf32>
    %c15_i32_386 = arith.constant 15 : i32
    %857 = tpu.dynamic_rotate %856 by %c15_i32_386 dim 0 : vector<16x128xf32>, i32 -> vector<16x128xf32>
    %cst_387 = arith.constant 0xFF800000 : f32
    %858 = vector.broadcast %cst_387 : f32 to vector<16x128xf32>
    %859 = arith.select %21, %858, %857 : vector<16x128xi1>, vector<16x128xf32>
    %c1_i32_388 = arith.constant 1 : i32
    %860 = tpu.dynamic_rotate %856 by %c1_i32_388 dim 0 : vector<16x128xf32>, i32 -> vector<16x128xf32>
    %cst_389 = arith.constant 0xFF800000 : f32
    %861 = vector.broadcast %cst_389 : f32 to vector<16x128xf32>
    %862 = arith.select %19, %861, %860 : vector<16x128xi1>, vector<16x128xf32>
    %863 = arith.maximumf %859, %856 : vector<16x128xf32>
    %864 = arith.maximumf %863, %862 : vector<16x128xf32>
    %c127_i32_390 = arith.constant 127 : i32
    %865 = tpu.dynamic_rotate %864 by %c127_i32_390 dim 1 : vector<16x128xf32>, i32 -> vector<16x128xf32>
    %cst_391 = arith.constant 0xFF800000 : f32
    %866 = vector.broadcast %cst_391 : f32 to vector<16x128xf32>
    %867 = arith.select %25, %866, %865 : vector<16x128xi1>, vector<16x128xf32>
    %c1_i32_392 = arith.constant 1 : i32
    %868 = tpu.dynamic_rotate %864 by %c1_i32_392 dim 1 : vector<16x128xf32>, i32 -> vector<16x128xf32>
    %cst_393 = arith.constant 0xFF800000 : f32
    %869 = vector.broadcast %cst_393 : f32 to vector<16x128xf32>
    %870 = arith.select %23, %869, %868 : vector<16x128xi1>, vector<16x128xf32>
    %871 = arith.maximumf %867, %864 : vector<16x128xf32>
    %872 = arith.maximumf %871, %870 : vector<16x128xf32>
    %873 = arith.subf %815, %872 : vector<16x128xf32>
    %cst_394 = arith.constant 0.000000e+00 : f32
    %874 = vector.broadcast %cst_394 : f32 to vector<16x128xf32>
    %875 = arith.maximumf %873, %874 : vector<16x128xf32>
    %876 = arith.mulf %839, %875 : vector<16x128xf32>
    %877 = arith.subf %875, %876 : vector<16x128xf32>
    %cst_395 = arith.constant 0.000000e+00 : f32
    %878 = vector.broadcast %cst_395 : f32 to vector<16x128xf32>
    %879 = arith.maximumf %877, %878 : vector<16x128xf32>
    %880 = arith.addf %839, %879 : vector<16x128xf32>
    %c9_i32_396 = arith.constant 9 : i32
    %c15_i32_397 = arith.constant 15 : i32
    %881 = tpu.dynamic_rotate %856 by %c15_i32_397 dim 0 : vector<16x128xf32>, i32 -> vector<16x128xf32>
    %cst_398 = arith.constant 0x7F800000 : f32
    %882 = vector.broadcast %cst_398 : f32 to vector<16x128xf32>
    %883 = arith.select %21, %882, %881 : vector<16x128xi1>, vector<16x128xf32>
    %c1_i32_399 = arith.constant 1 : i32
    %884 = tpu.dynamic_rotate %856 by %c1_i32_399 dim 0 : vector<16x128xf32>, i32 -> vector<16x128xf32>
    %cst_400 = arith.constant 0x7F800000 : f32
    %885 = vector.broadcast %cst_400 : f32 to vector<16x128xf32>
    %886 = arith.select %19, %885, %884 : vector<16x128xi1>, vector<16x128xf32>
    %887 = arith.minimumf %883, %856 : vector<16x128xf32>
    %888 = arith.minimumf %887, %886 : vector<16x128xf32>
    %c127_i32_401 = arith.constant 127 : i32
    %889 = tpu.dynamic_rotate %856 by %c127_i32_401 dim 1 : vector<16x128xf32>, i32 -> vector<16x128xf32>
    %cst_402 = arith.constant 0x7F800000 : f32
    %890 = vector.broadcast %cst_402 : f32 to vector<16x128xf32>
    %891 = arith.select %25, %890, %889 : vector<16x128xi1>, vector<16x128xf32>
    %c1_i32_403 = arith.constant 1 : i32
    %892 = tpu.dynamic_rotate %856 by %c1_i32_403 dim 1 : vector<16x128xf32>, i32 -> vector<16x128xf32>
    %cst_404 = arith.constant 0x7F800000 : f32
    %893 = vector.broadcast %cst_404 : f32 to vector<16x128xf32>
    %894 = arith.select %23, %893, %892 : vector<16x128xi1>, vector<16x128xf32>
    %895 = arith.minimumf %891, %856 : vector<16x128xf32>
    %896 = arith.minimumf %895, %894 : vector<16x128xf32>
    %897 = arith.minimumf %888, %896 : vector<16x128xf32>
    %c15_i32_405 = arith.constant 15 : i32
    %898 = tpu.dynamic_rotate %897 by %c15_i32_405 dim 0 : vector<16x128xf32>, i32 -> vector<16x128xf32>
    %cst_406 = arith.constant 0xFF800000 : f32
    %899 = vector.broadcast %cst_406 : f32 to vector<16x128xf32>
    %900 = arith.select %21, %899, %898 : vector<16x128xi1>, vector<16x128xf32>
    %c1_i32_407 = arith.constant 1 : i32
    %901 = tpu.dynamic_rotate %897 by %c1_i32_407 dim 0 : vector<16x128xf32>, i32 -> vector<16x128xf32>
    %cst_408 = arith.constant 0xFF800000 : f32
    %902 = vector.broadcast %cst_408 : f32 to vector<16x128xf32>
    %903 = arith.select %19, %902, %901 : vector<16x128xi1>, vector<16x128xf32>
    %904 = arith.maximumf %900, %897 : vector<16x128xf32>
    %905 = arith.maximumf %904, %903 : vector<16x128xf32>
    %c127_i32_409 = arith.constant 127 : i32
    %906 = tpu.dynamic_rotate %905 by %c127_i32_409 dim 1 : vector<16x128xf32>, i32 -> vector<16x128xf32>
    %cst_410 = arith.constant 0xFF800000 : f32
    %907 = vector.broadcast %cst_410 : f32 to vector<16x128xf32>
    %908 = arith.select %25, %907, %906 : vector<16x128xi1>, vector<16x128xf32>
    %c1_i32_411 = arith.constant 1 : i32
    %909 = tpu.dynamic_rotate %905 by %c1_i32_411 dim 1 : vector<16x128xf32>, i32 -> vector<16x128xf32>
    %cst_412 = arith.constant 0xFF800000 : f32
    %910 = vector.broadcast %cst_412 : f32 to vector<16x128xf32>
    %911 = arith.select %23, %910, %909 : vector<16x128xi1>, vector<16x128xf32>
    %912 = arith.maximumf %908, %905 : vector<16x128xf32>
    %913 = arith.maximumf %912, %911 : vector<16x128xf32>
    %914 = arith.subf %856, %913 : vector<16x128xf32>
    %cst_413 = arith.constant 0.000000e+00 : f32
    %915 = vector.broadcast %cst_413 : f32 to vector<16x128xf32>
    %916 = arith.maximumf %914, %915 : vector<16x128xf32>
    %917 = arith.mulf %880, %916 : vector<16x128xf32>
    %918 = arith.subf %916, %917 : vector<16x128xf32>
    %cst_414 = arith.constant 0.000000e+00 : f32
    %919 = vector.broadcast %cst_414 : f32 to vector<16x128xf32>
    %920 = arith.maximumf %918, %919 : vector<16x128xf32>
    %921 = arith.addf %880, %920 : vector<16x128xf32>
    %922 = arith.mulf %475, %29 : vector<16x128xf32>
    %cst_415 = arith.constant dense<0.000000e+00> : vector<128xf32>
    %923 = vector.multi_reduction <add>, %922, %cst_415 [0] : vector<16x128xf32> to vector<128xf32>
    %924 = vector.shape_cast %923 : vector<128xf32> to vector<1x128xf32>
    %cst_416 = arith.constant dense<0.000000e+00> : vector<128xf32>
    %925 = vector.multi_reduction <add>, %475, %cst_416 [0] : vector<16x128xf32> to vector<128xf32>
    %926 = vector.shape_cast %925 : vector<128xf32> to vector<1x128xf32>
    %927 = arith.mulf %921, %27 : vector<16x128xf32>
    %cst_417 = arith.constant dense<0.000000e+00> : vector<128xf32>
    %928 = vector.multi_reduction <add>, %927, %cst_417 [0] : vector<16x128xf32> to vector<128xf32>
    %929 = vector.shape_cast %928 : vector<128xf32> to vector<1x128xf32>
    %cst_418 = arith.constant dense<0.000000e+00> : vector<128xf32>
    %930 = vector.multi_reduction <add>, %921, %cst_418 [0] : vector<16x128xf32> to vector<128xf32>
    %931 = vector.shape_cast %930 : vector<128xf32> to vector<1x128xf32>
    %932 = tpu.concatenate %924, %926, %929, %931 in 0 : vector<1x128xf32>, vector<1x128xf32>, vector<1x128xf32>, vector<1x128xf32> -> vector<4x128xf32>
    %c0_419 = arith.constant 0 : index
    %c0_420 = arith.constant 0 : index
    %c0_421 = arith.constant 0 : index
    %933 = vector.load %arg3[%c0_419, %c0_420, %c0_421] : memref<1x4x128xf32, #tpu.memory_space<vmem>>, vector<1x4x128xf32>
    %934 = vector.shape_cast %933 : vector<1x4x128xf32> to vector<4x128xf32>
    %935 = vector.shape_cast %932 : vector<4x128xf32> to vector<1x4x128xf32>
    tpu.vector_store %arg3[%c0_419, %c0_420, %c0_421], %935 {strides = array<i32>} : memref<1x4x128xf32, #tpu.memory_space<vmem>>, vector<1x4x128xf32>,
    return
  }
  func.func @transform_0(%arg0: i32) -> (i32, i32, i32) {
    %c0_i32 = arith.constant 0 : i32
    %c0_i32_0 = arith.constant 0 : i32
    %c0_i32_1 = arith.constant 0 : i32
    return %arg0, %c0_i32, %c0_i32_0 : i32, i32, i32
  }
  func.func @transform_1(%arg0: i32) -> (i32, i32, i32) {
    %c0_i32 = arith.constant 0 : i32
    %c0_i32_0 = arith.constant 0 : i32
    %c0_i32_1 = arith.constant 0 : i32
    return %arg0, %c0_i32, %c0_i32_0 : i32, i32, i32
  }
  func.func @transform_2(%arg0: i32) -> (i32, i32, i32) {
    %c0_i32 = arith.constant 0 : i32
    %c0_i32_0 = arith.constant 0 : i32
    %c0_i32_1 = arith.constant 0 : i32
    return %arg0, %c0_i32, %c0_i32_0 : i32, i32, i32
  }
}

</mosaic_0001>

<llo_original>
// kernel: memory_efficient_soft_cl_dice_loss.1
$region0: #{memory_efficient_soft_cl_dice_loss.1}
  #allocation0 [shape = 'u32[]', space=smem, size = 0x4, offset = 0x4, fixed_abs, tag = 'smem constant byte address 0x4 - core index']
  #allocation1 [shape = 'u32[72,128]{1,0:T(1,128)}', space=vmem, size = 0x9000, scoped, tag = 'internal scratch']
  %s0 = inlined_call_operand.vmem [shape: f32[1,16,128], index: 0, kind: input, shape index: {}]
  %s1 = inlined_call_operand.vmem [shape: f32[1,16,128], index: 1, kind: input, shape index: {}]
  %s2 = inlined_call_operand.vmem [shape: f32[1,4,128], index: 2, kind: output, shape index: {}]
  %s3 = sld [smem:[#allocation0]]
  $region18: #{memory_efficient_soft_cl_dice_loss.1} parent=0
    _
  %s5 = ssub.s32 1, %s3
  %s6 = scalar_select 0, %s5, %s3
  // Predicated region
  $region2: #{memory_efficient_soft_cl_dice_loss.1} parent=0 // pred_check
    _
  $region3: #{memory_efficient_soft_cl_dice_loss.1} parent=0 // pred_check_branch
    %8 = sbr.rel (0) target = $region5
  $region4: #{memory_efficient_soft_cl_dice_loss.1} parent=0 // pred_region
    _
  $region5: #{memory_efficient_soft_cl_dice_loss.1} parent=0 // pred_fallthru
    _
  // Predicated region
  $region6: #{memory_efficient_soft_cl_dice_loss.1} parent=0 // pred_check
    _
  $region7: #{memory_efficient_soft_cl_dice_loss.1} parent=0 // pred_check_branch
    %10 = sbr.rel (0) target = $region9
  $region8: #{memory_efficient_soft_cl_dice_loss.1} parent=0 // pred_region
    _
  $region9: #{memory_efficient_soft_cl_dice_loss.1} parent=0 // pred_fallthru
    _
  %v11 = vlaneseq
  %v12 = vshrl.u32 %v11, 7
  %v13 = vadd.s32 %v12, 8
  %v14 = vlaneseq
  %v15 = vand.u32 %v14, 127
  %vm16 = vcmp.lt.s32.totalorder %v15, 0
  %v17 = vsub.s32 0, %v15
  %v18 = vsel %vm16, %v17, %v15
  %v19 = vshrl.u32 %v18, 4
  %v20 = vand.u32 %v18, 15
  %v21 = vsub.s32 0, %v20
  %v22 = vsel %vm16, %v21, %v20
  %vm23 = vcmp.ne.s32.totalorder %v22, 0
  %vm24 = vcmp.lt.s32.totalorder %v22, 0
  %vm25 = vmand %vm24, %vm23
  %v26 = vadd.s32 %v22, 16
  %v27 = vsel %vm25, %v26, %v22
  %vm28 = vcmp.eq.s32.totalorder %v12, 0
  %vm29 = vcmp.eq.s32.totalorder %v13, 0
  %vm30 = vcmp.eq.s32.totalorder %v12, 15
  %vm31 = vcmp.eq.s32.totalorder %v13, 15
  %vm32 = vcmp.eq.s32.totalorder %v27, 0
  %vm33 = vcmp.eq.s32.totalorder %v27, 15
  %v34 = vld [vmem:[%s0] sm:$0xff]
  %v35 = vld [vmem:[%s0 + $0x8] sm:$0xff]
  %v36 = vld [vmem:[%s1] sm:$0xff]
  %v37 = vld [vmem:[%s1 + $0x8] sm:$0xff]
  %v38 = vrot.slane %v34, 1
  %v39 = vrot.slane %v35, 1
  %vm40 = vcmp.lt.s32.totalorder %v12, 7
  %v41 = vsel %vm40, %v38, %v39
  %v42 = vsel %vm40, %v39, %v38
  %v43 = vsel %vm30, inf, %v41
  %v44 = vsel %vm31, inf, %v42
  %v45 = vrot.slane %v34, 7
  %v46 = vrot.slane %v35, 7
  %vm47 = vcmp.lt.s32.totalorder %v12, 1
  %v48 = vsel %vm47, %v45, %v46
  %v49 = vsel %vm47, %v46, %v45
  %v50 = vsel %vm28, inf, %v49
  %v51 = vsel %vm29, inf, %v48
  %v52 = vmin.f32 %v43, %v34
  %v53 = vmin.f32 %v44, %v35
  %v54 = vmin.f32 %v52, %v50
  %v55 = vmin.f32 %v53, %v51
  %56 = vrot.lane.b32.xlu0 %v34, 127
  %v57 = vpop.permute.xlu0 %56
  %58 = vrot.lane.b32.xlu0 %v35, 127
  %v59 = vpop.permute.xlu0 %58
  %v60 = vsel %vm33, inf, %v57
  %v61 = vsel %vm33, inf, %v59
  %62 = vrot.lane.b32.xlu0 %v34, 1
  %v63 = vpop.permute.xlu0 %62
  %64 = vrot.lane.b32.xlu0 %v35, 1
  %v65 = vpop.permute.xlu0 %64
  %v66 = vsel %vm32, inf, %v63
  %v67 = vsel %vm32, inf, %v65
  %v68 = vmin.f32 %v60, %v34
  %v69 = vmin.f32 %v61, %v35
  %v70 = vmin.f32 %v68, %v66
  %v71 = vmin.f32 %v69, %v67
  %v72 = vmin.f32 %v54, %v70
  %v73 = vmin.f32 %v55, %v71
  %v74 = vrot.slane %v72, 1
  %v75 = vrot.slane %v73, 1
  %v76 = vsel %vm40, %v74, %v75
  %v77 = vsel %vm40, %v75, %v74
  %v78 = vsel %vm30, -inf, %v76
  %v79 = vsel %vm31, -inf, %v77
  %v80 = vrot.slane %v72, 7
  %v81 = vrot.slane %v73, 7
  %v82 = vsel %vm47, %v80, %v81
  %v83 = vsel %vm47, %v81, %v80
  %v84 = vsel %vm28, -inf, %v83
  %v85 = vsel %vm29, -inf, %v82
  %v86 = vmax.f32 %v78, %v72
  %v87 = vmax.f32 %v79, %v73
  %v88 = vmax.f32 %v86, %v84
  %v89 = vmax.f32 %v87, %v85
  %90 = vrot.lane.b32.xlu0 %v88, 127
  %v91 = vpop.permute.xlu0 %90
  %92 = vrot.lane.b32.xlu0 %v89, 127
  %v93 = vpop.permute.xlu0 %92
  %v94 = vsel %vm33, -inf, %v91
  %v95 = vsel %vm33, -inf, %v93
  %96 = vrot.lane.b32.xlu0 %v88, 1
  %v97 = vpop.permute.xlu0 %96
  %98 = vrot.lane.b32.xlu0 %v89, 1
  %v99 = vpop.permute.xlu0 %98
  %v100 = vsel %vm32, -inf, %v97
  %v101 = vsel %vm32, -inf, %v99
  %v102 = vmax.f32 %v94, %v88
  %v103 = vmax.f32 %v95, %v89
  %v104 = vmax.f32 %v102, %v100
  %v105 = vmax.f32 %v103, %v101
  %v106 = vsub.f32 %v34, %v104
  %v107 = vsub.f32 %v35, %v105
  %v108 = vmax.f32 %v106, 0.0
  %v109 = vmax.f32 %v107, 0.0
  %v110 = vsel %vm30, inf, %v76
  %v111 = vsel %vm31, inf, %v77
  %v112 = vsel %vm28, inf, %v83
  %v113 = vsel %vm29, inf, %v82
  %v114 = vmin.f32 %v110, %v72
  %v115 = vmin.f32 %v111, %v73
  %v116 = vmin.f32 %v114, %v112
  %v117 = vmin.f32 %v115, %v113
  %118 = vrot.lane.b32.xlu0 %v72, 127
  %v119 = vpop.permute.xlu0 %118
  %120 = vrot.lane.b32.xlu0 %v73, 127
  %v121 = vpop.permute.xlu0 %120
  %v122 = vsel %vm33, inf, %v119
  %v123 = vsel %vm33, inf, %v121
  %124 = vrot.lane.b32.xlu0 %v72, 1
  %v125 = vpop.permute.xlu0 %124
  %126 = vrot.lane.b32.xlu0 %v73, 1
  %v127 = vpop.permute.xlu0 %126
  %v128 = vsel %vm32, inf, %v125
  %v129 = vsel %vm32, inf, %v127
  %v130 = vmin.f32 %v122, %v72
  %v131 = vmin.f32 %v123, %v73
  %v132 = vmin.f32 %v130, %v128
  %v133 = vmin.f32 %v131, %v129
  %v134 = vmin.f32 %v116, %v132
  %v135 = vmin.f32 %v117, %v133
  %v136 = vrot.slane %v134, 1
  %v137 = vrot.slane %v135, 1
  %v138 = vsel %vm40, %v136, %v137
  %v139 = vsel %vm40, %v137, %v136
  %v140 = vsel %vm30, -inf, %v138
  %v141 = vsel %vm31, -inf, %v139
  %v142 = vrot.slane %v134, 7
  %v143 = vrot.slane %v135, 7
  %v144 = vsel %vm47, %v142, %v143
  %v145 = vsel %vm47, %v143, %v142
  %v146 = vsel %vm28, -inf, %v145
  %v147 = vsel %vm29, -inf, %v144
  %v148 = vmax.f32 %v140, %v134
  %v149 = vmax.f32 %v141, %v135
  %v150 = vmax.f32 %v148, %v146
  %v151 = vmax.f32 %v149, %v147
  %152 = vrot.lane.b32.xlu0 %v150, 127
  %v153 = vpop.permute.xlu0 %152
  %154 = vrot.lane.b32.xlu0 %v151, 127
  %v155 = vpop.permute.xlu0 %154
  %v156 = vsel %vm33, -inf, %v153
  %v157 = vsel %vm33, -inf, %v155
  %158 = vrot.lane.b32.xlu0 %v150, 1
  %v159 = vpop.permute.xlu0 %158
  %160 = vrot.lane.b32.xlu0 %v151, 1
  %v161 = vpop.permute.xlu0 %160
  %v162 = vsel %vm32, -inf, %v159
  %v163 = vsel %vm32, -inf, %v161
  %v164 = vmax.f32 %v156, %v150
  %v165 = vmax.f32 %v157, %v151
  %v166 = vmax.f32 %v164, %v162
  %v167 = vmax.f32 %v165, %v163
  %v168 = vsub.f32 %v72, %v166
  %v169 = vsub.f32 %v73, %v167
  %v170 = vmax.f32 %v168, 0.0
  %v171 = vmax.f32 %v169, 0.0
  %v172 = vmul.f32 %v108, %v170
  %v173 = vmul.f32 %v109, %v171
  %v174 = vsub.f32 %v170, %v172
  %v175 = vsub.f32 %v171, %v173
  %v176 = vmax.f32 %v174, 0.0
  %v177 = vmax.f32 %v175, 0.0
  %v178 = vadd.f32 %v108, %v176
  %v179 = vadd.f32 %v109, %v177
  %v180 = vsel %vm30, inf, %v138
  %v181 = vsel %vm31, inf, %v139
  %v182 = vsel %vm28, inf, %v145
  %v183 = vsel %vm29, inf, %v144
  %v184 = vmin.f32 %v180, %v134
  %v185 = vmin.f32 %v181, %v135
  %v186 = vmin.f32 %v184, %v182
  %v187 = vmin.f32 %v185, %v183
  %188 = vrot.lane.b32.xlu0 %v134, 127
  %v189 = vpop.permute.xlu0 %188
  %190 = vrot.lane.b32.xlu0 %v135, 127
  %v191 = vpop.permute.xlu0 %190
  %v192 = vsel %vm33, inf, %v189
  %v193 = vsel %vm33, inf, %v191
  %194 = vrot.lane.b32.xlu0 %v134, 1
  %v195 = vpop.permute.xlu0 %194
  %196 = vrot.lane.b32.xlu0 %v135, 1
  %v197 = vpop.permute.xlu0 %196
  %v198 = vsel %vm32, inf, %v195
  %v199 = vsel %vm32, inf, %v197
  %v200 = vmin.f32 %v192, %v134
  %v201 = vmin.f32 %v193, %v135
  %v202 = vmin.f32 %v200, %v198
  %v203 = vmin.f32 %v201, %v199
  %v204 = vmin.f32 %v186, %v202
  %v205 = vmin.f32 %v187, %v203
  %v206 = vrot.slane %v204, 1
  %v207 = vrot.slane %v205, 1
  %v208 = vsel %vm40, %v206, %v207
  %v209 = vsel %vm40, %v207, %v206
  %v210 = vsel %vm30, -inf, %v208
  %v211 = vsel %vm31, -inf, %v209
  %v212 = vrot.slane %v204, 7
  %v213 = vrot.slane %v205, 7
  %v214 = vsel %vm47, %v212, %v213
  %v215 = vsel %vm47, %v213, %v212
  %v216 = vsel %vm28, -inf, %v215
  %v217 = vsel %vm29, -inf, %v214
  %v218 = vmax.f32 %v210, %v204
  %v219 = vmax.f32 %v211, %v205
  %v220 = vmax.f32 %v218, %v216
  %v221 = vmax.f32 %v219, %v217
  %222 = vrot.lane.b32.xlu0 %v220, 127
  %v223 = vpop.permute.xlu0 %222
  %224 = vrot.lane.b32.xlu0 %v221, 127
  %v225 = vpop.permute.xlu0 %224
  %v226 = vsel %vm33, -inf, %v223
  %v227 = vsel %vm33, -inf, %v225
  %228 = vrot.lane.b32.xlu0 %v220, 1
  %v229 = vpop.permute.xlu0 %228
  %230 = vrot.lane.b32.xlu0 %v221, 1
  %v231 = vpop.permute.xlu0 %230
  %v232 = vsel %vm32, -inf, %v229
  %v233 = vsel %vm32, -inf, %v231
  %v234 = vmax.f32 %v226, %v220
  %v235 = vmax.f32 %v227, %v221
  %v236 = vmax.f32 %v234, %v232
  %v237 = vmax.f32 %v235, %v233
  %v238 = vsub.f32 %v134, %v236
  %v239 = vsub.f32 %v135, %v237
  %v240 = vmax.f32 %v238, 0.0
  %v241 = vmax.f32 %v239, 0.0
  %v242 = vmul.f32 %v178, %v240
  %v243 = vmul.f32 %v179, %v241
  %v244 = vsub.f32 %v240, %v242
  %v245 = vsub.f32 %v241, %v243
  %v246 = vmax.f32 %v244, 0.0
  %v247 = vmax.f32 %v245, 0.0
  %v248 = vadd.f32 %v178, %v246
  %v249 = vadd.f32 %v179, %v247
  %v250 = vsel %vm30, inf, %v208
  %v251 = vsel %vm31, inf, %v209
  %v252 = vsel %vm28, inf, %v215
  %v253 = vsel %vm29, inf, %v214
  %v254 = vmin.f32 %v250, %v204
  %v255 = vmin.f32 %v251, %v205
  %v256 = vmin.f32 %v254, %v252
  %v257 = vmin.f32 %v255, %v253
  %258 = vrot.lane.b32.xlu0 %v204, 127
  %v259 = vpop.permute.xlu0 %258
  %260 = vrot.lane.b32.xlu0 %v205, 127
  %v261 = vpop.permute.xlu0 %260
  %v262 = vsel %vm33, inf, %v259
  %v263 = vsel %vm33, inf, %v261
  %264 = vrot.lane.b32.xlu0 %v204, 1
  %v265 = vpop.permute.xlu0 %264
  %266 = vrot.lane.b32.xlu0 %v205, 1
  %v267 = vpop.permute.xlu0 %266
  %v268 = vsel %vm32, inf, %v265
  %v269 = vsel %vm32, inf, %v267
  %v270 = vmin.f32 %v262, %v204
  %v271 = vmin.f32 %v263, %v205
  %v272 = vmin.f32 %v270, %v268
  %v273 = vmin.f32 %v271, %v269
  %v274 = vmin.f32 %v256, %v272
  %v275 = vmin.f32 %v257, %v273
  %v276 = vrot.slane %v274, 1
  %v277 = vrot.slane %v275, 1
  %v278 = vsel %vm40, %v276, %v277
  %v279 = vsel %vm40, %v277, %v276
  %v280 = vsel %vm30, -inf, %v278
  %v281 = vsel %vm31, -inf, %v279
  %v282 = vrot.slane %v274, 7
  %v283 = vrot.slane %v275, 7
  %v284 = vsel %vm47, %v282, %v283
  %v285 = vsel %vm47, %v283, %v282
  %v286 = vsel %vm28, -inf, %v285
  %v287 = vsel %vm29, -inf, %v284
  %v288 = vmax.f32 %v280, %v274
  %v289 = vmax.f32 %v281, %v275
  %v290 = vmax.f32 %v288, %v286
  %v291 = vmax.f32 %v289, %v287
  %292 = vrot.lane.b32.xlu0 %v290, 127
  %v293 = vpop.permute.xlu0 %292
  %294 = vrot.lane.b32.xlu0 %v291, 127
  %v295 = vpop.permute.xlu0 %294
  %v296 = vsel %vm33, -inf, %v293
  %v297 = vsel %vm33, -inf, %v295
  %298 = vrot.lane.b32.xlu0 %v290, 1
  %v299 = vpop.permute.xlu0 %298
  %300 = vrot.lane.b32.xlu0 %v291, 1
  %v301 = vpop.permute.xlu0 %300
  %v302 = vsel %vm32, -inf, %v299
  %v303 = vsel %vm32, -inf, %v301
  %v304 = vmax.f32 %v296, %v290
  %v305 = vmax.f32 %v297, %v291
  %v306 = vmax.f32 %v304, %v302
  %v307 = vmax.f32 %v305, %v303
  %v308 = vsub.f32 %v204, %v306
  %v309 = vsub.f32 %v205, %v307
  %v310 = vmax.f32 %v308, 0.0
  %v311 = vmax.f32 %v309, 0.0
  %v312 = vmul.f32 %v248, %v310
  %v313 = vmul.f32 %v249, %v311
  %v314 = vsub.f32 %v310, %v312
  %v315 = vsub.f32 %v311, %v313
  %v316 = vmax.f32 %v314, 0.0
  %v317 = vmax.f32 %v315, 0.0
  %v318 = vadd.f32 %v248, %v316
  %v319 = vadd.f32 %v249, %v317
  %v320 = vsel %vm30, inf, %v278
  %v321 = vsel %vm31, inf, %v279
  %v322 = vsel %vm28, inf, %v285
  %v323 = vsel %vm29, inf, %v284
  %v324 = vmin.f32 %v320, %v274
  %v325 = vmin.f32 %v321, %v275
  %v326 = vmin.f32 %v324, %v322
  %v327 = vmin.f32 %v325, %v323
  %328 = vrot.lane.b32.xlu0 %v274, 127
  %v329 = vpop.permute.xlu0 %328
  %330 = vrot.lane.b32.xlu0 %v275, 127
  %v331 = vpop.permute.xlu0 %330
  %v332 = vsel %vm33, inf, %v329
  %v333 = vsel %vm33, inf, %v331
  %334 = vrot.lane.b32.xlu0 %v274, 1
  %v335 = vpop.permute.xlu0 %334
  %336 = vrot.lane.b32.xlu0 %v275, 1
  %v337 = vpop.permute.xlu0 %336
  %v338 = vsel %vm32, inf, %v335
  %v339 = vsel %vm32, inf, %v337
  %v340 = vmin.f32 %v332, %v274
  %v341 = vmin.f32 %v333, %v275
  %v342 = vmin.f32 %v340, %v338
  %v343 = vmin.f32 %v341, %v339
  %v344 = vmin.f32 %v326, %v342
  %v345 = vmin.f32 %v327, %v343
  %v346 = vrot.slane %v344, 1
  %v347 = vrot.slane %v345, 1
  %v348 = vsel %vm40, %v346, %v347
  %v349 = vsel %vm40, %v347, %v346
  %v350 = vsel %vm30, -inf, %v348
  %v351 = vsel %vm31, -inf, %v349
  %v352 = vrot.slane %v344, 7
  %v353 = vrot.slane %v345, 7
  %v354 = vsel %vm47, %v352, %v353
  %v355 = vsel %vm47, %v353, %v352
  %v356 = vsel %vm28, -inf, %v355
  %v357 = vsel %vm29, -inf, %v354
  %v358 = vmax.f32 %v350, %v344
  %v359 = vmax.f32 %v351, %v345
  %v360 = vmax.f32 %v358, %v356
  %v361 = vmax.f32 %v359, %v357
  %362 = vrot.lane.b32.xlu0 %v360, 127
  %v363 = vpop.permute.xlu0 %362
  %364 = vrot.lane.b32.xlu0 %v361, 127
  %v365 = vpop.permute.xlu0 %364
  %v366 = vsel %vm33, -inf, %v363
  %v367 = vsel %vm33, -inf, %v365
  %368 = vrot.lane.b32.xlu0 %v360, 1
  %v369 = vpop.permute.xlu0 %368
  %370 = vrot.lane.b32.xlu0 %v361, 1
  %v371 = vpop.permute.xlu0 %370
  %v372 = vsel %vm32, -inf, %v369
  %v373 = vsel %vm32, -inf, %v371
  %v374 = vmax.f32 %v366, %v360
  %v375 = vmax.f32 %v367, %v361
  %v376 = vmax.f32 %v374, %v372
  %v377 = vmax.f32 %v375, %v373
  %v378 = vsub.f32 %v274, %v376
  %v379 = vsub.f32 %v275, %v377
  %v380 = vmax.f32 %v378, 0.0
  %v381 = vmax.f32 %v379, 0.0
  %v382 = vmul.f32 %v318, %v380
  %v383 = vmul.f32 %v319, %v381
  %v384 = vsub.f32 %v380, %v382
  %v385 = vsub.f32 %v381, %v383
  %v386 = vmax.f32 %v384, 0.0
  %v387 = vmax.f32 %v385, 0.0
  %v388 = vadd.f32 %v318, %v386
  %v389 = vadd.f32 %v319, %v387
  %v390 = vsel %vm30, inf, %v348
  %v391 = vsel %vm31, inf, %v349
  %v392 = vsel %vm28, inf, %v355
  %v393 = vsel %vm29, inf, %v354
  %v394 = vmin.f32 %v390, %v344
  %v395 = vmin.f32 %v391, %v345
  %v396 = vmin.f32 %v394, %v392
  %v397 = vmin.f32 %v395, %v393
  %398 = vrot.lane.b32.xlu0 %v344, 127
  %v399 = vpop.permute.xlu0 %398
  %400 = vrot.lane.b32.xlu0 %v345, 127
  %v401 = vpop.permute.xlu0 %400
  %v402 = vsel %vm33, inf, %v399
  %v403 = vsel %vm33, inf, %v401
  %404 = vrot.lane.b32.xlu0 %v344, 1
  %v405 = vpop.permute.xlu0 %404
  %406 = vrot.lane.b32.xlu0 %v345, 1
  %v407 = vpop.permute.xlu0 %406
  %v408 = vsel %vm32, inf, %v405
  %v409 = vsel %vm32, inf, %v407
  %v410 = vmin.f32 %v402, %v344
  %v411 = vmin.f32 %v403, %v345
  %v412 = vmin.f32 %v410, %v408
  %v413 = vmin.f32 %v411, %v409
  %v414 = vmin.f32 %v396, %v412
  %v415 = vmin.f32 %v397, %v413
  %v416 = vrot.slane %v414, 1
  %v417 = vrot.slane %v415, 1
  %v418 = vsel %vm40, %v416, %v417
  %v419 = vsel %vm40, %v417, %v416
  %v420 = vsel %vm30, -inf, %v418
  %v421 = vsel %vm31, -inf, %v419
  %v422 = vrot.slane %v414, 7
  %v423 = vrot.slane %v415, 7
  %v424 = vsel %vm47, %v422, %v423
  %v425 = vsel %vm47, %v423, %v422
  %v426 = vsel %vm28, -inf, %v425
  %v427 = vsel %vm29, -inf, %v424
  %v428 = vmax.f32 %v420, %v414
  %v429 = vmax.f32 %v421, %v415
  %v430 = vmax.f32 %v428, %v426
  %v431 = vmax.f32 %v429, %v427
  %432 = vrot.lane.b32.xlu0 %v430, 127
  %v433 = vpop.permute.xlu0 %432
  %434 = vrot.lane.b32.xlu0 %v431, 127
  %v435 = vpop.permute.xlu0 %434
  %v436 = vsel %vm33, -inf, %v433
  %v437 = vsel %vm33, -inf, %v435
  %438 = vrot.lane.b32.xlu0 %v430, 1
  %v439 = vpop.permute.xlu0 %438
  %440 = vrot.lane.b32.xlu0 %v431, 1
  %v441 = vpop.permute.xlu0 %440
  %v442 = vsel %vm32, -inf, %v439
  %v443 = vsel %vm32, -inf, %v441
  %v444 = vmax.f32 %v436, %v430
  %v445 = vmax.f32 %v437, %v431
  %v446 = vmax.f32 %v444, %v442
  %v447 = vmax.f32 %v445, %v443
  %v448 = vsub.f32 %v344, %v446
  %v449 = vsub.f32 %v345, %v447
  %v450 = vmax.f32 %v448, 0.0
  %v451 = vmax.f32 %v449, 0.0
  %v452 = vmul.f32 %v388, %v450
  %v453 = vmul.f32 %v389, %v451
  %v454 = vsub.f32 %v450, %v452
  %v455 = vsub.f32 %v451, %v453
  %v456 = vmax.f32 %v454, 0.0
  %v457 = vmax.f32 %v455, 0.0
  %v458 = vadd.f32 %v388, %v456
  %v459 = vadd.f32 %v389, %v457
  %v460 = vsel %vm30, inf, %v418
  %v461 = vsel %vm31, inf, %v419
  %v462 = vsel %vm28, inf, %v425
  %v463 = vsel %vm29, inf, %v424
  %v464 = vmin.f32 %v460, %v414
  %v465 = vmin.f32 %v461, %v415
  %v466 = vmin.f32 %v464, %v462
  %v467 = vmin.f32 %v465, %v463
  %468 = vrot.lane.b32.xlu0 %v414, 127
  %v469 = vpop.permute.xlu0 %468
  %470 = vrot.lane.b32.xlu0 %v415, 127
  %v471 = vpop.permute.xlu0 %470
  %v472 = vsel %vm33, inf, %v469
  %v473 = vsel %vm33, inf, %v471
  %474 = vrot.lane.b32.xlu0 %v414, 1
  %v475 = vpop.permute.xlu0 %474
  %476 = vrot.lane.b32.xlu0 %v415, 1
  %v477 = vpop.permute.xlu0 %476
  %v478 = vsel %vm32, inf, %v475
  %v479 = vsel %vm32, inf, %v477
  %v480 = vmin.f32 %v472, %v414
  %v481 = vmin.f32 %v473, %v415
  %v482 = vmin.f32 %v480, %v478
  %v483 = vmin.f32 %v481, %v479
  %v484 = vmin.f32 %v466, %v482
  %v485 = vmin.f32 %v467, %v483
  %v486 = vrot.slane %v484, 1
  %v487 = vrot.slane %v485, 1
  %v488 = vsel %vm40, %v486, %v487
  %v489 = vsel %vm40, %v487, %v486
  %v490 = vsel %vm30, -inf, %v488
  %v491 = vsel %vm31, -inf, %v489
  %v492 = vrot.slane %v484, 7
  %v493 = vrot.slane %v485, 7
  %v494 = vsel %vm47, %v492, %v493
  %v495 = vsel %vm47, %v493, %v492
  %v496 = vsel %vm28, -inf, %v495
  %v497 = vsel %vm29, -inf, %v494
  %v498 = vmax.f32 %v490, %v484
  %v499 = vmax.f32 %v491, %v485
  %v500 = vmax.f32 %v498, %v496
  %v501 = vmax.f32 %v499, %v497
  %502 = vrot.lane.b32.xlu0 %v500, 127
  %v503 = vpop.permute.xlu0 %502
  %504 = vrot.lane.b32.xlu0 %v501, 127
  %v505 = vpop.permute.xlu0 %504
  %v506 = vsel %vm33, -inf, %v503
  %v507 = vsel %vm33, -inf, %v505
  %508 = vrot.lane.b32.xlu0 %v500, 1
  %v509 = vpop.permute.xlu0 %508
  %510 = vrot.lane.b32.xlu0 %v501, 1
  %v511 = vpop.permute.xlu0 %510
  %v512 = vsel %vm32, -inf, %v509
  %v513 = vsel %vm32, -inf, %v511
  %v514 = vmax.f32 %v506, %v500
  %v515 = vmax.f32 %v507, %v501
  %v516 = vmax.f32 %v514, %v512
  %v517 = vmax.f32 %v515, %v513
  %v518 = vsub.f32 %v414, %v516
  %v519 = vsub.f32 %v415, %v517
  %v520 = vmax.f32 %v518, 0.0
  %v521 = vmax.f32 %v519, 0.0
  %v522 = vmul.f32 %v458, %v520
  %v523 = vmul.f32 %v459, %v521
  %v524 = vsub.f32 %v520, %v522
  %v525 = vsub.f32 %v521, %v523
  %v526 = vmax.f32 %v524, 0.0
  %v527 = vmax.f32 %v525, 0.0
  %v528 = vadd.f32 %v458, %v526
  %v529 = vadd.f32 %v459, %v527
  %v530 = vsel %vm30, inf, %v488
  %v531 = vsel %vm31, inf, %v489
  %v532 = vsel %vm28, inf, %v495
  %v533 = vsel %vm29, inf, %v494
  %v534 = vmin.f32 %v530, %v484
  %v535 = vmin.f32 %v531, %v485
  %v536 = vmin.f32 %v534, %v532
  %v537 = vmin.f32 %v535, %v533
  %538 = vrot.lane.b32.xlu0 %v484, 127
  %v539 = vpop.permute.xlu0 %538
  %540 = vrot.lane.b32.xlu0 %v485, 127
  %v541 = vpop.permute.xlu0 %540
  %v542 = vsel %vm33, inf, %v539
  %v543 = vsel %vm33, inf, %v541
  %544 = vrot.lane.b32.xlu0 %v484, 1
  %v545 = vpop.permute.xlu0 %544
  %546 = vrot.lane.b32.xlu0 %v485, 1
  %v547 = vpop.permute.xlu0 %546
  %v548 = vsel %vm32, inf, %v545
  %v549 = vsel %vm32, inf, %v547
  %v550 = vmin.f32 %v542, %v484
  %v551 = vmin.f32 %v543, %v485
  %v552 = vmin.f32 %v550, %v548
  %v553 = vmin.f32 %v551, %v549
  %v554 = vmin.f32 %v536, %v552
  %v555 = vmin.f32 %v537, %v553
  %v556 = vrot.slane %v554, 1
  %v557 = vrot.slane %v555, 1
  %v558 = vsel %vm40, %v556, %v557
  %v559 = vsel %vm40, %v557, %v556
  %v560 = vsel %vm30, -inf, %v558
  %v561 = vsel %vm31, -inf, %v559
  %v562 = vrot.slane %v554, 7
  %v563 = vrot.slane %v555, 7
  %v564 = vsel %vm47, %v562, %v563
  %v565 = vsel %vm47, %v563, %v562
  %v566 = vsel %vm28, -inf, %v565
  %v567 = vsel %vm29, -inf, %v564
  %v568 = vmax.f32 %v560, %v554
  %v569 = vmax.f32 %v561, %v555
  %v570 = vmax.f32 %v568, %v566
  %v571 = vmax.f32 %v569, %v567
  %572 = vrot.lane.b32.xlu0 %v570, 127
  %v573 = vpop.permute.xlu0 %572
  %574 = vrot.lane.b32.xlu0 %v571, 127
  %v575 = vpop.permute.xlu0 %574
  %v576 = vsel %vm33, -inf, %v573
  %v577 = vsel %vm33, -inf, %v575
  %578 = vrot.lane.b32.xlu0 %v570, 1
  %v579 = vpop.permute.xlu0 %578
  %580 = vrot.lane.b32.xlu0 %v571, 1
  %v581 = vpop.permute.xlu0 %580
  %v582 = vsel %vm32, -inf, %v579
  %v583 = vsel %vm32, -inf, %v581
  %v584 = vmax.f32 %v576, %v570
  %v585 = vmax.f32 %v577, %v571
  %v586 = vmax.f32 %v584, %v582
  %v587 = vmax.f32 %v585, %v583
  %v588 = vsub.f32 %v484, %v586
  %v589 = vsub.f32 %v485, %v587
  %v590 = vmax.f32 %v588, 0.0
  %v591 = vmax.f32 %v589, 0.0
  %v592 = vmul.f32 %v528, %v590
  %v593 = vmul.f32 %v529, %v591
  %v594 = vsub.f32 %v590, %v592
  %v595 = vsub.f32 %v591, %v593
  %v596 = vmax.f32 %v594, 0.0
  %v597 = vmax.f32 %v595, 0.0
  %v598 = vadd.f32 %v528, %v596
  %v599 = vadd.f32 %v529, %v597
  %v600 = vsel %vm30, inf, %v558
  %v601 = vsel %vm31, inf, %v559
  %v602 = vsel %vm28, inf, %v565
  %v603 = vsel %vm29, inf, %v564
  %v604 = vmin.f32 %v600, %v554
  %v605 = vmin.f32 %v601, %v555
  %v606 = vmin.f32 %v604, %v602
  %v607 = vmin.f32 %v605, %v603
  %608 = vrot.lane.b32.xlu0 %v554, 127
  %v609 = vpop.permute.xlu0 %608
  %610 = vrot.lane.b32.xlu0 %v555, 127
  %v611 = vpop.permute.xlu0 %610
  %v612 = vsel %vm33, inf, %v609
  %v613 = vsel %vm33, inf, %v611
  %614 = vrot.lane.b32.xlu0 %v554, 1
  %v615 = vpop.permute.xlu0 %614
  %616 = vrot.lane.b32.xlu0 %v555, 1
  %v617 = vpop.permute.xlu0 %616
  %v618 = vsel %vm32, inf, %v615
  %v619 = vsel %vm32, inf, %v617
  %v620 = vmin.f32 %v612, %v554
  %v621 = vmin.f32 %v613, %v555
  %v622 = vmin.f32 %v620, %v618
  %v623 = vmin.f32 %v621, %v619
  %v624 = vmin.f32 %v606, %v622
  %v625 = vmin.f32 %v607, %v623
  %v626 = vrot.slane %v624, 1
  %v627 = vrot.slane %v625, 1
  %v628 = vsel %vm40, %v626, %v627
  %v629 = vsel %vm40, %v627, %v626
  %v630 = vsel %vm30, -inf, %v628
  %v631 = vsel %vm31, -inf, %v629
  %v632 = vrot.slane %v624, 7
  %v633 = vrot.slane %v625, 7
  %v634 = vsel %vm47, %v632, %v633
  %v635 = vsel %vm47, %v633, %v632
  %v636 = vsel %vm28, -inf, %v635
  %v637 = vsel %vm29, -inf, %v634
  %v638 = vmax.f32 %v630, %v624
  %v639 = vmax.f32 %v631, %v625
  %v640 = vmax.f32 %v638, %v636
  %v641 = vmax.f32 %v639, %v637
  %642 = vrot.lane.b32.xlu0 %v640, 127
  %v643 = vpop.permute.xlu0 %642
  %644 = vrot.lane.b32.xlu0 %v641, 127
  %v645 = vpop.permute.xlu0 %644
  %v646 = vsel %vm33, -inf, %v643
  %v647 = vsel %vm33, -inf, %v645
  %648 = vrot.lane.b32.xlu0 %v640, 1
  %v649 = vpop.permute.xlu0 %648
  %650 = vrot.lane.b32.xlu0 %v641, 1
  %v651 = vpop.permute.xlu0 %650
  %v652 = vsel %vm32, -inf, %v649
  %v653 = vsel %vm32, -inf, %v651
  %v654 = vmax.f32 %v646, %v640
  %v655 = vmax.f32 %v647, %v641
  %v656 = vmax.f32 %v654, %v652
  %v657 = vmax.f32 %v655, %v653
  %v658 = vsub.f32 %v554, %v656
  %v659 = vsub.f32 %v555, %v657
  %v660 = vmax.f32 %v658, 0.0
  %v661 = vmax.f32 %v659, 0.0
  %v662 = vmul.f32 %v598, %v660
  %v663 = vmul.f32 %v599, %v661
  %v664 = vsub.f32 %v660, %v662
  %v665 = vsub.f32 %v661, %v663
  %v666 = vmax.f32 %v664, 0.0
  %v667 = vmax.f32 %v665, 0.0
  %v668 = vadd.f32 %v598, %v666
  %v669 = vadd.f32 %v599, %v667
  %v670 = vsel %vm30, inf, %v628
  %v671 = vsel %vm31, inf, %v629
  %v672 = vsel %vm28, inf, %v635
  %v673 = vsel %vm29, inf, %v634
  %v674 = vmin.f32 %v670, %v624
  %v675 = vmin.f32 %v671, %v625
  %v676 = vmin.f32 %v674, %v672
  %v677 = vmin.f32 %v675, %v673
  %678 = vrot.lane.b32.xlu0 %v624, 127
  %v679 = vpop.permute.xlu0 %678
  %680 = vrot.lane.b32.xlu0 %v625, 127
  %v681 = vpop.permute.xlu0 %680
  %v682 = vsel %vm33, inf, %v679
  %v683 = vsel %vm33, inf, %v681
  %684 = vrot.lane.b32.xlu0 %v624, 1
  %v685 = vpop.permute.xlu0 %684
  %686 = vrot.lane.b32.xlu0 %v625, 1
  %v687 = vpop.permute.xlu0 %686
  %v688 = vsel %vm32, inf, %v685
  %v689 = vsel %vm32, inf, %v687
  %v690 = vmin.f32 %v682, %v624
  %v691 = vmin.f32 %v683, %v625
  %v692 = vmin.f32 %v690, %v688
  %v693 = vmin.f32 %v691, %v689
  %v694 = vmin.f32 %v676, %v692
  %v695 = vmin.f32 %v677, %v693
  %v696 = vrot.slane %v694, 1
  %v697 = vrot.slane %v695, 1
  %v698 = vsel %vm40, %v696, %v697
  %v699 = vsel %vm40, %v697, %v696
  %v700 = vsel %vm30, -inf, %v698
  %v701 = vsel %vm31, -inf, %v699
  %v702 = vrot.slane %v694, 7
  %v703 = vrot.slane %v695, 7
  %v704 = vsel %vm47, %v702, %v703
  %v705 = vsel %vm47, %v703, %v702
  %v706 = vsel %vm28, -inf, %v705
  %v707 = vsel %vm29, -inf, %v704
  %v708 = vmax.f32 %v700, %v694
  %v709 = vmax.f32 %v701, %v695
  %v710 = vmax.f32 %v708, %v706
  %v711 = vmax.f32 %v709, %v707
  %712 = vrot.lane.b32.xlu0 %v710, 127
  %v713 = vpop.permute.xlu0 %712
  %714 = vrot.lane.b32.xlu0 %v711, 127
  %v715 = vpop.permute.xlu0 %714
  %v716 = vsel %vm33, -inf, %v713
  %v717 = vsel %vm33, -inf, %v715
  %718 = vrot.lane.b32.xlu0 %v710, 1
  %v719 = vpop.permute.xlu0 %718
  %720 = vrot.lane.b32.xlu0 %v711, 1
  %v721 = vpop.permute.xlu0 %720
  %v722 = vsel %vm32, -inf, %v719
  %v723 = vsel %vm32, -inf, %v721
  %v724 = vmax.f32 %v716, %v710
  %v725 = vmax.f32 %v717, %v711
  %v726 = vmax.f32 %v724, %v722
  %v727 = vmax.f32 %v725, %v723
  %v728 = vsub.f32 %v624, %v726
  %v729 = vsub.f32 %v625, %v727
  %v730 = vmax.f32 %v728, 0.0
  %v731 = vmax.f32 %v729, 0.0
  %v732 = vmul.f32 %v668, %v730
  %v733 = vmul.f32 %v669, %v731
  %v734 = vsub.f32 %v730, %v732
  %v735 = vsub.f32 %v731, %v733
  %v736 = vmax.f32 %v734, 0.0
  %v737 = vmax.f32 %v735, 0.0
  %v738 = vadd.f32 %v668, %v736
  %v739 = vadd.f32 %v669, %v737
  %v740 = vsel %vm30, inf, %v698
  %v741 = vsel %vm31, inf, %v699
  %v742 = vsel %vm28, inf, %v705
  %v743 = vsel %vm29, inf, %v704
  %v744 = vmin.f32 %v740, %v694
  %v745 = vmin.f32 %v741, %v695
  %v746 = vmin.f32 %v744, %v742
  %v747 = vmin.f32 %v745, %v743
  %748 = vrot.lane.b32.xlu0 %v694, 127
  %v749 = vpop.permute.xlu0 %748
  %750 = vrot.lane.b32.xlu0 %v695, 127
  %v751 = vpop.permute.xlu0 %750
  %v752 = vsel %vm33, inf, %v749
  %v753 = vsel %vm33, inf, %v751
  %754 = vrot.lane.b32.xlu0 %v694, 1
  %v755 = vpop.permute.xlu0 %754
  %756 = vrot.lane.b32.xlu0 %v695, 1
  %v757 = vpop.permute.xlu0 %756
  %v758 = vsel %vm32, inf, %v755
  %v759 = vsel %vm32, inf, %v757
  %v760 = vmin.f32 %v752, %v694
  %v761 = vmin.f32 %v753, %v695
  %v762 = vmin.f32 %v760, %v758
  %v763 = vmin.f32 %v761, %v759
  %v764 = vmin.f32 %v746, %v762
  %v765 = vmin.f32 %v747, %v763
  %v766 = vrot.slane %v764, 1
  %v767 = vrot.slane %v765, 1
  %v768 = vsel %vm40, %v766, %v767
  %v769 = vsel %vm40, %v767, %v766
  %v770 = vsel %vm30, -inf, %v768
  %v771 = vsel %vm31, -inf, %v769
  %v772 = vrot.slane %v764, 7
  %v773 = vrot.slane %v765, 7
  %v774 = vsel %vm47, %v772, %v773
  %v775 = vsel %vm47, %v773, %v772
  %v776 = vsel %vm28, -inf, %v775
  %v777 = vsel %vm29, -inf, %v774
  %v778 = vmax.f32 %v770, %v764
  %v779 = vmax.f32 %v771, %v765
  %v780 = vmax.f32 %v778, %v776
  %v781 = vmax.f32 %v779, %v777
  %782 = vrot.lane.b32.xlu0 %v780, 127
  %v783 = vpop.permute.xlu0 %782
  %784 = vrot.lane.b32.xlu0 %v781, 127
  %v785 = vpop.permute.xlu0 %784
  %v786 = vsel %vm33, -inf, %v783
  %v787 = vsel %vm33, -inf, %v785
  %788 = vrot.lane.b32.xlu0 %v780, 1
  %v789 = vpop.permute.xlu0 %788
  %790 = vrot.lane.b32.xlu0 %v781, 1
  %v791 = vpop.permute.xlu0 %790
  %v792 = vsel %vm32, -inf, %v789
  %v793 = vsel %vm32, -inf, %v791
  %v794 = vmax.f32 %v786, %v780
  %v795 = vmax.f32 %v787, %v781
  %v796 = vmax.f32 %v794, %v792
  %v797 = vmax.f32 %v795, %v793
  %v798 = vsub.f32 %v694, %v796
  %v799 = vsub.f32 %v695, %v797
  %v800 = vmax.f32 %v798, 0.0
  %v801 = vmax.f32 %v799, 0.0
  %v802 = vmul.f32 %v738, %v800
  %v803 = vmul.f32 %v739, %v801
  %v804 = vsub.f32 %v800, %v802
  %v805 = vsub.f32 %v801, %v803
  %v806 = vmax.f32 %v804, 0.0
  %v807 = vmax.f32 %v805, 0.0
  %v808 = vadd.f32 %v738, %v806
  %v809 = vadd.f32 %v739, %v807
  %v810 = vrot.slane %v36, 1
  %v811 = vrot.slane %v37, 1
  %v812 = vsel %vm40, %v810, %v811
  %v813 = vsel %vm40, %v811, %v810
  %v814 = vsel %vm30, inf, %v812
  %v815 = vsel %vm31, inf, %v813
  %v816 = vrot.slane %v36, 7
  %v817 = vrot.slane %v37, 7
  %v818 = vsel %vm47, %v816, %v817
  %v819 = vsel %vm47, %v817, %v816
  %v820 = vsel %vm28, inf, %v819
  %v821 = vsel %vm29, inf, %v818
  %v822 = vmin.f32 %v814, %v36
  %v823 = vmin.f32 %v815, %v37
  %v824 = vmin.f32 %v822, %v820
  %v825 = vmin.f32 %v823, %v821
  %826 = vrot.lane.b32.xlu0 %v36, 127
  %v827 = vpop.permute.xlu0 %826
  %828 = vrot.lane.b32.xlu0 %v37, 127
  %v829 = vpop.permute.xlu0 %828
  %v830 = vsel %vm33, inf, %v827
  %v831 = vsel %vm33, inf, %v829
  %832 = vrot.lane.b32.xlu0 %v36, 1
  %v833 = vpop.permute.xlu0 %832
  %834 = vrot.lane.b32.xlu0 %v37, 1
  %v835 = vpop.permute.xlu0 %834
  %v836 = vsel %vm32, inf, %v833
  %v837 = vsel %vm32, inf, %v835
  %v838 = vmin.f32 %v830, %v36
  %v839 = vmin.f32 %v831, %v37
  %v840 = vmin.f32 %v838, %v836
  %v841 = vmin.f32 %v839, %v837
  %v842 = vmin.f32 %v824, %v840
  %v843 = vmin.f32 %v825, %v841
  %v844 = vrot.slane %v842, 1
  %v845 = vrot.slane %v843, 1
  %v846 = vsel %vm40, %v844, %v845
  %v847 = vsel %vm40, %v845, %v844
  %v848 = vsel %vm30, -inf, %v846
  %v849 = vsel %vm31, -inf, %v847
  %v850 = vrot.slane %v842, 7
  %v851 = vrot.slane %v843, 7
  %v852 = vsel %vm47, %v850, %v851
  %v853 = vsel %vm47, %v851, %v850
  %v854 = vsel %vm28, -inf, %v853
  %v855 = vsel %vm29, -inf, %v852
  %v856 = vmax.f32 %v848, %v842
  %v857 = vmax.f32 %v849, %v843
  %v858 = vmax.f32 %v856, %v854
  %v859 = vmax.f32 %v857, %v855
  %860 = vrot.lane.b32.xlu0 %v858, 127
  %v861 = vpop.permute.xlu0 %860
  %862 = vrot.lane.b32.xlu0 %v859, 127
  %v863 = vpop.permute.xlu0 %862
  %v864 = vsel %vm33, -inf, %v861
  %v865 = vsel %vm33, -inf, %v863
  %866 = vrot.lane.b32.xlu0 %v858, 1
  %v867 = vpop.permute.xlu0 %866
  %868 = vrot.lane.b32.xlu0 %v859, 1
  %v869 = vpop.permute.xlu0 %868
  %v870 = vsel %vm32, -inf, %v867
  %v871 = vsel %vm32, -inf, %v869
  %v872 = vmax.f32 %v864, %v858
  %v873 = vmax.f32 %v865, %v859
  %v874 = vmax.f32 %v872, %v870
  %v875 = vmax.f32 %v873, %v871
  %v876 = vsub.f32 %v36, %v874
  %v877 = vsub.f32 %v37, %v875
  %v878 = vmax.f32 %v876, 0.0
  %v879 = vmax.f32 %v877, 0.0
  %v880 = vsel %vm30, inf, %v846
  %v881 = vsel %vm31, inf, %v847
  %v882 = vsel %vm28, inf, %v853
  %v883 = vsel %vm29, inf, %v852
  %v884 = vmin.f32 %v880, %v842
  %v885 = vmin.f32 %v881, %v843
  %v886 = vmin.f32 %v884, %v882
  %v887 = vmin.f32 %v885, %v883
  %888 = vrot.lane.b32.xlu0 %v842, 127
  %v889 = vpop.permute.xlu0 %888
  %890 = vrot.lane.b32.xlu0 %v843, 127
  %v891 = vpop.permute.xlu0 %890
  %v892 = vsel %vm33, inf, %v889
  %v893 = vsel %vm33, inf, %v891
  %894 = vrot.lane.b32.xlu0 %v842, 1
  %v895 = vpop.permute.xlu0 %894
  %896 = vrot.lane.b32.xlu0 %v843, 1
  %v897 = vpop.permute.xlu0 %896
  %v898 = vsel %vm32, inf, %v895
  %v899 = vsel %vm32, inf, %v897
  %v900 = vmin.f32 %v892, %v842
  %v901 = vmin.f32 %v893, %v843
  %v902 = vmin.f32 %v900, %v898
  %v903 = vmin.f32 %v901, %v899
  %v904 = vmin.f32 %v886, %v902
  %v905 = vmin.f32 %v887, %v903
  %v906 = vrot.slane %v904, 1
  %v907 = vrot.slane %v905, 1
  %v908 = vsel %vm40, %v906, %v907
  %v909 = vsel %vm40, %v907, %v906
  %v910 = vsel %vm30, -inf, %v908
  %v911 = vsel %vm31, -inf, %v909
  %v912 = vrot.slane %v904, 7
  %v913 = vrot.slane %v905, 7
  %v914 = vsel %vm47, %v912, %v913
  %v915 = vsel %vm47, %v913, %v912
  %v916 = vsel %vm28, -inf, %v915
  %v917 = vsel %vm29, -inf, %v914
  %v918 = vmax.f32 %v910, %v904
  %v919 = vmax.f32 %v911, %v905
  %v920 = vmax.f32 %v918, %v916
  %v921 = vmax.f32 %v919, %v917
  %922 = vrot.lane.b32.xlu0 %v920, 127
  %v923 = vpop.permute.xlu0 %922
  %924 = vrot.lane.b32.xlu0 %v921, 127
  %v925 = vpop.permute.xlu0 %924
  %v926 = vsel %vm33, -inf, %v923
  %v927 = vsel %vm33, -inf, %v925
  %928 = vrot.lane.b32.xlu0 %v920, 1
  %v929 = vpop.permute.xlu0 %928
  %930 = vrot.lane.b32.xlu0 %v921, 1
  %v931 = vpop.permute.xlu0 %930
  %v932 = vsel %vm32, -inf, %v929
  %v933 = vsel %vm32, -inf, %v931
  %v934 = vmax.f32 %v926, %v920
  %v935 = vmax.f32 %v927, %v921
  %v936 = vmax.f32 %v934, %v932
  %v937 = vmax.f32 %v935, %v933
  %v938 = vsub.f32 %v842, %v936
  %v939 = vsub.f32 %v843, %v937
  %v940 = vmax.f32 %v938, 0.0
  %v941 = vmax.f32 %v939, 0.0
  %v942 = vmul.f32 %v878, %v940
  %v943 = vmul.f32 %v879, %v941
  %v944 = vsub.f32 %v940, %v942
  %v945 = vsub.f32 %v941, %v943
  %v946 = vmax.f32 %v944, 0.0
  %v947 = vmax.f32 %v945, 0.0
  %v948 = vadd.f32 %v878, %v946
  %v949 = vadd.f32 %v879, %v947
  %v950 = vsel %vm30, inf, %v908
  %v951 = vsel %vm31, inf, %v909
  %v952 = vsel %vm28, inf, %v915
  %v953 = vsel %vm29, inf, %v914
  %v954 = vmin.f32 %v950, %v904
  %v955 = vmin.f32 %v951, %v905
  %v956 = vmin.f32 %v954, %v952
  %v957 = vmin.f32 %v955, %v953
  %958 = vrot.lane.b32.xlu0 %v904, 127
  %v959 = vpop.permute.xlu0 %958
  %960 = vrot.lane.b32.xlu0 %v905, 127
  %v961 = vpop.permute.xlu0 %960
  %v962 = vsel %vm33, inf, %v959
  %v963 = vsel %vm33, inf, %v961
  %964 = vrot.lane.b32.xlu0 %v904, 1
  %v965 = vpop.permute.xlu0 %964
  %966 = vrot.lane.b32.xlu0 %v905, 1
  %v967 = vpop.permute.xlu0 %966
  %v968 = vsel %vm32, inf, %v965
  %v969 = vsel %vm32, inf, %v967
  %v970 = vmin.f32 %v962, %v904
  %v971 = vmin.f32 %v963, %v905
  %v972 = vmin.f32 %v970, %v968
  %v973 = vmin.f32 %v971, %v969
  %v974 = vmin.f32 %v956, %v972
  %v975 = vmin.f32 %v957, %v973
  %v976 = vrot.slane %v974, 1
  %v977 = vrot.slane %v975, 1
  %v978 = vsel %vm40, %v976, %v977
  %v979 = vsel %vm40, %v977, %v976
  %v980 = vsel %vm30, -inf, %v978
  %v981 = vsel %vm31, -inf, %v979
  %v982 = vrot.slane %v974, 7
  %v983 = vrot.slane %v975, 7
  %v984 = vsel %vm47, %v982, %v983
  %v985 = vsel %vm47, %v983, %v982
  %v986 = vsel %vm28, -inf, %v985
  %v987 = vsel %vm29, -inf, %v984
  %v988 = vmax.f32 %v980, %v974
  %v989 = vmax.f32 %v981, %v975
  %v990 = vmax.f32 %v988, %v986
  %v991 = vmax.f32 %v989, %v987
  %992 = vrot.lane.b32.xlu0 %v990, 127
  %v993 = vpop.permute.xlu0 %992
  %994 = vrot.lane.b32.xlu0 %v991, 127
  %v995 = vpop.permute.xlu0 %994
  %v996 = vsel %vm33, -inf, %v993
  %v997 = vsel %vm33, -inf, %v995
  %998 = vrot.lane.b32.xlu0 %v990, 1
  %v999 = vpop.permute.xlu0 %998
  %1000 = vrot.lane.b32.xlu0 %v991, 1
  %v1001 = vpop.permute.xlu0 %1000
  %v1002 = vsel %vm32, -inf, %v999
  %v1003 = vsel %vm32, -inf, %v1001
  %v1004 = vmax.f32 %v996, %v990
  %v1005 = vmax.f32 %v997, %v991
  %v1006 = vmax.f32 %v1004, %v1002
  %v1007 = vmax.f32 %v1005, %v1003
  %v1008 = vsub.f32 %v904, %v1006
  %v1009 = vsub.f32 %v905, %v1007
  %v1010 = vmax.f32 %v1008, 0.0
  %v1011 = vmax.f32 %v1009, 0.0
  %v1012 = vmul.f32 %v948, %v1010
  %v1013 = vmul.f32 %v949, %v1011
  %v1014 = vsub.f32 %v1010, %v1012
  %v1015 = vsub.f32 %v1011, %v1013
  %v1016 = vmax.f32 %v1014, 0.0
  %v1017 = vmax.f32 %v1015, 0.0
  %v1018 = vadd.f32 %v948, %v1016
  %v1019 = vadd.f32 %v949, %v1017
  %v1020 = vsel %vm30, inf, %v978
  %v1021 = vsel %vm31, inf, %v979
  %v1022 = vsel %vm28, inf, %v985
  %v1023 = vsel %vm29, inf, %v984
  %v1024 = vmin.f32 %v1020, %v974
  %v1025 = vmin.f32 %v1021, %v975
  %v1026 = vmin.f32 %v1024, %v1022
  %v1027 = vmin.f32 %v1025, %v1023
  %1028 = vrot.lane.b32.xlu0 %v974, 127
  %v1029 = vpop.permute.xlu0 %1028
  %1030 = vrot.lane.b32.xlu0 %v975, 127
  %v1031 = vpop.permute.xlu0 %1030
  %v1032 = vsel %vm33, inf, %v1029
  %v1033 = vsel %vm33, inf, %v1031
  %1034 = vrot.lane.b32.xlu0 %v974, 1
  %v1035 = vpop.permute.xlu0 %1034
  %1036 = vrot.lane.b32.xlu0 %v975, 1
  %v1037 = vpop.permute.xlu0 %1036
  %v1038 = vsel %vm32, inf, %v1035
  %v1039 = vsel %vm32, inf, %v1037
  %v1040 = vmin.f32 %v1032, %v974
  %v1041 = vmin.f32 %v1033, %v975
  %v1042 = vmin.f32 %v1040, %v1038
  %v1043 = vmin.f32 %v1041, %v1039
  %v1044 = vmin.f32 %v1026, %v1042
  %v1045 = vmin.f32 %v1027, %v1043
  %v1046 = vrot.slane %v1044, 1
  %v1047 = vrot.slane %v1045, 1
  %v1048 = vsel %vm40, %v1046, %v1047
  %v1049 = vsel %vm40, %v1047, %v1046
  %v1050 = vsel %vm30, -inf, %v1048
  %v1051 = vsel %vm31, -inf, %v1049
  %v1052 = vrot.slane %v1044, 7
  %v1053 = vrot.slane %v1045, 7
  %v1054 = vsel %vm47, %v1052, %v1053
  %v1055 = vsel %vm47, %v1053, %v1052
  %v1056 = vsel %vm28, -inf, %v1055
  %v1057 = vsel %vm29, -inf, %v1054
  %v1058 = vmax.f32 %v1050, %v1044
  %v1059 = vmax.f32 %v1051, %v1045
  %v1060 = vmax.f32 %v1058, %v1056
  %v1061 = vmax.f32 %v1059, %v1057
  %1062 = vrot.lane.b32.xlu0 %v1060, 127
  %v1063 = vpop.permute.xlu0 %1062
  %1064 = vrot.lane.b32.xlu0 %v1061, 127
  %v1065 = vpop.permute.xlu0 %1064
  %v1066 = vsel %vm33, -inf, %v1063
  %v1067 = vsel %vm33, -inf, %v1065
  %1068 = vrot.lane.b32.xlu0 %v1060, 1
  %v1069 = vpop.permute.xlu0 %1068
  %1070 = vrot.lane.b32.xlu0 %v1061, 1
  %v1071 = vpop.permute.xlu0 %1070
  %v1072 = vsel %vm32, -inf, %v1069
  %v1073 = vsel %vm32, -inf, %v1071
  %v1074 = vmax.f32 %v1066, %v1060
  %v1075 = vmax.f32 %v1067, %v1061
  %v1076 = vmax.f32 %v1074, %v1072
  %v1077 = vmax.f32 %v1075, %v1073
  %v1078 = vsub.f32 %v974, %v1076
  %v1079 = vsub.f32 %v975, %v1077
  %v1080 = vmax.f32 %v1078, 0.0
  %v1081 = vmax.f32 %v1079, 0.0
  %v1082 = vmul.f32 %v1018, %v1080
  %v1083 = vmul.f32 %v1019, %v1081
  %v1084 = vsub.f32 %v1080, %v1082
  %v1085 = vsub.f32 %v1081, %v1083
  %v1086 = vmax.f32 %v1084, 0.0
  %v1087 = vmax.f32 %v1085, 0.0
  %v1088 = vadd.f32 %v1018, %v1086
  %v1089 = vadd.f32 %v1019, %v1087
  %v1090 = vsel %vm30, inf, %v1048
  %v1091 = vsel %vm31, inf, %v1049
  %v1092 = vsel %vm28, inf, %v1055
  %v1093 = vsel %vm29, inf, %v1054
  %v1094 = vmin.f32 %v1090, %v1044
  %v1095 = vmin.f32 %v1091, %v1045
  %v1096 = vmin.f32 %v1094, %v1092
  %v1097 = vmin.f32 %v1095, %v1093
  %1098 = vrot.lane.b32.xlu0 %v1044, 127
  %v1099 = vpop.permute.xlu0 %1098
  %1100 = vrot.lane.b32.xlu0 %v1045, 127
  %v1101 = vpop.permute.xlu0 %1100
  %v1102 = vsel %vm33, inf, %v1099
  %v1103 = vsel %vm33, inf, %v1101
  %1104 = vrot.lane.b32.xlu0 %v1044, 1
  %v1105 = vpop.permute.xlu0 %1104
  %1106 = vrot.lane.b32.xlu0 %v1045, 1
  %v1107 = vpop.permute.xlu0 %1106
  %v1108 = vsel %vm32, inf, %v1105
  %v1109 = vsel %vm32, inf, %v1107
  %v1110 = vmin.f32 %v1102, %v1044
  %v1111 = vmin.f32 %v1103, %v1045
  %v1112 = vmin.f32 %v1110, %v1108
  %v1113 = vmin.f32 %v1111, %v1109
  %v1114 = vmin.f32 %v1096, %v1112
  %v1115 = vmin.f32 %v1097, %v1113
  %v1116 = vrot.slane %v1114, 1
  %v1117 = vrot.slane %v1115, 1
  %v1118 = vsel %vm40, %v1116, %v1117
  %v1119 = vsel %vm40, %v1117, %v1116
  %v1120 = vsel %vm30, -inf, %v1118
  %v1121 = vsel %vm31, -inf, %v1119
  %v1122 = vrot.slane %v1114, 7
  %v1123 = vrot.slane %v1115, 7
  %v1124 = vsel %vm47, %v1122, %v1123
  %v1125 = vsel %vm47, %v1123, %v1122
  %v1126 = vsel %vm28, -inf, %v1125
  %v1127 = vsel %vm29, -inf, %v1124
  %v1128 = vmax.f32 %v1120, %v1114
  %v1129 = vmax.f32 %v1121, %v1115
  %v1130 = vmax.f32 %v1128, %v1126
  %v1131 = vmax.f32 %v1129, %v1127
  %1132 = vrot.lane.b32.xlu0 %v1130, 127
  %v1133 = vpop.permute.xlu0 %1132
  %1134 = vrot.lane.b32.xlu0 %v1131, 127
  %v1135 = vpop.permute.xlu0 %1134
  %v1136 = vsel %vm33, -inf, %v1133
  %v1137 = vsel %vm33, -inf, %v1135
  %1138 = vrot.lane.b32.xlu0 %v1130, 1
  %v1139 = vpop.permute.xlu0 %1138
  %1140 = vrot.lane.b32.xlu0 %v1131, 1
  %v1141 = vpop.permute.xlu0 %1140
  %v1142 = vsel %vm32, -inf, %v1139
  %v1143 = vsel %vm32, -inf, %v1141
  %v1144 = vmax.f32 %v1136, %v1130
  %v1145 = vmax.f32 %v1137, %v1131
  %v1146 = vmax.f32 %v1144, %v1142
  %v1147 = vmax.f32 %v1145, %v1143
  %v1148 = vsub.f32 %v1044, %v1146
  %v1149 = vsub.f32 %v1045, %v1147
  %v1150 = vmax.f32 %v1148, 0.0
  %v1151 = vmax.f32 %v1149, 0.0
  %v1152 = vmul.f32 %v1088, %v1150
  %v1153 = vmul.f32 %v1089, %v1151
  %v1154 = vsub.f32 %v1150, %v1152
  %v1155 = vsub.f32 %v1151, %v1153
  %v1156 = vmax.f32 %v1154, 0.0
  %v1157 = vmax.f32 %v1155, 0.0
  %v1158 = vadd.f32 %v1088, %v1156
  %v1159 = vadd.f32 %v1089, %v1157
  %v1160 = vsel %vm30, inf, %v1118
  %v1161 = vsel %vm31, inf, %v1119
  %v1162 = vsel %vm28, inf, %v1125
  %v1163 = vsel %vm29, inf, %v1124
  %v1164 = vmin.f32 %v1160, %v1114
  %v1165 = vmin.f32 %v1161, %v1115
  %v1166 = vmin.f32 %v1164, %v1162
  %v1167 = vmin.f32 %v1165, %v1163
  %1168 = vrot.lane.b32.xlu0 %v1114, 127
  %v1169 = vpop.permute.xlu0 %1168
  %1170 = vrot.lane.b32.xlu0 %v1115, 127
  %v1171 = vpop.permute.xlu0 %1170
  %v1172 = vsel %vm33, inf, %v1169
  %v1173 = vsel %vm33, inf, %v1171
  %1174 = vrot.lane.b32.xlu0 %v1114, 1
  %v1175 = vpop.permute.xlu0 %1174
  %1176 = vrot.lane.b32.xlu0 %v1115, 1
  %v1177 = vpop.permute.xlu0 %1176
  %v1178 = vsel %vm32, inf, %v1175
  %v1179 = vsel %vm32, inf, %v1177
  %v1180 = vmin.f32 %v1172, %v1114
  %v1181 = vmin.f32 %v1173, %v1115
  %v1182 = vmin.f32 %v1180, %v1178
  %v1183 = vmin.f32 %v1181, %v1179
  %v1184 = vmin.f32 %v1166, %v1182
  %v1185 = vmin.f32 %v1167, %v1183
  %v1186 = vrot.slane %v1184, 1
  %v1187 = vrot.slane %v1185, 1
  %v1188 = vsel %vm40, %v1186, %v1187
  %v1189 = vsel %vm40, %v1187, %v1186
  %v1190 = vsel %vm30, -inf, %v1188
  %v1191 = vsel %vm31, -inf, %v1189
  %v1192 = vrot.slane %v1184, 7
  %v1193 = vrot.slane %v1185, 7
  %v1194 = vsel %vm47, %v1192, %v1193
  %v1195 = vsel %vm47, %v1193, %v1192
  %v1196 = vsel %vm28, -inf, %v1195
  %v1197 = vsel %vm29, -inf, %v1194
  %v1198 = vmax.f32 %v1190, %v1184
  %v1199 = vmax.f32 %v1191, %v1185
  %v1200 = vmax.f32 %v1198, %v1196
  %v1201 = vmax.f32 %v1199, %v1197
  %1202 = vrot.lane.b32.xlu0 %v1200, 127
  %v1203 = vpop.permute.xlu0 %1202
  %1204 = vrot.lane.b32.xlu0 %v1201, 127
  %v1205 = vpop.permute.xlu0 %1204
  %v1206 = vsel %vm33, -inf, %v1203
  %v1207 = vsel %vm33, -inf, %v1205
  %1208 = vrot.lane.b32.xlu0 %v1200, 1
  %v1209 = vpop.permute.xlu0 %1208
  %1210 = vrot.lane.b32.xlu0 %v1201, 1
  %v1211 = vpop.permute.xlu0 %1210
  %v1212 = vsel %vm32, -inf, %v1209
  %v1213 = vsel %vm32, -inf, %v1211
  %v1214 = vmax.f32 %v1206, %v1200
  %v1215 = vmax.f32 %v1207, %v1201
  %v1216 = vmax.f32 %v1214, %v1212
  %v1217 = vmax.f32 %v1215, %v1213
  %v1218 = vsub.f32 %v1114, %v1216
  %v1219 = vsub.f32 %v1115, %v1217
  %v1220 = vmax.f32 %v1218, 0.0
  %v1221 = vmax.f32 %v1219, 0.0
  %v1222 = vmul.f32 %v1158, %v1220
  %v1223 = vmul.f32 %v1159, %v1221
  %v1224 = vsub.f32 %v1220, %v1222
  %v1225 = vsub.f32 %v1221, %v1223
  %v1226 = vmax.f32 %v1224, 0.0
  %v1227 = vmax.f32 %v1225, 0.0
  %v1228 = vadd.f32 %v1158, %v1226
  %v1229 = vadd.f32 %v1159, %v1227
  %v1230 = vsel %vm30, inf, %v1188
  %v1231 = vsel %vm31, inf, %v1189
  %v1232 = vsel %vm28, inf, %v1195
  %v1233 = vsel %vm29, inf, %v1194
  %v1234 = vmin.f32 %v1230, %v1184
  %v1235 = vmin.f32 %v1231, %v1185
  %v1236 = vmin.f32 %v1234, %v1232
  %v1237 = vmin.f32 %v1235, %v1233
  %1238 = vrot.lane.b32.xlu0 %v1184, 127
  %v1239 = vpop.permute.xlu0 %1238
  %1240 = vrot.lane.b32.xlu0 %v1185, 127
  %v1241 = vpop.permute.xlu0 %1240
  %v1242 = vsel %vm33, inf, %v1239
  %v1243 = vsel %vm33, inf, %v1241
  %1244 = vrot.lane.b32.xlu0 %v1184, 1
  %v1245 = vpop.permute.xlu0 %1244
  %1246 = vrot.lane.b32.xlu0 %v1185, 1
  %v1247 = vpop.permute.xlu0 %1246
  %v1248 = vsel %vm32, inf, %v1245
  %v1249 = vsel %vm32, inf, %v1247
  %v1250 = vmin.f32 %v1242, %v1184
  %v1251 = vmin.f32 %v1243, %v1185
  %v1252 = vmin.f32 %v1250, %v1248
  %v1253 = vmin.f32 %v1251, %v1249
  %v1254 = vmin.f32 %v1236, %v1252
  %v1255 = vmin.f32 %v1237, %v1253
  %v1256 = vrot.slane %v1254, 1
  %v1257 = vrot.slane %v1255, 1
  %v1258 = vsel %vm40, %v1256, %v1257
  %v1259 = vsel %vm40, %v1257, %v1256
  %v1260 = vsel %vm30, -inf, %v1258
  %v1261 = vsel %vm31, -inf, %v1259
  %v1262 = vrot.slane %v1254, 7
  %v1263 = vrot.slane %v1255, 7
  %v1264 = vsel %vm47, %v1262, %v1263
  %v1265 = vsel %vm47, %v1263, %v1262
  %v1266 = vsel %vm28, -inf, %v1265
  %v1267 = vsel %vm29, -inf, %v1264
  %v1268 = vmax.f32 %v1260, %v1254
  %v1269 = vmax.f32 %v1261, %v1255
  %v1270 = vmax.f32 %v1268, %v1266
  %v1271 = vmax.f32 %v1269, %v1267
  %1272 = vrot.lane.b32.xlu0 %v1270, 127
  %v1273 = vpop.permute.xlu0 %1272
  %1274 = vrot.lane.b32.xlu0 %v1271, 127
  %v1275 = vpop.permute.xlu0 %1274
  %v1276 = vsel %vm33, -inf, %v1273
  %v1277 = vsel %vm33, -inf, %v1275
  %1278 = vrot.lane.b32.xlu0 %v1270, 1
  %v1279 = vpop.permute.xlu0 %1278
  %1280 = vrot.lane.b32.xlu0 %v1271, 1
  %v1281 = vpop.permute.xlu0 %1280
  %v1282 = vsel %vm32, -inf, %v1279
  %v1283 = vsel %vm32, -inf, %v1281
  %v1284 = vmax.f32 %v1276, %v1270
  %v1285 = vmax.f32 %v1277, %v1271
  %v1286 = vmax.f32 %v1284, %v1282
  %v1287 = vmax.f32 %v1285, %v1283
  %v1288 = vsub.f32 %v1184, %v1286
  %v1289 = vsub.f32 %v1185, %v1287
  %v1290 = vmax.f32 %v1288, 0.0
  %v1291 = vmax.f32 %v1289, 0.0
  %v1292 = vmul.f32 %v1228, %v1290
  %v1293 = vmul.f32 %v1229, %v1291
  %v1294 = vsub.f32 %v1290, %v1292
  %v1295 = vsub.f32 %v1291, %v1293
  %v1296 = vmax.f32 %v1294, 0.0
  %v1297 = vmax.f32 %v1295, 0.0
  %v1298 = vadd.f32 %v1228, %v1296
  %v1299 = vadd.f32 %v1229, %v1297
  %v1300 = vsel %vm30, inf, %v1258
  %v1301 = vsel %vm31, inf, %v1259
  %v1302 = vsel %vm28, inf, %v1265
  %v1303 = vsel %vm29, inf, %v1264
  %v1304 = vmin.f32 %v1300, %v1254
  %v1305 = vmin.f32 %v1301, %v1255
  %v1306 = vmin.f32 %v1304, %v1302
  %v1307 = vmin.f32 %v1305, %v1303
  %1308 = vrot.lane.b32.xlu0 %v1254, 127
  %v1309 = vpop.permute.xlu0 %1308
  %1310 = vrot.lane.b32.xlu0 %v1255, 127
  %v1311 = vpop.permute.xlu0 %1310
  %v1312 = vsel %vm33, inf, %v1309
  %v1313 = vsel %vm33, inf, %v1311
  %1314 = vrot.lane.b32.xlu0 %v1254, 1
  %v1315 = vpop.permute.xlu0 %1314
  %1316 = vrot.lane.b32.xlu0 %v1255, 1
  %v1317 = vpop.permute.xlu0 %1316
  %v1318 = vsel %vm32, inf, %v1315
  %v1319 = vsel %vm32, inf, %v1317
  %v1320 = vmin.f32 %v1312, %v1254
  %v1321 = vmin.f32 %v1313, %v1255
  %v1322 = vmin.f32 %v1320, %v1318
  %v1323 = vmin.f32 %v1321, %v1319
  %v1324 = vmin.f32 %v1306, %v1322
  %v1325 = vmin.f32 %v1307, %v1323
  %v1326 = vrot.slane %v1324, 1
  %v1327 = vrot.slane %v1325, 1
  %v1328 = vsel %vm40, %v1326, %v1327
  %v1329 = vsel %vm40, %v1327, %v1326
  %v1330 = vsel %vm30, -inf, %v1328
  %v1331 = vsel %vm31, -inf, %v1329
  %v1332 = vrot.slane %v1324, 7
  %v1333 = vrot.slane %v1325, 7
  %v1334 = vsel %vm47, %v1332, %v1333
  %v1335 = vsel %vm47, %v1333, %v1332
  %v1336 = vsel %vm28, -inf, %v1335
  %v1337 = vsel %vm29, -inf, %v1334
  %v1338 = vmax.f32 %v1330, %v1324
  %v1339 = vmax.f32 %v1331, %v1325
  %v1340 = vmax.f32 %v1338, %v1336
  %v1341 = vmax.f32 %v1339, %v1337
  %1342 = vrot.lane.b32.xlu0 %v1340, 127
  %v1343 = vpop.permute.xlu0 %1342
  %1344 = vrot.lane.b32.xlu0 %v1341, 127
  %v1345 = vpop.permute.xlu0 %1344
  %v1346 = vsel %vm33, -inf, %v1343
  %v1347 = vsel %vm33, -inf, %v1345
  %1348 = vrot.lane.b32.xlu0 %v1340, 1
  %v1349 = vpop.permute.xlu0 %1348
  %1350 = vrot.lane.b32.xlu0 %v1341, 1
  %v1351 = vpop.permute.xlu0 %1350
  %v1352 = vsel %vm32, -inf, %v1349
  %v1353 = vsel %vm32, -inf, %v1351
  %v1354 = vmax.f32 %v1346, %v1340
  %v1355 = vmax.f32 %v1347, %v1341
  %v1356 = vmax.f32 %v1354, %v1352
  %v1357 = vmax.f32 %v1355, %v1353
  %v1358 = vsub.f32 %v1254, %v1356
  %v1359 = vsub.f32 %v1255, %v1357
  %v1360 = vmax.f32 %v1358, 0.0
  %v1361 = vmax.f32 %v1359, 0.0
  %v1362 = vmul.f32 %v1298, %v1360
  %v1363 = vmul.f32 %v1299, %v1361
  %v1364 = vsub.f32 %v1360, %v1362
  %v1365 = vsub.f32 %v1361, %v1363
  %v1366 = vmax.f32 %v1364, 0.0
  %v1367 = vmax.f32 %v1365, 0.0
  %v1368 = vadd.f32 %v1298, %v1366
  %v1369 = vadd.f32 %v1299, %v1367
  %v1370 = vsel %vm30, inf, %v1328
  %v1371 = vsel %vm31, inf, %v1329
  %v1372 = vsel %vm28, inf, %v1335
  %v1373 = vsel %vm29, inf, %v1334
  %v1374 = vmin.f32 %v1370, %v1324
  %v1375 = vmin.f32 %v1371, %v1325
  %v1376 = vmin.f32 %v1374, %v1372
  %v1377 = vmin.f32 %v1375, %v1373
  %1378 = vrot.lane.b32.xlu0 %v1324, 127
  %v1379 = vpop.permute.xlu0 %1378
  %1380 = vrot.lane.b32.xlu0 %v1325, 127
  %v1381 = vpop.permute.xlu0 %1380
  %v1382 = vsel %vm33, inf, %v1379
  %v1383 = vsel %vm33, inf, %v1381
  %1384 = vrot.lane.b32.xlu0 %v1324, 1
  %v1385 = vpop.permute.xlu0 %1384
  %1386 = vrot.lane.b32.xlu0 %v1325, 1
  %v1387 = vpop.permute.xlu0 %1386
  %v1388 = vsel %vm32, inf, %v1385
  %v1389 = vsel %vm32, inf, %v1387
  %v1390 = vmin.f32 %v1382, %v1324
  %v1391 = vmin.f32 %v1383, %v1325
  %v1392 = vmin.f32 %v1390, %v1388
  %v1393 = vmin.f32 %v1391, %v1389
  %v1394 = vmin.f32 %v1376, %v1392
  %v1395 = vmin.f32 %v1377, %v1393
  %v1396 = vrot.slane %v1394, 1
  %v1397 = vrot.slane %v1395, 1
  %v1398 = vsel %vm40, %v1396, %v1397
  %v1399 = vsel %vm40, %v1397, %v1396
  %v1400 = vsel %vm30, -inf, %v1398
  %v1401 = vsel %vm31, -inf, %v1399
  %v1402 = vrot.slane %v1394, 7
  %v1403 = vrot.slane %v1395, 7
  %v1404 = vsel %vm47, %v1402, %v1403
  %v1405 = vsel %vm47, %v1403, %v1402
  %v1406 = vsel %vm28, -inf, %v1405
  %v1407 = vsel %vm29, -inf, %v1404
  %v1408 = vmax.f32 %v1400, %v1394
  %v1409 = vmax.f32 %v1401, %v1395
  %v1410 = vmax.f32 %v1408, %v1406
  %v1411 = vmax.f32 %v1409, %v1407
  %1412 = vrot.lane.b32.xlu0 %v1410, 127
  %v1413 = vpop.permute.xlu0 %1412
  %1414 = vrot.lane.b32.xlu0 %v1411, 127
  %v1415 = vpop.permute.xlu0 %1414
  %v1416 = vsel %vm33, -inf, %v1413
  %v1417 = vsel %vm33, -inf, %v1415
  %1418 = vrot.lane.b32.xlu0 %v1410, 1
  %v1419 = vpop.permute.xlu0 %1418
  %1420 = vrot.lane.b32.xlu0 %v1411, 1
  %v1421 = vpop.permute.xlu0 %1420
  %v1422 = vsel %vm32, -inf, %v1419
  %v1423 = vsel %vm32, -inf, %v1421
  %v1424 = vmax.f32 %v1416, %v1410
  %v1425 = vmax.f32 %v1417, %v1411
  %v1426 = vmax.f32 %v1424, %v1422
  %v1427 = vmax.f32 %v1425, %v1423
  %v1428 = vsub.f32 %v1324, %v1426
  %v1429 = vsub.f32 %v1325, %v1427
  %v1430 = vmax.f32 %v1428, 0.0
  %v1431 = vmax.f32 %v1429, 0.0
  %v1432 = vmul.f32 %v1368, %v1430
  %v1433 = vmul.f32 %v1369, %v1431
  %v1434 = vsub.f32 %v1430, %v1432
  %v1435 = vsub.f32 %v1431, %v1433
  %v1436 = vmax.f32 %v1434, 0.0
  %v1437 = vmax.f32 %v1435, 0.0
  %v1438 = vadd.f32 %v1368, %v1436
  %v1439 = vadd.f32 %v1369, %v1437
  %v1440 = vsel %vm30, inf, %v1398
  %v1441 = vsel %vm31, inf, %v1399
  %v1442 = vsel %vm28, inf, %v1405
  %v1443 = vsel %vm29, inf, %v1404
  %v1444 = vmin.f32 %v1440, %v1394
  %v1445 = vmin.f32 %v1441, %v1395
  %v1446 = vmin.f32 %v1444, %v1442
  %v1447 = vmin.f32 %v1445, %v1443
  %1448 = vrot.lane.b32.xlu0 %v1394, 127
  %v1449 = vpop.permute.xlu0 %1448
  %1450 = vrot.lane.b32.xlu0 %v1395, 127
  %v1451 = vpop.permute.xlu0 %1450
  %v1452 = vsel %vm33, inf, %v1449
  %v1453 = vsel %vm33, inf, %v1451
  %1454 = vrot.lane.b32.xlu0 %v1394, 1
  %v1455 = vpop.permute.xlu0 %1454
  %1456 = vrot.lane.b32.xlu0 %v1395, 1
  %v1457 = vpop.permute.xlu0 %1456
  %v1458 = vsel %vm32, inf, %v1455
  %v1459 = vsel %vm32, inf, %v1457
  %v1460 = vmin.f32 %v1452, %v1394
  %v1461 = vmin.f32 %v1453, %v1395
  %v1462 = vmin.f32 %v1460, %v1458
  %v1463 = vmin.f32 %v1461, %v1459
  %v1464 = vmin.f32 %v1446, %v1462
  %v1465 = vmin.f32 %v1447, %v1463
  %v1466 = vrot.slane %v1464, 1
  %v1467 = vrot.slane %v1465, 1
  %v1468 = vsel %vm40, %v1466, %v1467
  %v1469 = vsel %vm40, %v1467, %v1466
  %v1470 = vsel %vm30, -inf, %v1468
  %v1471 = vsel %vm31, -inf, %v1469
  %v1472 = vrot.slane %v1464, 7
  %v1473 = vrot.slane %v1465, 7
  %v1474 = vsel %vm47, %v1472, %v1473
  %v1475 = vsel %vm47, %v1473, %v1472
  %v1476 = vsel %vm28, -inf, %v1475
  %v1477 = vsel %vm29, -inf, %v1474
  %v1478 = vmax.f32 %v1470, %v1464
  %v1479 = vmax.f32 %v1471, %v1465
  %v1480 = vmax.f32 %v1478, %v1476
  %v1481 = vmax.f32 %v1479, %v1477
  %1482 = vrot.lane.b32.xlu0 %v1480, 127
  %v1483 = vpop.permute.xlu0 %1482
  %1484 = vrot.lane.b32.xlu0 %v1481, 127
  %v1485 = vpop.permute.xlu0 %1484
  %v1486 = vsel %vm33, -inf, %v1483
  %v1487 = vsel %vm33, -inf, %v1485
  %1488 = vrot.lane.b32.xlu0 %v1480, 1
  %v1489 = vpop.permute.xlu0 %1488
  %1490 = vrot.lane.b32.xlu0 %v1481, 1
  %v1491 = vpop.permute.xlu0 %1490
  %v1492 = vsel %vm32, -inf, %v1489
  %v1493 = vsel %vm32, -inf, %v1491
  %v1494 = vmax.f32 %v1486, %v1480
  %v1495 = vmax.f32 %v1487, %v1481
  %v1496 = vmax.f32 %v1494, %v1492
  %v1497 = vmax.f32 %v1495, %v1493
  %v1498 = vsub.f32 %v1394, %v1496
  %v1499 = vsub.f32 %v1395, %v1497
  %v1500 = vmax.f32 %v1498, 0.0
  %v1501 = vmax.f32 %v1499, 0.0
  %v1502 = vmul.f32 %v1438, %v1500
  %v1503 = vmul.f32 %v1439, %v1501
  %v1504 = vsub.f32 %v1500, %v1502
  %v1505 = vsub.f32 %v1501, %v1503
  %v1506 = vmax.f32 %v1504, 0.0
  %v1507 = vmax.f32 %v1505, 0.0
  %v1508 = vadd.f32 %v1438, %v1506
  %v1509 = vadd.f32 %v1439, %v1507
  %v1510 = vsel %vm30, inf, %v1468
  %v1511 = vsel %vm31, inf, %v1469
  %v1512 = vsel %vm28, inf, %v1475
  %v1513 = vsel %vm29, inf, %v1474
  %v1514 = vmin.f32 %v1510, %v1464
  %v1515 = vmin.f32 %v1511, %v1465
  %v1516 = vmin.f32 %v1514, %v1512
  %v1517 = vmin.f32 %v1515, %v1513
  %1518 = vrot.lane.b32.xlu0 %v1464, 127
  %v1519 = vpop.permute.xlu0 %1518
  %1520 = vrot.lane.b32.xlu0 %v1465, 127
  %v1521 = vpop.permute.xlu0 %1520
  %v1522 = vsel %vm33, inf, %v1519
  %v1523 = vsel %vm33, inf, %v1521
  %1524 = vrot.lane.b32.xlu0 %v1464, 1
  %v1525 = vpop.permute.xlu0 %1524
  %1526 = vrot.lane.b32.xlu0 %v1465, 1
  %v1527 = vpop.permute.xlu0 %1526
  %v1528 = vsel %vm32, inf, %v1525
  %v1529 = vsel %vm32, inf, %v1527
  %v1530 = vmin.f32 %v1522, %v1464
  %v1531 = vmin.f32 %v1523, %v1465
  %v1532 = vmin.f32 %v1530, %v1528
  %v1533 = vmin.f32 %v1531, %v1529
  %v1534 = vmin.f32 %v1516, %v1532
  %v1535 = vmin.f32 %v1517, %v1533
  %v1536 = vrot.slane %v1534, 1
  %v1537 = vrot.slane %v1535, 1
  %v1538 = vsel %vm40, %v1536, %v1537
  %v1539 = vsel %vm40, %v1537, %v1536
  %v1540 = vsel %vm30, -inf, %v1538
  %v1541 = vsel %vm31, -inf, %v1539
  %v1542 = vrot.slane %v1534, 7
  %v1543 = vrot.slane %v1535, 7
  %v1544 = vsel %vm47, %v1542, %v1543
  %v1545 = vsel %vm47, %v1543, %v1542
  %v1546 = vsel %vm28, -inf, %v1545
  %v1547 = vsel %vm29, -inf, %v1544
  %v1548 = vmax.f32 %v1540, %v1534
  %v1549 = vmax.f32 %v1541, %v1535
  %v1550 = vmax.f32 %v1548, %v1546
  %v1551 = vmax.f32 %v1549, %v1547
  %1552 = vrot.lane.b32.xlu0 %v1550, 127
  %v1553 = vpop.permute.xlu0 %1552
  %1554 = vrot.lane.b32.xlu0 %v1551, 127
  %v1555 = vpop.permute.xlu0 %1554
  %v1556 = vsel %vm33, -inf, %v1553
  %v1557 = vsel %vm33, -inf, %v1555
  %1558 = vrot.lane.b32.xlu0 %v1550, 1
  %v1559 = vpop.permute.xlu0 %1558
  %1560 = vrot.lane.b32.xlu0 %v1551, 1
  %v1561 = vpop.permute.xlu0 %1560
  %v1562 = vsel %vm32, -inf, %v1559
  %v1563 = vsel %vm32, -inf, %v1561
  %v1564 = vmax.f32 %v1556, %v1550
  %v1565 = vmax.f32 %v1557, %v1551
  %v1566 = vmax.f32 %v1564, %v1562
  %v1567 = vmax.f32 %v1565, %v1563
  %v1568 = vsub.f32 %v1464, %v1566
  %v1569 = vsub.f32 %v1465, %v1567
  %v1570 = vmax.f32 %v1568, 0.0
  %v1571 = vmax.f32 %v1569, 0.0
  %v1572 = vmul.f32 %v1508, %v1570
  %v1573 = vmul.f32 %v1509, %v1571
  %v1574 = vsub.f32 %v1570, %v1572
  %v1575 = vsub.f32 %v1571, %v1573
  %v1576 = vmax.f32 %v1574, 0.0
  %v1577 = vmax.f32 %v1575, 0.0
  %v1578 = vadd.f32 %v1508, %v1576
  %v1579 = vadd.f32 %v1509, %v1577
  %v1580 = vmul.f32 %v808, %v36
  %v1581 = vmul.f32 %v809, %v37
  %v1582 = vadd.f32 %v1580, %v1581
  %v1583 = vrot.slane %v1582, 4
  %v1584 = vadd.f32 %v1582, %v1583
  %v1585 = vrot.slane %v1584, 2
  %v1586 = vadd.f32 %v1584, %v1585
  %v1587 = vrot.slane %v1586, 1
  %v1588 = vadd.f32 %v1586, %v1587
  %v1589 = vadd.f32 %v808, %v809
  %v1590 = vrot.slane %v1589, 4
  %v1591 = vadd.f32 %v1589, %v1590
  %v1592 = vrot.slane %v1591, 2
  %v1593 = vadd.f32 %v1591, %v1592
  %v1594 = vrot.slane %v1593, 1
  %v1595 = vadd.f32 %v1593, %v1594
  %v1596 = vmul.f32 %v1578, %v34
  %v1597 = vmul.f32 %v1579, %v35
  %v1598 = vadd.f32 %v1596, %v1597
  %v1599 = vrot.slane %v1598, 4
  %v1600 = vadd.f32 %v1598, %v1599
  %v1601 = vrot.slane %v1600, 2
  %v1602 = vadd.f32 %v1600, %v1601
  %v1603 = vrot.slane %v1602, 1
  %v1604 = vadd.f32 %v1602, %v1603
  %v1605 = vadd.f32 %v1578, %v1579
  %v1606 = vrot.slane %v1605, 4
  %v1607 = vadd.f32 %v1605, %v1606
  %v1608 = vrot.slane %v1607, 2
  %v1609 = vadd.f32 %v1607, %v1608
  %v1610 = vrot.slane %v1609, 1
  %v1611 = vadd.f32 %v1609, %v1610
  %vm1612 = vcmask 1040384
  %v1613 = vsel %vm1612, %v1588, %v1595
  %vm1614 = vcmask 1041408
  %v1615 = vsel %vm1614, %v1613, %v1604
  %vm1616 = vcmask 1042432
  %v1617 = vsel %vm1616, %v1615, %v1611
  %1618 = vst [vmem:[%s2] sm:$0xf] %v1617
  // Predicated region
  $region10: #{memory_efficient_soft_cl_dice_loss.1} parent=0 // pred_check
    _
  $region11: #{memory_efficient_soft_cl_dice_loss.1} parent=0 // pred_check_branch
    %1620 = sbr.rel (0) target = $region13
  $region12: #{memory_efficient_soft_cl_dice_loss.1} parent=0 // pred_region
    _
  $region13: #{memory_efficient_soft_cl_dice_loss.1} parent=0 // pred_fallthru
    _
  // Predicated region
  $region14: #{memory_efficient_soft_cl_dice_loss.1} parent=0 // pred_check
    _
  $region15: #{memory_efficient_soft_cl_dice_loss.1} parent=0 // pred_check_branch
    %1622 = sbr.rel (0) target = $region17
  $region16: #{memory_efficient_soft_cl_dice_loss.1} parent=0 // pred_region
    _
  $region17: #{memory_efficient_soft_cl_dice_loss.1} parent=0 // pred_fallthru
    _

</llo_original>
